<compile_context>
chip_gen: v7x
topology: tpu7x:2x2x1
jax: 0.10.0
libtpu: 0.0.40
codegen_flags: <defaults>
</compile_context>

<pallas_src>
import functools

import jax
import jax.numpy as jnp
import numpy as np
from jax.experimental import pallas as pl
from jax.experimental.pallas import tpu as pltpu

_EPS = 1e-5
# a @ b.T : contract dim 1 of both operands (same pattern as q @ k.T in flash).
_NT_DIMS = (((1,), (1,)), ((), ()))


def _round_up(v, m):
    return ((v + m - 1) // m) * m


# ---------------------------------------------------------------------------
# Kernel
# ---------------------------------------------------------------------------
def dnet3_kernel(x_ref,
                 w1, t1, w2, t2, w3, t3, w4, t4, w5, t5,
                 wo, bo,
                 o_ref, *, use_bf16: bool, split: bool):
    """Fused 5-block MLP + transposed output head for one batch tile (VMEM)."""
    layers = ((w1, t1), (w2, t2), (w3, t3), (w4, t4), (w5, t5))

    def mlp_head(x):
        h = x
        for w, t in layers:
            lhs = h.astype(jnp.bfloat16) if use_bf16 else h
            # Linear with BN pre-folded into W and t (MXU, f32 accumulation).
            z = jnp.dot(lhs, w[...], preferred_element_type=jnp.float32) + t[...]
            h = jnp.maximum(z, 0.0)          # ReLU; dropout = identity (eval)
        lhs = h.astype(jnp.bfloat16) if use_bf16 else h
        # Transposed head: [n_pad8, H5] x [rows, H5]^T -> [n_pad8, rows].
        out_t = jax.lax.dot_general(wo[...], lhs, dimension_numbers=_NT_DIMS,
                                    preferred_element_type=jnp.float32)
        return out_t + bo[...]

    if split:
        # Two independent halves -> two dependency chains the LLO scheduler can
        # interleave (hides MRF drain latency of the serial layer chain).
        half = x_ref.shape[0] // 2           # static; multiple of 128 by construction
        o_ref[:, :half] = mlp_head(x_ref[:half, :]).astype(o_ref.dtype)
        o_ref[:, half:] = mlp_head(x_ref[half:, :]).astype(o_ref.dtype)
    else:
        o_ref[...] = mlp_head(x_ref[...]).astype(o_ref.dtype)


# ---------------------------------------------------------------------------
# One-time parameter preparation (transpose + BN fold + padding)
# ---------------------------------------------------------------------------
def prepare_params(params, *, eps=_EPS, use_bf16=True):
    """Fold BN into the linear weights once, outside the per-call path."""
    wdtype = jnp.bfloat16 if use_bf16 else jnp.float32
    args = []
    for i in range(1, 6):
        w, b = params[f"w{i}"], params[f"b{i}"]
        gamma, beta = params[f"gamma{i}"], params[f"beta{i}"]
        rmean, rvar = params[f"rmean{i}"], params[f"rvar{i}"]
        s = gamma * jax.lax.rsqrt(rvar + eps)                  # per-feature scale
        w_folded = (w.T * s[None, :]).astype(wdtype)           # [in, out]
        t_folded = ((b - rmean) * s + beta).reshape(1, -1).astype(jnp.float32)
        args += [w_folded, t_folded]

    # Output head kept transposed: [n_output(->8 sublanes), H5]; bias [8, 1].
    wo, bo = params["wo"], params["bo"]
    n_output, h5 = wo.shape
    n_pad8 = max(8, _round_up(n_output, 8))
    wo_p = jnp.zeros((n_pad8, h5), wdtype).at[:n_output, :].set(wo.astype(wdtype))
    bo_p = jnp.zeros((n_pad8, 1), jnp.float32).at[:n_output, 0].set(bo)
    args += [wo_p, bo_p]

    return {"args": tuple(args), "n_output": n_output,
            "n_pad8": n_pad8, "use_bf16": use_bf16}


# ---------------------------------------------------------------------------
# Forward wrapper (batch-tiled pallas_call)
# ---------------------------------------------------------------------------
@functools.partial(jax.jit,
                   static_argnames=("n_output", "n_pad8", "use_bf16", "block_b"))
def _dnet3_forward_impl(x, args, *, n_output, n_pad8, use_bf16, block_b):
    B, F = x.shape

    # Large batch tile (multiple of 128), but clamp so the grid keeps >= 2
    # steps when B permits (megacore sharding on v7x).  No wrapper-side pad:
    # the ragged last tile is masked by Pallas; garbage rows only ever feed
    # out-of-range output columns, which the writeback discards.
    tb = max(128, min(block_b, _round_up(pl.cdiv(B, 2), 128)))
    n_blocks = pl.cdiv(B, tb)
    split = (tb % 256 == 0)          # halves must stay 128-lane aligned

    x_spec = pl.BlockSpec((tb, F), lambda i: (i, 0))
    out_spec = pl.BlockSpec((n_pad8, tb), lambda i: (0, i))
    # Weights/shifts: full-extent blocks, constant index_map -> VMEM-resident.
    w_specs = [pl.BlockSpec(a.shape, lambda i: (0, 0)) for a in args]

    # VMEM budget derived from the actual footprint: resident weights (x2 for
    # buffering slack) + double-buffered x/out tiles + scratch margin.
    weight_bytes = sum(int(np.prod(a.shape)) * a.dtype.itemsize for a in args)
    io_bytes = 2 * tb * F * x.dtype.itemsize + 2 * n_pad8 * tb * 4
    vmem_limit = max(int(2 * weight_bytes + io_bytes + (4 << 20)), 8 << 20)

    out_t = pl.pallas_call(
        functools.partial(dnet3_kernel, use_bf16=use_bf16, split=split),
        out_shape=jax.ShapeDtypeStruct((n_pad8, B), jnp.float32),
        grid_spec=pltpu.PrefetchScalarGridSpec(
            num_scalar_prefetch=0,
            grid=(n_blocks,),
            in_specs=[x_spec] + w_specs,
            out_specs=out_spec),
        compiler_params=pltpu.CompilerParams(
            dimension_semantics=("parallel",),
            vmem_limit_bytes=vmem_limit),
    )(x, *args)

    # Tiny [n_output, B] slab back to the module's [B, n_output] layout.
    return out_t[:n_output, :].T


def dnet3_forward(x, prepared, *, block_b=1024):
    return _dnet3_forward_impl(
        x, prepared["args"],
        n_output=prepared["n_output"], n_pad8=prepared["n_pad8"],
        use_bf16=prepared["use_bf16"], block_b=block_b)


# ---------------------------------------------------------------------------
# Pure-JAX reference (unfolded eval-mode forward) and init
# ---------------------------------------------------------------------------
def dnet3_reference(x, params, eps=_EPS):
    h = x
    hi = jax.lax.Precision.HIGHEST
    for i in range(1, 6):
        h = jnp.dot(h, params[f"w{i}"].T, precision=hi) + params[f"b{i}"]
        h = (h - params[f"rmean{i}"]) * jax.lax.rsqrt(params[f"rvar{i}"] + eps)
        h = h * params[f"gamma{i}"] + params[f"beta{i}"]
        h = jnp.maximum(h, 0.0)
    return jnp.dot(h, params["wo"].T, precision=hi) + params["bo"]


def init_params(key, n_feature, hiddens, n_output):
    """Deterministic init matching the shapes declared in DNet3.__init__."""
    dims = [n_feature] + list(hiddens)
    params = {}
    for i, (n_in, n_out) in enumerate(zip(dims[:-1], dims[1:]), start=1):
        key, kw, kb, kg, kt, km, kv = jax.random.split(key, 7)
        bound = 1.0 / np.sqrt(n_in)
        params[f"w{i}"] = jax.random.uniform(kw, (n_out, n_in), jnp.float32,
                                             -bound, bound)
        params[f"b{i}"] = jax.random.uniform(kb, (n_out,), jnp.float32,
                                             -bound, bound)
        # Non-trivial BN running stats so the folded affine is exercised.
        params[f"gamma{i}"] = jax.random.uniform(kg, (n_out,), jnp.float32, 0.5, 1.5)
        params[f"beta{i}"] = 0.1 * jax.random.normal(kt, (n_out,), jnp.float32)
        params[f"rmean{i}"] = 0.1 * jax.random.normal(km, (n_out,), jnp.float32)
        params[f"rvar{i}"] = jax.random.uniform(kv, (n_out,), jnp.float32, 0.5, 1.5)
    key, kw, kb = jax.random.split(key, 3)
    bound = 1.0 / np.sqrt(dims[-1])
    params["wo"] = jax.random.uniform(kw, (n_output, dims[-1]), jnp.float32,
                                      -bound, bound)
    params["bo"] = jax.random.uniform(kb, (n_output,), jnp.float32,
                                      -bound, bound)
    return params


if __name__ == "__main__":
    # Shapes consistent with DNet3's forward; batch chosen so the grid has two
    # steps (tb clamps to 512) and the last tile is ragged (1000 % 512 != 0),
    # exercising both the megacore path and the masked edge-block path.
    batch = 1000
    n_feature = 16
    hiddens = (32, 32, 32, 32, 32)   # n_hidden1..5
    n_output = 4

    key = jax.random.PRNGKey(0)
    key, kx = jax.random.split(key)
    x = jax.random.normal(kx, (batch, n_feature), jnp.float32)
    params = init_params(key, n_feature, hiddens, n_output)
    ref = dnet3_reference(x, params)

    # Full-f32 weights: tight check against the unfolded reference.
    prep_f32 = prepare_params(params, use_bf16=False)
    out_f32 = jax.block_until_ready(dnet3_forward(x, prep_f32))
    np.testing.assert_allclose(np.asarray(out_f32), np.asarray(ref),
                               rtol=1e-4, atol=1e-4)

    # bf16 weights / matmul LHS (default fast path): loose check.
    prep_bf16 = prepare_params(params, use_bf16=True)
    out_bf16 = jax.block_until_ready(dnet3_forward(x, prep_bf16))
    np.testing.assert_allclose(np.asarray(out_bf16), np.asarray(ref),
                               rtol=5e-2, atol=5e-2)

    print("KERNEL_OK")
</pallas_src>

<mosaic_0001>
module attributes {stable_mosaic.version = 11 : i64} {
  func.func @dnet3_kernel(%arg0: i32, %arg1: memref<512x16xf32, #tpu.memory_space<vmem>>, %arg2: memref<16x32xf32, #tpu.memory_space<vmem>>, %arg3: memref<1x32xf32, #tpu.memory_space<vmem>>, %arg4: memref<32x32xf32, #tpu.memory_space<vmem>>, %arg5: memref<1x32xf32, #tpu.memory_space<vmem>>, %arg6: memref<32x32xf32, #tpu.memory_space<vmem>>, %arg7: memref<1x32xf32, #tpu.memory_space<vmem>>, %arg8: memref<32x32xf32, #tpu.memory_space<vmem>>, %arg9: memref<1x32xf32, #tpu.memory_space<vmem>>, %arg10: memref<32x32xf32, #tpu.memory_space<vmem>>, %arg11: memref<1x32xf32, #tpu.memory_space<vmem>>, %arg12: memref<8x32xf32, #tpu.memory_space<vmem>>, %arg13: memref<8x1xf32, #tpu.memory_space<vmem>>, %arg14: memref<8x512xf32, #tpu.memory_space<vmem>>) attributes {dimension_semantics = [#tpu.dimension_semantics<parallel>], iteration_bounds = array<i64: 2>, scalar_prefetch = 0 : i64, scratch_operands = 0 : i64, tpu.core_type = #tpu.core_type<tc>, window_params = [{transform_indices = @transform_0, window_bounds = array<i64: 512, 16>}, {pipeline_mode = #tpu.pipeline_mode<synchronous>, transform_indices = @transform_1, window_bounds = array<i64: 16, 32>}, {pipeline_mode = #tpu.pipeline_mode<synchronous>, transform_indices = @transform_2, window_bounds = array<i64: 1, 32>}, {pipeline_mode = #tpu.pipeline_mode<synchronous>, transform_indices = @transform_3, window_bounds = array<i64: 32, 32>}, {pipeline_mode = #tpu.pipeline_mode<synchronous>, transform_indices = @transform_4, window_bounds = array<i64: 1, 32>}, {pipeline_mode = #tpu.pipeline_mode<synchronous>, transform_indices = @transform_5, window_bounds = array<i64: 32, 32>}, {pipeline_mode = #tpu.pipeline_mode<synchronous>, transform_indices = @transform_6, window_bounds = array<i64: 1, 32>}, {pipeline_mode = #tpu.pipeline_mode<synchronous>, transform_indices = @transform_7, window_bounds = array<i64: 32, 32>}, {pipeline_mode = #tpu.pipeline_mode<synchronous>, transform_indices = @transform_8, window_bounds = array<i64: 1, 32>}, {pipeline_mode = #tpu.pipeline_mode<synchronous>, transform_indices = @transform_9, window_bounds = array<i64: 32, 32>}, {pipeline_mode = #tpu.pipeline_mode<synchronous>, transform_indices = @transform_10, window_bounds = array<i64: 1, 32>}, {pipeline_mode = #tpu.pipeline_mode<synchronous>, transform_indices = @transform_11, window_bounds = array<i64: 8, 32>}, {pipeline_mode = #tpu.pipeline_mode<synchronous>, transform_indices = @transform_12, window_bounds = array<i64: 8, 1>}, {transform_indices = @transform_13, window_bounds = array<i64: 8, 512>}]} {
    %c0 = arith.constant 0 : index
    %c0_0 = arith.constant 0 : index
    %0 = vector.load %arg1[%c0, %c0_0] : memref<512x16xf32, #tpu.memory_space<vmem>>, vector<256x16xf32>
    %c0_1 = arith.constant 0 : index
    %c0_2 = arith.constant 0 : index
    %1 = vector.load %arg2[%c0_1, %c0_2] : memref<16x32xf32, #tpu.memory_space<vmem>>, vector<16x32xf32>
    %cst = arith.constant dense<0.000000e+00> : vector<256x32xf32>
    %2 = tpu.matmul %0, %1, %cst {dimension_numbers = #tpu.dot_dimension_numbers<[1], [0], [0], [1], [0, 0, 1, 1], [], []>} : vector<256x16xf32>, vector<16x32xf32>, vector<256x32xf32> -> vector<256x32xf32>
    %c0_3 = arith.constant 0 : index
    %c0_4 = arith.constant 0 : index
    %3 = vector.load %arg3[%c0_3, %c0_4] : memref<1x32xf32, #tpu.memory_space<vmem>>, vector<1x32xf32>
    %4 = vector.broadcast %3 : vector<1x32xf32> to vector<256x32xf32>
    %5 = arith.addf %2, %4 : vector<256x32xf32>
    %cst_5 = arith.constant 0.000000e+00 : f32
    %6 = vector.broadcast %cst_5 : f32 to vector<256x32xf32>
    %7 = arith.maximumf %5, %6 : vector<256x32xf32>
    %c0_6 = arith.constant 0 : index
    %c0_7 = arith.constant 0 : index
    %8 = vector.load %arg4[%c0_6, %c0_7] : memref<32x32xf32, #tpu.memory_space<vmem>>, vector<32x32xf32>
    %cst_8 = arith.constant dense<0.000000e+00> : vector<256x32xf32>
    %9 = tpu.matmul %7, %8, %cst_8 {dimension_numbers = #tpu.dot_dimension_numbers<[1], [0], [0], [1], [0, 0, 1, 1], [], []>} : vector<256x32xf32>, vector<32x32xf32>, vector<256x32xf32> -> vector<256x32xf32>
    %c0_9 = arith.constant 0 : index
    %c0_10 = arith.constant 0 : index
    %10 = vector.load %arg5[%c0_9, %c0_10] : memref<1x32xf32, #tpu.memory_space<vmem>>, vector<1x32xf32>
    %11 = vector.broadcast %10 : vector<1x32xf32> to vector<256x32xf32>
    %12 = arith.addf %9, %11 : vector<256x32xf32>
    %cst_11 = arith.constant 0.000000e+00 : f32
    %13 = vector.broadcast %cst_11 : f32 to vector<256x32xf32>
    %14 = arith.maximumf %12, %13 : vector<256x32xf32>
    %c0_12 = arith.constant 0 : index
    %c0_13 = arith.constant 0 : index
    %15 = vector.load %arg6[%c0_12, %c0_13] : memref<32x32xf32, #tpu.memory_space<vmem>>, vector<32x32xf32>
    %cst_14 = arith.constant dense<0.000000e+00> : vector<256x32xf32>
    %16 = tpu.matmul %14, %15, %cst_14 {dimension_numbers = #tpu.dot_dimension_numbers<[1], [0], [0], [1], [0, 0, 1, 1], [], []>} : vector<256x32xf32>, vector<32x32xf32>, vector<256x32xf32> -> vector<256x32xf32>
    %c0_15 = arith.constant 0 : index
    %c0_16 = arith.constant 0 : index
    %17 = vector.load %arg7[%c0_15, %c0_16] : memref<1x32xf32, #tpu.memory_space<vmem>>, vector<1x32xf32>
    %18 = vector.broadcast %17 : vector<1x32xf32> to vector<256x32xf32>
    %19 = arith.addf %16, %18 : vector<256x32xf32>
    %cst_17 = arith.constant 0.000000e+00 : f32
    %20 = vector.broadcast %cst_17 : f32 to vector<256x32xf32>
    %21 = arith.maximumf %19, %20 : vector<256x32xf32>
    %c0_18 = arith.constant 0 : index
    %c0_19 = arith.constant 0 : index
    %22 = vector.load %arg8[%c0_18, %c0_19] : memref<32x32xf32, #tpu.memory_space<vmem>>, vector<32x32xf32>
    %cst_20 = arith.constant dense<0.000000e+00> : vector<256x32xf32>
    %23 = tpu.matmul %21, %22, %cst_20 {dimension_numbers = #tpu.dot_dimension_numbers<[1], [0], [0], [1], [0, 0, 1, 1], [], []>} : vector<256x32xf32>, vector<32x32xf32>, vector<256x32xf32> -> vector<256x32xf32>
    %c0_21 = arith.constant 0 : index
    %c0_22 = arith.constant 0 : index
    %24 = vector.load %arg9[%c0_21, %c0_22] : memref<1x32xf32, #tpu.memory_space<vmem>>, vector<1x32xf32>
    %25 = vector.broadcast %24 : vector<1x32xf32> to vector<256x32xf32>
    %26 = arith.addf %23, %25 : vector<256x32xf32>
    %cst_23 = arith.constant 0.000000e+00 : f32
    %27 = vector.broadcast %cst_23 : f32 to vector<256x32xf32>
    %28 = arith.maximumf %26, %27 : vector<256x32xf32>
    %c0_24 = arith.constant 0 : index
    %c0_25 = arith.constant 0 : index
    %29 = vector.load %arg10[%c0_24, %c0_25] : memref<32x32xf32, #tpu.memory_space<vmem>>, vector<32x32xf32>
    %cst_26 = arith.constant dense<0.000000e+00> : vector<256x32xf32>
    %30 = tpu.matmul %28, %29, %cst_26 {dimension_numbers = #tpu.dot_dimension_numbers<[1], [0], [0], [1], [0, 0, 1, 1], [], []>} : vector<256x32xf32>, vector<32x32xf32>, vector<256x32xf32> -> vector<256x32xf32>
    %c0_27 = arith.constant 0 : index
    %c0_28 = arith.constant 0 : index
    %31 = vector.load %arg11[%c0_27, %c0_28] : memref<1x32xf32, #tpu.memory_space<vmem>>, vector<1x32xf32>
    %32 = vector.broadcast %31 : vector<1x32xf32> to vector<256x32xf32>
    %33 = arith.addf %30, %32 : vector<256x32xf32>
    %cst_29 = arith.constant 0.000000e+00 : f32
    %34 = vector.broadcast %cst_29 : f32 to vector<256x32xf32>
    %35 = arith.maximumf %33, %34 : vector<256x32xf32>
    %c0_30 = arith.constant 0 : index
    %c0_31 = arith.constant 0 : index
    %36 = vector.load %arg12[%c0_30, %c0_31] : memref<8x32xf32, #tpu.memory_space<vmem>>, vector<8x32xf32>
    %cst_32 = arith.constant dense<0.000000e+00> : vector<8x256xf32>
    %37 = tpu.matmul %36, %35, %cst_32 {dimension_numbers = #tpu.dot_dimension_numbers<[1], [1], [0], [0], [0, 0, 1, 0], [], []>} : vector<8x32xf32>, vector<256x32xf32>, vector<8x256xf32> -> vector<8x256xf32>
    %c0_33 = arith.constant 0 : index
    %c0_34 = arith.constant 0 : index
    %38 = vector.load %arg13[%c0_33, %c0_34] : memref<8x1xf32, #tpu.memory_space<vmem>>, vector<8x1xf32>
    %39 = vector.broadcast %38 : vector<8x1xf32> to vector<8x256xf32>
    %40 = arith.addf %37, %39 : vector<8x256xf32>
    %c0_35 = arith.constant 0 : index
    %c0_36 = arith.constant 0 : index
    %41 = vector.load %arg14[%c0_35, %c0_36] : memref<8x512xf32, #tpu.memory_space<vmem>>, vector<8x256xf32>
    tpu.vector_store %arg14[%c0_35, %c0_36], %40 {strides = array<i32>} : memref<8x512xf32, #tpu.memory_space<vmem>>, vector<8x256xf32>,
    %c256 = arith.constant 256 : index
    %c0_37 = arith.constant 0 : index
    %42 = vector.load %arg1[%c256, %c0_37] : memref<512x16xf32, #tpu.memory_space<vmem>>, vector<256x16xf32>
    %c0_38 = arith.constant 0 : index
    %c0_39 = arith.constant 0 : index
    %43 = vector.load %arg2[%c0_38, %c0_39] : memref<16x32xf32, #tpu.memory_space<vmem>>, vector<16x32xf32>
    %cst_40 = arith.constant dense<0.000000e+00> : vector<256x32xf32>
    %44 = tpu.matmul %42, %43, %cst_40 {dimension_numbers = #tpu.dot_dimension_numbers<[1], [0], [0], [1], [0, 0, 1, 1], [], []>} : vector<256x16xf32>, vector<16x32xf32>, vector<256x32xf32> -> vector<256x32xf32>
    %c0_41 = arith.constant 0 : index
    %c0_42 = arith.constant 0 : index
    %45 = vector.load %arg3[%c0_41, %c0_42] : memref<1x32xf32, #tpu.memory_space<vmem>>, vector<1x32xf32>
    %46 = vector.broadcast %45 : vector<1x32xf32> to vector<256x32xf32>
    %47 = arith.addf %44, %46 : vector<256x32xf32>
    %cst_43 = arith.constant 0.000000e+00 : f32
    %48 = vector.broadcast %cst_43 : f32 to vector<256x32xf32>
    %49 = arith.maximumf %47, %48 : vector<256x32xf32>
    %c0_44 = arith.constant 0 : index
    %c0_45 = arith.constant 0 : index
    %50 = vector.load %arg4[%c0_44, %c0_45] : memref<32x32xf32, #tpu.memory_space<vmem>>, vector<32x32xf32>
    %cst_46 = arith.constant dense<0.000000e+00> : vector<256x32xf32>
    %51 = tpu.matmul %49, %50, %cst_46 {dimension_numbers = #tpu.dot_dimension_numbers<[1], [0], [0], [1], [0, 0, 1, 1], [], []>} : vector<256x32xf32>, vector<32x32xf32>, vector<256x32xf32> -> vector<256x32xf32>
    %c0_47 = arith.constant 0 : index
    %c0_48 = arith.constant 0 : index
    %52 = vector.load %arg5[%c0_47, %c0_48] : memref<1x32xf32, #tpu.memory_space<vmem>>, vector<1x32xf32>
    %53 = vector.broadcast %52 : vector<1x32xf32> to vector<256x32xf32>
    %54 = arith.addf %51, %53 : vector<256x32xf32>
    %cst_49 = arith.constant 0.000000e+00 : f32
    %55 = vector.broadcast %cst_49 : f32 to vector<256x32xf32>
    %56 = arith.maximumf %54, %55 : vector<256x32xf32>
    %c0_50 = arith.constant 0 : index
    %c0_51 = arith.constant 0 : index
    %57 = vector.load %arg6[%c0_50, %c0_51] : memref<32x32xf32, #tpu.memory_space<vmem>>, vector<32x32xf32>
    %cst_52 = arith.constant dense<0.000000e+00> : vector<256x32xf32>
    %58 = tpu.matmul %56, %57, %cst_52 {dimension_numbers = #tpu.dot_dimension_numbers<[1], [0], [0], [1], [0, 0, 1, 1], [], []>} : vector<256x32xf32>, vector<32x32xf32>, vector<256x32xf32> -> vector<256x32xf32>
    %c0_53 = arith.constant 0 : index
    %c0_54 = arith.constant 0 : index
    %59 = vector.load %arg7[%c0_53, %c0_54] : memref<1x32xf32, #tpu.memory_space<vmem>>, vector<1x32xf32>
    %60 = vector.broadcast %59 : vector<1x32xf32> to vector<256x32xf32>
    %61 = arith.addf %58, %60 : vector<256x32xf32>
    %cst_55 = arith.constant 0.000000e+00 : f32
    %62 = vector.broadcast %cst_55 : f32 to vector<256x32xf32>
    %63 = arith.maximumf %61, %62 : vector<256x32xf32>
    %c0_56 = arith.constant 0 : index
    %c0_57 = arith.constant 0 : index
    %64 = vector.load %arg8[%c0_56, %c0_57] : memref<32x32xf32, #tpu.memory_space<vmem>>, vector<32x32xf32>
    %cst_58 = arith.constant dense<0.000000e+00> : vector<256x32xf32>
    %65 = tpu.matmul %63, %64, %cst_58 {dimension_numbers = #tpu.dot_dimension_numbers<[1], [0], [0], [1], [0, 0, 1, 1], [], []>} : vector<256x32xf32>, vector<32x32xf32>, vector<256x32xf32> -> vector<256x32xf32>
    %c0_59 = arith.constant 0 : index
    %c0_60 = arith.constant 0 : index
    %66 = vector.load %arg9[%c0_59, %c0_60] : memref<1x32xf32, #tpu.memory_space<vmem>>, vector<1x32xf32>
    %67 = vector.broadcast %66 : vector<1x32xf32> to vector<256x32xf32>
    %68 = arith.addf %65, %67 : vector<256x32xf32>
    %cst_61 = arith.constant 0.000000e+00 : f32
    %69 = vector.broadcast %cst_61 : f32 to vector<256x32xf32>
    %70 = arith.maximumf %68, %69 : vector<256x32xf32>
    %c0_62 = arith.constant 0 : index
    %c0_63 = arith.constant 0 : index
    %71 = vector.load %arg10[%c0_62, %c0_63] : memref<32x32xf32, #tpu.memory_space<vmem>>, vector<32x32xf32>
    %cst_64 = arith.constant dense<0.000000e+00> : vector<256x32xf32>
    %72 = tpu.matmul %70, %71, %cst_64 {dimension_numbers = #tpu.dot_dimension_numbers<[1], [0], [0], [1], [0, 0, 1, 1], [], []>} : vector<256x32xf32>, vector<32x32xf32>, vector<256x32xf32> -> vector<256x32xf32>
    %c0_65 = arith.constant 0 : index
    %c0_66 = arith.constant 0 : index
    %73 = vector.load %arg11[%c0_65, %c0_66] : memref<1x32xf32, #tpu.memory_space<vmem>>, vector<1x32xf32>
    %74 = vector.broadcast %73 : vector<1x32xf32> to vector<256x32xf32>
    %75 = arith.addf %72, %74 : vector<256x32xf32>
    %cst_67 = arith.constant 0.000000e+00 : f32
    %76 = vector.broadcast %cst_67 : f32 to vector<256x32xf32>
    %77 = arith.maximumf %75, %76 : vector<256x32xf32>
    %c0_68 = arith.constant 0 : index
    %c0_69 = arith.constant 0 : index
    %78 = vector.load %arg12[%c0_68, %c0_69] : memref<8x32xf32, #tpu.memory_space<vmem>>, vector<8x32xf32>
    %cst_70 = arith.constant dense<0.000000e+00> : vector<8x256xf32>
    %79 = tpu.matmul %78, %77, %cst_70 {dimension_numbers = #tpu.dot_dimension_numbers<[1], [1], [0], [0], [0, 0, 1, 0], [], []>} : vector<8x32xf32>, vector<256x32xf32>, vector<8x256xf32> -> vector<8x256xf32>
    %c0_71 = arith.constant 0 : index
    %c0_72 = arith.constant 0 : index
    %80 = vector.load %arg13[%c0_71, %c0_72] : memref<8x1xf32, #tpu.memory_space<vmem>>, vector<8x1xf32>
    %81 = vector.broadcast %80 : vector<8x1xf32> to vector<8x256xf32>
    %82 = arith.addf %79, %81 : vector<8x256xf32>
    %c0_73 = arith.constant 0 : index
    %c256_74 = arith.constant 256 : index
    %83 = vector.load %arg14[%c0_73, %c256_74] : memref<8x512xf32, #tpu.memory_space<vmem>>, vector<8x256xf32>
    tpu.vector_store %arg14[%c0_73, %c256_74], %82 {strides = array<i32>} : memref<8x512xf32, #tpu.memory_space<vmem>>, vector<8x256xf32>,
    return
  }
  func.func @transform_0(%arg0: i32) -> (i32, i32) {
    %c0_i32 = arith.constant 0 : i32
    %c0_i32_0 = arith.constant 0 : i32
    return %arg0, %c0_i32 : i32, i32
  }
  func.func @transform_1(%arg0: i32) -> (i32, i32) {
    %c0_i32 = arith.constant 0 : i32
    %c0_i32_0 = arith.constant 0 : i32
    %c0_i32_1 = arith.constant 0 : i32
    return %c0_i32, %c0_i32_0 : i32, i32
  }
  func.func @transform_2(%arg0: i32) -> (i32, i32) {
    %c0_i32 = arith.constant 0 : i32
    %c0_i32_0 = arith.constant 0 : i32
    %c0_i32_1 = arith.constant 0 : i32
    return %c0_i32, %c0_i32_0 : i32, i32
  }
  func.func @transform_3(%arg0: i32) -> (i32, i32) {
    %c0_i32 = arith.constant 0 : i32
    %c0_i32_0 = arith.constant 0 : i32
    %c0_i32_1 = arith.constant 0 : i32
    return %c0_i32, %c0_i32_0 : i32, i32
  }
  func.func @transform_4(%arg0: i32) -> (i32, i32) {
    %c0_i32 = arith.constant 0 : i32
    %c0_i32_0 = arith.constant 0 : i32
    %c0_i32_1 = arith.constant 0 : i32
    return %c0_i32, %c0_i32_0 : i32, i32
  }
  func.func @transform_5(%arg0: i32) -> (i32, i32) {
    %c0_i32 = arith.constant 0 : i32
    %c0_i32_0 = arith.constant 0 : i32
    %c0_i32_1 = arith.constant 0 : i32
    return %c0_i32, %c0_i32_0 : i32, i32
  }
  func.func @transform_6(%arg0: i32) -> (i32, i32) {
    %c0_i32 = arith.constant 0 : i32
    %c0_i32_0 = arith.constant 0 : i32
    %c0_i32_1 = arith.constant 0 : i32
    return %c0_i32, %c0_i32_0 : i32, i32
  }
  func.func @transform_7(%arg0: i32) -> (i32, i32) {
    %c0_i32 = arith.constant 0 : i32
    %c0_i32_0 = arith.constant 0 : i32
    %c0_i32_1 = arith.constant 0 : i32
    return %c0_i32, %c0_i32_0 : i32, i32
  }
  func.func @transform_8(%arg0: i32) -> (i32, i32) {
    %c0_i32 = arith.constant 0 : i32
    %c0_i32_0 = arith.constant 0 : i32
    %c0_i32_1 = arith.constant 0 : i32
    return %c0_i32, %c0_i32_0 : i32, i32
  }
  func.func @transform_9(%arg0: i32) -> (i32, i32) {
    %c0_i32 = arith.constant 0 : i32
    %c0_i32_0 = arith.constant 0 : i32
    %c0_i32_1 = arith.constant 0 : i32
    return %c0_i32, %c0_i32_0 : i32, i32
  }
  func.func @transform_10(%arg0: i32) -> (i32, i32) {
    %c0_i32 = arith.constant 0 : i32
    %c0_i32_0 = arith.constant 0 : i32
    %c0_i32_1 = arith.constant 0 : i32
    return %c0_i32, %c0_i32_0 : i32, i32
  }
  func.func @transform_11(%arg0: i32) -> (i32, i32) {
    %c0_i32 = arith.constant 0 : i32
    %c0_i32_0 = arith.constant 0 : i32
    %c0_i32_1 = arith.constant 0 : i32
    return %c0_i32, %c0_i32_0 : i32, i32
  }
  func.func @transform_12(%arg0: i32) -> (i32, i32) {
    %c0_i32 = arith.constant 0 : i32
    %c0_i32_0 = arith.constant 0 : i32
    %c0_i32_1 = arith.constant 0 : i32
    return %c0_i32, %c0_i32_0 : i32, i32
  }
  func.func @transform_13(%arg0: i32) -> (i32, i32) {
    %c0_i32 = arith.constant 0 : i32
    %c0_i32_0 = arith.constant 0 : i32
    return %c0_i32, %arg0 : i32, i32
  }
}

</mosaic_0001>

<llo_original>
// kernel: _dnet3_forward_impl.1
$region0: #{_dnet3_forward_impl.1}
  #allocation0 [shape = 'u32[]', space=smem, size = 0x4, offset = 0x4, fixed_abs, tag = 'smem constant byte address 0x4 - core index']
  #allocation1 [shape = 'u32[144,128]{1,0:T(1,128)}', space=vmem, size = 0x12000, scoped, tag = 'internal scratch']
  %s0 = inlined_call_operand.vmem [shape: f32[1000,16], index: 0, kind: input, shape index: {}]
  %s1 = inlined_call_operand.vmem [shape: f32[16,32], index: 1, kind: input, shape index: {}]
  %s2 = inlined_call_operand.vmem [shape: f32[1,32], index: 2, kind: input, shape index: {}]
  %s3 = inlined_call_operand.vmem [shape: f32[32,32], index: 3, kind: input, shape index: {}]
  %s4 = inlined_call_operand.vmem [shape: f32[1,32], index: 4, kind: input, shape index: {}]
  %s5 = inlined_call_operand.vmem [shape: f32[32,32], index: 5, kind: input, shape index: {}]
  %s6 = inlined_call_operand.vmem [shape: f32[1,32], index: 6, kind: input, shape index: {}]
  %s7 = inlined_call_operand.vmem [shape: f32[32,32], index: 7, kind: input, shape index: {}]
  %s8 = inlined_call_operand.vmem [shape: f32[1,32], index: 8, kind: input, shape index: {}]
  %s9 = inlined_call_operand.vmem [shape: f32[32,32], index: 9, kind: input, shape index: {}]
  %s10 = inlined_call_operand.vmem [shape: f32[1,32], index: 10, kind: input, shape index: {}]
  %s11 = inlined_call_operand.vmem [shape: f32[8,32], index: 11, kind: input, shape index: {}]
  %s12 = inlined_call_operand.vmem [shape: f32[8,1], index: 12, kind: input, shape index: {}]
  %s13 = inlined_call_operand.vmem [shape: f32[8,1000], index: 13, kind: output, shape index: {}]
  %s14 = sld [smem:[#allocation0]]
  $region85: #{_dnet3_forward_impl.1} parent=0
    _
  %s16 = ssub.s32 1, %s14
  %s17 = scalar_select 0, %s16, %s14
  loop: start=0, step=1, limit=4
  $region2: #{_dnet3_forward_impl.1} parent=0 // loop_pre_header
    _
  $region3: #{_dnet3_forward_impl.1} parent=0 // loop_header
    %s19 = sphi 0, %s23
    %p20 = scmp.ge.s32.totalorder %s19, 4
    %s29 = sphi 0, %s31
    %s32 = sphi 0, %s29
    %s33 = sphi 0, %s32
    %s49 = sphi 0, %s33
    %s53 = sphi 0, %s53
    %s55 = sphi 0, %s53
    %s56 = sphi 0, %s55
    %s70 = sphi 0, %s56
    %s74 = sphi 0, %s74
    %s76 = sphi 0, %s74
    %s77 = sphi 0, %s76
    %s91 = sphi 0, %s77
    %s95 = sphi 0, %s95
    %s97 = sphi 0, %s95
    %s98 = sphi 0, %s97
    %s112 = sphi 0, %s98
    %s116 = sphi 0, %s116
    %s118 = sphi 0, %s116
    %s119 = sphi 0, %s118
    %s133 = sphi 0, %s119
    %s137 = sphi 0, %s137
    %s139 = sphi 0, %s137
    %s140 = sphi 0, %s139
    %s154 = sphi 0, %s140
    %s158 = sphi 0, %s158
    %s160 = sphi 0, %s158
    %s161 = sphi 0, %s160
    %s175 = sphi 0, %s161
    %s179 = sphi 0, %s179
    %s181 = sphi 0, %s179
    %s182 = sphi 0, %s181
    %s196 = sphi 0, %s182
    %s200 = sphi 0, %s200
    %s202 = sphi 0, %s200
    %s203 = sphi 0, %s202
    %s217 = sphi 0, %s203
    %s221 = sphi 0, %s221
    %s223 = sphi 0, %s221
    %s224 = sphi 0, %s223
    %s238 = sphi 0, %s224
    %s242 = sphi 0, %s242
    %s244 = sphi 0, %s242
    %s245 = sphi 0, %s244
    %s259 = sphi 0, %s245
    %s263 = sphi 0, %s263
    %s265 = sphi 0, %s263
    %s266 = sphi 0, %s265
    %s280 = sphi 0, %s266
    %s284 = sphi 0, %s284
    %s286 = sphi 0, %s284
    %s287 = sphi 0, %s286
    %s301 = sphi 0, %s287
    %s307 = sphi 0, %s309
    %s310 = sphi 0, %s307
    %s311 = sphi 0, %s310
    %s327 = sphi 0, %s311
  $region4: #{_dnet3_forward_impl.1} parent=0 // loop_header_branch
    %22 = sbr.rel (%p20) target = $region8
  $region5: #{_dnet3_forward_impl.1} parent=0 // loop_body
    %s24 = ssub.s32 %s19, 1
    %s25 = ssub.s32 %s19, 2
    %s26 = sadd.s32 %s19, 1
    %s27 = ssub.s32 %s19, %s26
    %p28 = scmp.eq.s32.totalorder %s27, 0
    %s30 = sadd.s32 %s29, 1
    %s31 = scalar_select %p28, %s29, %s30
    %p34 = pneg %p28
    %p35 = scmp.eq.s32.totalorder %s19, 1
    %p36 = por %p34, %p35
    %p37 = scmp.ne.s32.totalorder %s29, %s32
    %p38 = scmp.eq.s32.totalorder %s19, 0
    %p39 = por %p37, %p38
    %p40 = scmp.ne.s32.totalorder %s29, %s32
    %p41 = scmp.eq.s32.totalorder %s24, 1
    %p42 = por %p40, %p41
    %p43 = scmp.ne.s32.totalorder %s32, %s33
    %p44 = scmp.eq.s32.totalorder %s24, 0
    %p45 = por %p43, %p44
    %p46 = scmp.ne.s32.totalorder %s32, %s33
    %p47 = scmp.eq.s32.totalorder %s25, 1
    %p48 = por %p46, %p47
    %p50 = scmp.ne.s32.totalorder %s33, %s49
    %p51 = scmp.eq.s32.totalorder %s25, 0
    %p52 = por %p50, %p51
    %s54 = sadd.s32 %s53, 1
    %p57 = scmp.eq.s32.totalorder %s19, 1
    %p58 = scmp.ne.s32.totalorder %s53, %s55
    %p59 = scmp.eq.s32.totalorder %s19, 0
    %p60 = por %p58, %p59
    %p61 = scmp.ne.s32.totalorder %s53, %s55
    %p62 = scmp.eq.s32.totalorder %s24, 1
    %p63 = por %p61, %p62
    %p64 = scmp.ne.s32.totalorder %s55, %s56
    %p65 = scmp.eq.s32.totalorder %s24, 0
    %p66 = por %p64, %p65
    %p67 = scmp.ne.s32.totalorder %s55, %s56
    %p68 = scmp.eq.s32.totalorder %s25, 1
    %p69 = por %p67, %p68
    %p71 = scmp.ne.s32.totalorder %s56, %s70
    %p72 = scmp.eq.s32.totalorder %s25, 0
    %p73 = por %p71, %p72
    %s75 = sadd.s32 %s74, 1
    %p78 = scmp.eq.s32.totalorder %s19, 1
    %p79 = scmp.ne.s32.totalorder %s74, %s76
    %p80 = scmp.eq.s32.totalorder %s19, 0
    %p81 = por %p79, %p80
    %p82 = scmp.ne.s32.totalorder %s74, %s76
    %p83 = scmp.eq.s32.totalorder %s24, 1
    %p84 = por %p82, %p83
    %p85 = scmp.ne.s32.totalorder %s76, %s77
    %p86 = scmp.eq.s32.totalorder %s24, 0
    %p87 = por %p85, %p86
    %p88 = scmp.ne.s32.totalorder %s76, %s77
    %p89 = scmp.eq.s32.totalorder %s25, 1
    %p90 = por %p88, %p89
    %p92 = scmp.ne.s32.totalorder %s77, %s91
    %p93 = scmp.eq.s32.totalorder %s25, 0
    %p94 = por %p92, %p93
    %s96 = sadd.s32 %s95, 1
    %p99 = scmp.eq.s32.totalorder %s19, 1
    %p100 = scmp.ne.s32.totalorder %s95, %s97
    %p101 = scmp.eq.s32.totalorder %s19, 0
    %p102 = por %p100, %p101
    %p103 = scmp.ne.s32.totalorder %s95, %s97
    %p104 = scmp.eq.s32.totalorder %s24, 1
    %p105 = por %p103, %p104
    %p106 = scmp.ne.s32.totalorder %s97, %s98
    %p107 = scmp.eq.s32.totalorder %s24, 0
    %p108 = por %p106, %p107
    %p109 = scmp.ne.s32.totalorder %s97, %s98
    %p110 = scmp.eq.s32.totalorder %s25, 1
    %p111 = por %p109, %p110
    %p113 = scmp.ne.s32.totalorder %s98, %s112
    %p114 = scmp.eq.s32.totalorder %s25, 0
    %p115 = por %p113, %p114
    %s117 = sadd.s32 %s116, 1
    %p120 = scmp.eq.s32.totalorder %s19, 1
    %p121 = scmp.ne.s32.totalorder %s116, %s118
    %p122 = scmp.eq.s32.totalorder %s19, 0
    %p123 = por %p121, %p122
    %p124 = scmp.ne.s32.totalorder %s116, %s118
    %p125 = scmp.eq.s32.totalorder %s24, 1
    %p126 = por %p124, %p125
    %p127 = scmp.ne.s32.totalorder %s118, %s119
    %p128 = scmp.eq.s32.totalorder %s24, 0
    %p129 = por %p127, %p128
    %p130 = scmp.ne.s32.totalorder %s118, %s119
    %p131 = scmp.eq.s32.totalorder %s25, 1
    %p132 = por %p130, %p131
    %p134 = scmp.ne.s32.totalorder %s119, %s133
    %p135 = scmp.eq.s32.totalorder %s25, 0
    %p136 = por %p134, %p135
    %s138 = sadd.s32 %s137, 1
    %p141 = scmp.eq.s32.totalorder %s19, 1
    %p142 = scmp.ne.s32.totalorder %s137, %s139
    %p143 = scmp.eq.s32.totalorder %s19, 0
    %p144 = por %p142, %p143
    %p145 = scmp.ne.s32.totalorder %s137, %s139
    %p146 = scmp.eq.s32.totalorder %s24, 1
    %p147 = por %p145, %p146
    %p148 = scmp.ne.s32.totalorder %s139, %s140
    %p149 = scmp.eq.s32.totalorder %s24, 0
    %p150 = por %p148, %p149
    %p151 = scmp.ne.s32.totalorder %s139, %s140
    %p152 = scmp.eq.s32.totalorder %s25, 1
    %p153 = por %p151, %p152
    %p155 = scmp.ne.s32.totalorder %s140, %s154
    %p156 = scmp.eq.s32.totalorder %s25, 0
    %p157 = por %p155, %p156
    %s159 = sadd.s32 %s158, 1
    %p162 = scmp.eq.s32.totalorder %s19, 1
    %p163 = scmp.ne.s32.totalorder %s158, %s160
    %p164 = scmp.eq.s32.totalorder %s19, 0
    %p165 = por %p163, %p164
    %p166 = scmp.ne.s32.totalorder %s158, %s160
    %p167 = scmp.eq.s32.totalorder %s24, 1
    %p168 = por %p166, %p167
    %p169 = scmp.ne.s32.totalorder %s160, %s161
    %p170 = scmp.eq.s32.totalorder %s24, 0
    %p171 = por %p169, %p170
    %p172 = scmp.ne.s32.totalorder %s160, %s161
    %p173 = scmp.eq.s32.totalorder %s25, 1
    %p174 = por %p172, %p173
    %p176 = scmp.ne.s32.totalorder %s161, %s175
    %p177 = scmp.eq.s32.totalorder %s25, 0
    %p178 = por %p176, %p177
    %s180 = sadd.s32 %s179, 1
    %p183 = scmp.eq.s32.totalorder %s19, 1
    %p184 = scmp.ne.s32.totalorder %s179, %s181
    %p185 = scmp.eq.s32.totalorder %s19, 0
    %p186 = por %p184, %p185
    %p187 = scmp.ne.s32.totalorder %s179, %s181
    %p188 = scmp.eq.s32.totalorder %s24, 1
    %p189 = por %p187, %p188
    %p190 = scmp.ne.s32.totalorder %s181, %s182
    %p191 = scmp.eq.s32.totalorder %s24, 0
    %p192 = por %p190, %p191
    %p193 = scmp.ne.s32.totalorder %s181, %s182
    %p194 = scmp.eq.s32.totalorder %s25, 1
    %p195 = por %p193, %p194
    %p197 = scmp.ne.s32.totalorder %s182, %s196
    %p198 = scmp.eq.s32.totalorder %s25, 0
    %p199 = por %p197, %p198
    %s201 = sadd.s32 %s200, 1
    %p204 = scmp.eq.s32.totalorder %s19, 1
    %p205 = scmp.ne.s32.totalorder %s200, %s202
    %p206 = scmp.eq.s32.totalorder %s19, 0
    %p207 = por %p205, %p206
    %p208 = scmp.ne.s32.totalorder %s200, %s202
    %p209 = scmp.eq.s32.totalorder %s24, 1
    %p210 = por %p208, %p209
    %p211 = scmp.ne.s32.totalorder %s202, %s203
    %p212 = scmp.eq.s32.totalorder %s24, 0
    %p213 = por %p211, %p212
    %p214 = scmp.ne.s32.totalorder %s202, %s203
    %p215 = scmp.eq.s32.totalorder %s25, 1
    %p216 = por %p214, %p215
    %p218 = scmp.ne.s32.totalorder %s203, %s217
    %p219 = scmp.eq.s32.totalorder %s25, 0
    %p220 = por %p218, %p219
    %s222 = sadd.s32 %s221, 1
    %p225 = scmp.eq.s32.totalorder %s19, 1
    %p226 = scmp.ne.s32.totalorder %s221, %s223
    %p227 = scmp.eq.s32.totalorder %s19, 0
    %p228 = por %p226, %p227
    %p229 = scmp.ne.s32.totalorder %s221, %s223
    %p230 = scmp.eq.s32.totalorder %s24, 1
    %p231 = por %p229, %p230
    %p232 = scmp.ne.s32.totalorder %s223, %s224
    %p233 = scmp.eq.s32.totalorder %s24, 0
    %p234 = por %p232, %p233
    %p235 = scmp.ne.s32.totalorder %s223, %s224
    %p236 = scmp.eq.s32.totalorder %s25, 1
    %p237 = por %p235, %p236
    %p239 = scmp.ne.s32.totalorder %s224, %s238
    %p240 = scmp.eq.s32.totalorder %s25, 0
    %p241 = por %p239, %p240
    %s243 = sadd.s32 %s242, 1
    %p246 = scmp.eq.s32.totalorder %s19, 1
    %p247 = scmp.ne.s32.totalorder %s242, %s244
    %p248 = scmp.eq.s32.totalorder %s19, 0
    %p249 = por %p247, %p248
    %p250 = scmp.ne.s32.totalorder %s242, %s244
    %p251 = scmp.eq.s32.totalorder %s24, 1
    %p252 = por %p250, %p251
    %p253 = scmp.ne.s32.totalorder %s244, %s245
    %p254 = scmp.eq.s32.totalorder %s24, 0
    %p255 = por %p253, %p254
    %p256 = scmp.ne.s32.totalorder %s244, %s245
    %p257 = scmp.eq.s32.totalorder %s25, 1
    %p258 = por %p256, %p257
    %p260 = scmp.ne.s32.totalorder %s245, %s259
    %p261 = scmp.eq.s32.totalorder %s25, 0
    %p262 = por %p260, %p261
    %s264 = sadd.s32 %s263, 1
    %p267 = scmp.eq.s32.totalorder %s19, 1
    %p268 = scmp.ne.s32.totalorder %s263, %s265
    %p269 = scmp.eq.s32.totalorder %s19, 0
    %p270 = por %p268, %p269
    %p271 = scmp.ne.s32.totalorder %s263, %s265
    %p272 = scmp.eq.s32.totalorder %s24, 1
    %p273 = por %p271, %p272
    %p274 = scmp.ne.s32.totalorder %s265, %s266
    %p275 = scmp.eq.s32.totalorder %s24, 0
    %p276 = por %p274, %p275
    %p277 = scmp.ne.s32.totalorder %s265, %s266
    %p278 = scmp.eq.s32.totalorder %s25, 1
    %p279 = por %p277, %p278
    %p281 = scmp.ne.s32.totalorder %s266, %s280
    %p282 = scmp.eq.s32.totalorder %s25, 0
    %p283 = por %p281, %p282
    %s285 = sadd.s32 %s284, 1
    %p288 = scmp.eq.s32.totalorder %s19, 1
    %p289 = scmp.ne.s32.totalorder %s284, %s286
    %p290 = scmp.eq.s32.totalorder %s19, 0
    %p291 = por %p289, %p290
    %p292 = scmp.ne.s32.totalorder %s284, %s286
    %p293 = scmp.eq.s32.totalorder %s24, 1
    %p294 = por %p292, %p293
    %p295 = scmp.ne.s32.totalorder %s286, %s287
    %p296 = scmp.eq.s32.totalorder %s24, 0
    %p297 = por %p295, %p296
    %p298 = scmp.ne.s32.totalorder %s286, %s287
    %p299 = scmp.eq.s32.totalorder %s25, 1
    %p300 = por %p298, %p299
    %p302 = scmp.ne.s32.totalorder %s287, %s301
    %p303 = scmp.eq.s32.totalorder %s25, 0
    %p304 = por %p302, %p303
    %s305 = ssub.s32 %s19, %s26
    %p306 = scmp.eq.s32.totalorder %s305, 0
    %s308 = sadd.s32 %s307, 1
    %s309 = scalar_select %p306, %s307, %s308
    %p312 = pneg %p306
    %p313 = scmp.eq.s32.totalorder %s19, 1
    %p314 = por %p312, %p313
    %p315 = scmp.ne.s32.totalorder %s307, %s310
    %p316 = scmp.eq.s32.totalorder %s19, 0
    %p317 = por %p315, %p316
    %p318 = scmp.ne.s32.totalorder %s307, %s310
    %p319 = scmp.eq.s32.totalorder %s24, 1
    %p320 = por %p318, %p319
    %p321 = scmp.ne.s32.totalorder %s310, %s311
    %p322 = scmp.eq.s32.totalorder %s24, 0
    %p323 = por %p321, %p322
    %p324 = scmp.ne.s32.totalorder %s310, %s311
    %p325 = scmp.eq.s32.totalorder %s25, 1
    %p326 = por %p324, %p325
    %p328 = scmp.ne.s32.totalorder %s311, %s327
    %p329 = scmp.eq.s32.totalorder %s25, 0
    %p330 = por %p328, %p329
    %p331 = scmp.le.s32.totalorder 1, %s19
    %p332 = scmp.lt.s32.totalorder %s19, 3
    %p333 = pnand %p331, %p332
    %p334 = pneg %p333
    // Predicated region
    $region9: #{_dnet3_forward_impl.1} parent=5 // pred_check
      _
    $region10: #{_dnet3_forward_impl.1} parent=5 // pred_check_branch
      %336 = sbr.rel (%p333) target = $region12
    $region11: #{_dnet3_forward_impl.1} parent=5 // pred_region
      %s337 = ssub.s32 %s19, 1
      // Predicated region
      $region13: #{_dnet3_forward_impl.1} parent=11 // pred_check
        %p338 = pneg %p66
      $region14: #{_dnet3_forward_impl.1} parent=11 // pred_check_branch
        %340 = sbr.rel (%p338) target = $region16
      $region15: #{_dnet3_forward_impl.1} parent=11 // pred_region
        _
      $region16: #{_dnet3_forward_impl.1} parent=11 // pred_fallthru
        _
      // Predicated region
      $region17: #{_dnet3_forward_impl.1} parent=11 // pred_check
        %p341 = pneg %p87
      $region18: #{_dnet3_forward_impl.1} parent=11 // pred_check_branch
        %343 = sbr.rel (%p341) target = $region20
      $region19: #{_dnet3_forward_impl.1} parent=11 // pred_region
        _
      $region20: #{_dnet3_forward_impl.1} parent=11 // pred_fallthru
        _
      // Predicated region
      $region21: #{_dnet3_forward_impl.1} parent=11 // pred_check
        %p344 = pneg %p108
      $region22: #{_dnet3_forward_impl.1} parent=11 // pred_check_branch
        %346 = sbr.rel (%p344) target = $region24
      $region23: #{_dnet3_forward_impl.1} parent=11 // pred_region
        _
      $region24: #{_dnet3_forward_impl.1} parent=11 // pred_fallthru
        _
      // Predicated region
      $region25: #{_dnet3_forward_impl.1} parent=11 // pred_check
        %p347 = pneg %p129
      $region26: #{_dnet3_forward_impl.1} parent=11 // pred_check_branch
        %349 = sbr.rel (%p347) target = $region28
      $region27: #{_dnet3_forward_impl.1} parent=11 // pred_region
        _
      $region28: #{_dnet3_forward_impl.1} parent=11 // pred_fallthru
        _
      // Predicated region
      $region29: #{_dnet3_forward_impl.1} parent=11 // pred_check
        %p350 = pneg %p150
      $region30: #{_dnet3_forward_impl.1} parent=11 // pred_check_branch
        %352 = sbr.rel (%p350) target = $region32
      $region31: #{_dnet3_forward_impl.1} parent=11 // pred_region
        _
      $region32: #{_dnet3_forward_impl.1} parent=11 // pred_fallthru
        _
      // Predicated region
      $region33: #{_dnet3_forward_impl.1} parent=11 // pred_check
        %p353 = pneg %p171
      $region34: #{_dnet3_forward_impl.1} parent=11 // pred_check_branch
        %355 = sbr.rel (%p353) target = $region36
      $region35: #{_dnet3_forward_impl.1} parent=11 // pred_region
        _
      $region36: #{_dnet3_forward_impl.1} parent=11 // pred_fallthru
        _
      // Predicated region
      $region37: #{_dnet3_forward_impl.1} parent=11 // pred_check
        %p356 = pneg %p192
      $region38: #{_dnet3_forward_impl.1} parent=11 // pred_check_branch
        %358 = sbr.rel (%p356) target = $region40
      $region39: #{_dnet3_forward_impl.1} parent=11 // pred_region
        _
      $region40: #{_dnet3_forward_impl.1} parent=11 // pred_fallthru
        _
      // Predicated region
      $region41: #{_dnet3_forward_impl.1} parent=11 // pred_check
        %p359 = pneg %p213
      $region42: #{_dnet3_forward_impl.1} parent=11 // pred_check_branch
        %361 = sbr.rel (%p359) target = $region44
      $region43: #{_dnet3_forward_impl.1} parent=11 // pred_region
        _
      $region44: #{_dnet3_forward_impl.1} parent=11 // pred_fallthru
        _
      // Predicated region
      $region45: #{_dnet3_forward_impl.1} parent=11 // pred_check
        %p362 = pneg %p234
      $region46: #{_dnet3_forward_impl.1} parent=11 // pred_check_branch
        %364 = sbr.rel (%p362) target = $region48
      $region47: #{_dnet3_forward_impl.1} parent=11 // pred_region
        _
      $region48: #{_dnet3_forward_impl.1} parent=11 // pred_fallthru
        _
      // Predicated region
      $region49: #{_dnet3_forward_impl.1} parent=11 // pred_check
        %p365 = pneg %p255
      $region50: #{_dnet3_forward_impl.1} parent=11 // pred_check_branch
        %367 = sbr.rel (%p365) target = $region52
      $region51: #{_dnet3_forward_impl.1} parent=11 // pred_region
        _
      $region52: #{_dnet3_forward_impl.1} parent=11 // pred_fallthru
        _
      // Predicated region
      $region53: #{_dnet3_forward_impl.1} parent=11 // pred_check
        %p368 = pneg %p276
      $region54: #{_dnet3_forward_impl.1} parent=11 // pred_check_branch
        %370 = sbr.rel (%p368) target = $region56
      $region55: #{_dnet3_forward_impl.1} parent=11 // pred_region
        _
      $region56: #{_dnet3_forward_impl.1} parent=11 // pred_fallthru
        _
      // Predicated region
      $region57: #{_dnet3_forward_impl.1} parent=11 // pred_check
        %p371 = pneg %p297
      $region58: #{_dnet3_forward_impl.1} parent=11 // pred_check_branch
        %373 = sbr.rel (%p371) target = $region60
      $region59: #{_dnet3_forward_impl.1} parent=11 // pred_region
        _
      $region60: #{_dnet3_forward_impl.1} parent=11 // pred_fallthru
        _
    $region12: #{_dnet3_forward_impl.1} parent=5 // pred_fallthru
      _
    %p374 = scmp.lt.s32.totalorder %s19, 2
    // Predicated region
    $region61: #{_dnet3_forward_impl.1} parent=5 // pred_check
      %p375 = pneg %p374
    $region62: #{_dnet3_forward_impl.1} parent=5 // pred_check_branch
      %377 = sbr.rel (%p375) target = $region64
    $region63: #{_dnet3_forward_impl.1} parent=5 // pred_region
      // Predicated region
      $region65: #{_dnet3_forward_impl.1} parent=63 // pred_check
        %p378 = pneg %p39
      $region66: #{_dnet3_forward_impl.1} parent=63 // pred_check_branch
        %380 = sbr.rel (%p378) target = $region68
      $region67: #{_dnet3_forward_impl.1} parent=63 // pred_region
        %s381 = smul.u32 64, %s19
        %s382 = ssub.s32 125, %s381
        %p383 = scmp.lt.s32.totalorder %s382, 64
        %s384 = scalar_select %p383, %s382, 64
        %s385 = smul.u32 128, %s384
        %p386 = scmp.lt.s32.totalorder %s381, 124
        %s387 = scalar_select %p386, %s381, 124
        %s388 = smul.addr %s387, 8
        %s389 = scalar_lea.vmem %s0, %s388
        %s390 = smul.u32 64, %s19
        %s391 = ssub.s32 125, %s390
        %p392 = scmp.lt.s32.totalorder %s391, 64
        %s393 = scalar_select %p392, %s391, 64
        %s394 = smul.u32 128, %s393
      $region68: #{_dnet3_forward_impl.1} parent=63 // pred_fallthru
        _
    $region64: #{_dnet3_forward_impl.1} parent=5 // pred_fallthru
      _
    %p395 = scmp.le.s32.totalorder 1, %s19
    %p396 = scmp.lt.s32.totalorder %s19, 3
    %p397 = pnand %p395, %p396
    %p398 = pneg %p397
    // Predicated region
    $region69: #{_dnet3_forward_impl.1} parent=5 // pred_check
      _
    $region70: #{_dnet3_forward_impl.1} parent=5 // pred_check_branch
      %400 = sbr.rel (%p397) target = $region72
    $region71: #{_dnet3_forward_impl.1} parent=5 // pred_region
      %s401 = ssub.s32 %s19, 1
      %s402 = smul.u32 64, %s24
      %s403 = ssub.s32 125, %s402
      %p404 = scmp.lt.s32.totalorder %s403, 64
      %s405 = scalar_select %p404, %s403, 64
      %s406 = smul.u32 128, %s405
      %p407 = scmp.lt.s32.totalorder %s402, 124
      %s408 = scalar_select %p407, %s402, 124
      %s409 = smul.addr %s408, 8
      %s410 = scalar_lea.vmem %s0, %s409
      %p411 = pneg %p45
      %p412 = pneg %p42
      %p413 = pneg %p66
      %p414 = pneg %p63
      %p415 = pneg %p87
      %p416 = pneg %p84
      %p417 = pneg %p108
      %p418 = pneg %p105
      %p419 = pneg %p129
      %p420 = pneg %p126
      %p421 = pneg %p150
      %p422 = pneg %p147
      %p423 = pneg %p171
      %p424 = pneg %p168
      %p425 = pneg %p192
      %p426 = pneg %p189
      %p427 = pneg %p213
      %p428 = pneg %p210
      %p429 = pneg %p234
      %p430 = pneg %p231
      %p431 = pneg %p255
      %p432 = pneg %p252
      %p433 = pneg %p276
      %p434 = pneg %p273
      %p435 = pneg %p297
      %p436 = pneg %p294
      %p437 = pneg %p323
      %p438 = pneg %p320
      %s439 = smul.u32 4, %s24
      %p440 = scmp.lt.s32.totalorder %s439, 7
      %s441 = scalar_select %p440, %s439, 7
      %s442 = smul.addr %s441, 8
      %s443 = scalar_lea.vmem %s13, %s442
      %s444 = smul.u32 64, %s24
      %s445 = ssub.s32 125, %s444
      %p446 = scmp.lt.s32.totalorder %s445, 64
      %s447 = scalar_select %p446, %s445, 64
      %s448 = smul.u32 128, %s447
      %p449 = scmp.lt.s32.totalorder %s444, 124
      %s450 = scalar_select %p449, %s444, 124
      %s451 = smul.addr %s450, 8
      %s452 = scalar_lea.vmem %s0, %s451
      %s453 = smul.u32 64, %s24
      %s454 = ssub.s32 125, %s453
      %p455 = scmp.lt.s32.totalorder %s454, 64
      %s456 = scalar_select %p455, %s454, 64
      %s457 = smul.u32 128, %s456
      %s458 = smul.u32 4, %s24
      %p459 = scmp.lt.s32.totalorder %s458, 7
      %s460 = scalar_select %p459, %s458, 7
      %s461 = smul.addr %s460, 8
      %s462 = scalar_lea.vmem %s13, %s461
      %s463 = smul.u32 4, %s24
      %v464 = vld [vmem:[%s452] sm:$0xff]
      %v465 = vld [vmem:[%s452 + $0x8] sm:$0xff]
      %v466 = vld [vmem:[%s452 + $0x10] sm:$0xff]
      %v467 = vld [vmem:[%s452 + $0x18] sm:$0xff]
      %v468 = vld [vmem:[%s452 + $0x20] sm:$0xff]
      %v469 = vld [vmem:[%s452 + $0x28] sm:$0xff]
      %v470 = vld [vmem:[%s452 + $0x30] sm:$0xff]
      %v471 = vld [vmem:[%s452 + $0x38] sm:$0xff]
      %v472 = vld [vmem:[%s452 + $0x40] sm:$0xff]
      %v473 = vld [vmem:[%s452 + $0x48] sm:$0xff]
      %v474 = vld [vmem:[%s452 + $0x50] sm:$0xff]
      %v475 = vld [vmem:[%s452 + $0x58] sm:$0xff]
      %v476 = vld [vmem:[%s452 + $0x60] sm:$0xff]
      %v477 = vld [vmem:[%s452 + $0x68] sm:$0xff]
      %v478 = vld [vmem:[%s452 + $0x70] sm:$0xff]
      %v479 = vld [vmem:[%s452 + $0x78] sm:$0xff]
      %v480 = vld [vmem:[%s452 + $0x80] sm:$0xff]
      %v481 = vld [vmem:[%s452 + $0x88] sm:$0xff]
      %v482 = vld [vmem:[%s452 + $0x90] sm:$0xff]
      %v483 = vld [vmem:[%s452 + $0x98] sm:$0xff]
      %v484 = vld [vmem:[%s452 + $0xa0] sm:$0xff]
      %v485 = vld [vmem:[%s452 + $0xa8] sm:$0xff]
      %v486 = vld [vmem:[%s452 + $0xb0] sm:$0xff]
      %v487 = vld [vmem:[%s452 + $0xb8] sm:$0xff]
      %v488 = vld [vmem:[%s452 + $0xc0] sm:$0xff]
      %v489 = vld [vmem:[%s452 + $0xc8] sm:$0xff]
      %v490 = vld [vmem:[%s452 + $0xd0] sm:$0xff]
      %v491 = vld [vmem:[%s452 + $0xd8] sm:$0xff]
      %v492 = vld [vmem:[%s452 + $0xe0] sm:$0xff]
      %v493 = vld [vmem:[%s452 + $0xe8] sm:$0xff]
      %v494 = vld [vmem:[%s452 + $0xf0] sm:$0xff]
      %v495 = vld [vmem:[%s452 + $0xf8] sm:$0xff]
      %v496 = vld [vmem:[%s1] sm:$0xff]
      %v497 = vld [vmem:[%s1 + $0x8] sm:$0xff]
      %v498 = vld [vmem:[%s2] sm:$0x1]
      %v500 = vlaneseq
      %v501 = vshrl.u32 %v500, 7
      %v502 = vsub.s32 0, %v501
      %v503 = vrot.slane %v498, %v502
      %vm505 = vcmask 130048
      %v507 = vsel %vm505, %v464, 0
      %v510 = vsel %vm505, %v465, 0
      %v513 = vsel %vm505, %v466, 0
      %v516 = vsel %vm505, %v467, 0
      %v519 = vsel %vm505, %v468, 0
      %v522 = vsel %vm505, %v469, 0
      %v525 = vsel %vm505, %v470, 0
      %v528 = vsel %vm505, %v471, 0
      %v531 = vsel %vm505, %v472, 0
      %v534 = vsel %vm505, %v473, 0
      %v537 = vsel %vm505, %v474, 0
      %v540 = vsel %vm505, %v475, 0
      %v543 = vsel %vm505, %v476, 0
      %v546 = vsel %vm505, %v477, 0
      %v549 = vsel %vm505, %v478, 0
      %v552 = vsel %vm505, %v479, 0
      %v555 = vsel %vm505, %v480, 0
      %v558 = vsel %vm505, %v481, 0
      %v561 = vsel %vm505, %v482, 0
      %v564 = vsel %vm505, %v483, 0
      %v567 = vsel %vm505, %v484, 0
      %v570 = vsel %vm505, %v485, 0
      %v573 = vsel %vm505, %v486, 0
      %v576 = vsel %vm505, %v487, 0
      %v579 = vsel %vm505, %v488, 0
      %v582 = vsel %vm505, %v489, 0
      %v585 = vsel %vm505, %v490, 0
      %v588 = vsel %vm505, %v491, 0
      %v591 = vsel %vm505, %v492, 0
      %v594 = vsel %vm505, %v493, 0
      %v597 = vsel %vm505, %v494, 0
      %v600 = vsel %vm505, %v495, 0
      %602 = vmatprep.subr.mxu0 0.0
      %603 = vmatpush1.msra.mxu0 %v496
      %604 = vmatprep.subr.mxu0 0.0
      %605 = vmatpush1.msra.mxu0 %v497
      %606 = vmatprep.subr.mxu0 0.0
      %607 = vmatpush1.msra.mxu0 0.0
      %608 = vmatprep.subr.mxu0 0.0
      %609 = vmatpush1.msra.mxu0 0.0
      %610 = vmatprep.subr.mxu0 0.0
      %611 = vmatpush1.msra.mxu0 0.0
      %612 = vmatprep.subr.mxu0 0.0
      %613 = vmatpush1.msra.mxu0 0.0
      %614 = vmatprep.subr.mxu0 0.0
      %615 = vmatpush1.msra.mxu0 0.0
      %616 = vmatprep.subr.mxu0 0.0
      %617 = vmatpush1.msra.mxu0 0.0
      %618 = vmatprep.subr.mxu0 0.0
      %619 = vmatpush1.msra.mxu0 0.0
      %620 = vmatprep.subr.mxu0 0.0
      %621 = vmatpush1.msra.mxu0 0.0
      %622 = vmatprep.subr.mxu0 0.0
      %623 = vmatpush1.msra.mxu0 0.0
      %624 = vmatprep.subr.mxu0 0.0
      %625 = vmatpush1.msra.mxu0 0.0
      %626 = vmatprep.subr.mxu0 0.0
      %627 = vmatpush1.msra.mxu0 0.0
      %628 = vmatprep.subr.mxu0 0.0
      %629 = vmatpush1.msra.mxu0 0.0
      %630 = vmatprep.subr.mxu0 0.0
      %631 = vmatpush1.msra.mxu0 0.0
      %632 = vmatprep.subr.mxu0 0.0
      %633 = vmatpush1.msra.mxu0 0.0
      %634 = vmatprep.subr.mxu0 0.0
      %635 = vmatpush1.msra.mxu0 0.0
      %636 = vmatprep.subr.mxu0 0.0
      %637 = vmatpush1.msra.mxu0 0.0
      %638 = vmatprep.subr.mxu0 0.0
      %639 = vmatpush1.msra.mxu0 0.0
      %640 = vmatprep.subr.mxu0 0.0
      %641 = vmatpush1.msra.mxu0 0.0
      %642 = vmatprep.subr.mxu0 0.0
      %643 = vmatpush1.msra.mxu0 0.0
      %644 = vmatprep.subr.mxu0 0.0
      %645 = vmatpush1.msra.mxu0 0.0
      %646 = vmatprep.subr.mxu0 0.0
      %647 = vmatpush1.msra.mxu0 0.0
      %648 = vmatprep.subr.mxu0 0.0
      %649 = vmatpush1.msra.mxu0 0.0
      %650 = vmatprep.subr.mxu0 0.0
      %651 = vmatpush1.msra.mxu0 0.0
      %652 = vmatprep.subr.mxu0 0.0
      %653 = vmatpush1.msra.mxu0 0.0
      %654 = vmatprep.subr.mxu0 0.0
      %655 = vmatpush1.msra.mxu0 0.0
      %656 = vmatprep.subr.mxu0 0.0
      %657 = vmatpush1.msra.mxu0 0.0
      %658 = vmatprep.subr.mxu0 0.0
      %659 = vmatpush1.msra.mxu0 0.0
      %660 = vmatprep.subr.mxu0 0.0
      %661 = vmatpush1.msra.mxu0 0.0
      %662 = vmatprep.subr.mxu0 0.0
      %663 = vmatpush1.msra.mxu0 0.0
      %664 = vmatprep.subr.mxu0 0.0
      %665 = vmatpush1.msra.mxu0 0.0
      %666 = vmatprep.mubr.f32.mxu0 0.0
      %667 = vmatmul.mubr.f32.gmra.mrb[0].mxu0 %v507
      %v668 = vpop.f32.mrb[0].mxu0
      %v669 = vadd.f32 %v503, %v668
      %v670 = vpop.f32.mrb[0].mxu0
      %671 = vmatprep.mubr.f32.mxu0 0.0
      %672 = vmatmul.mubr.f32.gmra.mrb[0].mxu0 %v510
      %v673 = vpop.f32.mrb[0].mxu0
      %v674 = vadd.f32 %v503, %v673
      %v675 = vpop.f32.mrb[0].mxu0
      %676 = vmatprep.mubr.f32.mxu0 0.0
      %677 = vmatmul.mubr.f32.gmra.mrb[0].mxu0 %v513
      %v678 = vpop.f32.mrb[0].mxu0
      %v679 = vadd.f32 %v503, %v678
      %v680 = vpop.f32.mrb[0].mxu0
      %681 = vmatprep.mubr.f32.mxu0 0.0
      %682 = vmatmul.mubr.f32.gmra.mrb[0].mxu0 %v516
      %v683 = vpop.f32.mrb[0].mxu0
      %v684 = vadd.f32 %v503, %v683
      %v685 = vpop.f32.mrb[0].mxu0
      %686 = vmatprep.mubr.f32.mxu0 0.0
      %687 = vmatmul.mubr.f32.gmra.mrb[0].mxu0 %v519
      %v688 = vpop.f32.mrb[0].mxu0
      %v689 = vadd.f32 %v503, %v688
      %v690 = vpop.f32.mrb[0].mxu0
      %691 = vmatprep.mubr.f32.mxu0 0.0
      %692 = vmatmul.mubr.f32.gmra.mrb[0].mxu0 %v522
      %v693 = vpop.f32.mrb[0].mxu0
      %v694 = vadd.f32 %v503, %v693
      %v695 = vpop.f32.mrb[0].mxu0
      %696 = vmatprep.mubr.f32.mxu0 0.0
      %697 = vmatmul.mubr.f32.gmra.mrb[0].mxu0 %v525
      %v698 = vpop.f32.mrb[0].mxu0
      %v699 = vadd.f32 %v503, %v698
      %v700 = vpop.f32.mrb[0].mxu0
      %701 = vmatprep.mubr.f32.mxu0 0.0
      %702 = vmatmul.mubr.f32.gmra.mrb[0].mxu0 %v528
      %v703 = vpop.f32.mrb[0].mxu0
      %v704 = vadd.f32 %v503, %v703
      %v705 = vpop.f32.mrb[0].mxu0
      %706 = vmatprep.mubr.f32.mxu0 0.0
      %707 = vmatmul.mubr.f32.gmra.mrb[0].mxu0 %v531
      %v708 = vpop.f32.mrb[0].mxu0
      %v709 = vadd.f32 %v503, %v708
      %v710 = vpop.f32.mrb[0].mxu0
      %711 = vmatprep.mubr.f32.mxu0 0.0
      %712 = vmatmul.mubr.f32.gmra.mrb[0].mxu0 %v534
      %v713 = vpop.f32.mrb[0].mxu0
      %v714 = vadd.f32 %v503, %v713
      %v715 = vpop.f32.mrb[0].mxu0
      %716 = vmatprep.mubr.f32.mxu0 0.0
      %717 = vmatmul.mubr.f32.gmra.mrb[0].mxu0 %v537
      %v718 = vpop.f32.mrb[0].mxu0
      %v719 = vadd.f32 %v503, %v718
      %v720 = vpop.f32.mrb[0].mxu0
      %721 = vmatprep.mubr.f32.mxu0 0.0
      %722 = vmatmul.mubr.f32.gmra.mrb[0].mxu0 %v540
      %v723 = vpop.f32.mrb[0].mxu0
      %v724 = vadd.f32 %v503, %v723
      %v725 = vpop.f32.mrb[0].mxu0
      %726 = vmatprep.mubr.f32.mxu0 0.0
      %727 = vmatmul.mubr.f32.gmra.mrb[0].mxu0 %v543
      %v728 = vpop.f32.mrb[0].mxu0
      %v729 = vadd.f32 %v503, %v728
      %v730 = vpop.f32.mrb[0].mxu0
      %731 = vmatprep.mubr.f32.mxu0 0.0
      %732 = vmatmul.mubr.f32.gmra.mrb[0].mxu0 %v546
      %v733 = vpop.f32.mrb[0].mxu0
      %v734 = vadd.f32 %v503, %v733
      %v735 = vpop.f32.mrb[0].mxu0
      %736 = vmatprep.mubr.f32.mxu0 0.0
      %737 = vmatmul.mubr.f32.gmra.mrb[0].mxu0 %v549
      %v738 = vpop.f32.mrb[0].mxu0
      %v739 = vadd.f32 %v503, %v738
      %v740 = vpop.f32.mrb[0].mxu0
      %741 = vmatprep.mubr.f32.mxu0 0.0
      %742 = vmatmul.mubr.f32.gmra.mrb[0].mxu0 %v552
      %v743 = vpop.f32.mrb[0].mxu0
      %v744 = vadd.f32 %v503, %v743
      %v745 = vpop.f32.mrb[0].mxu0
      %746 = vmatprep.mubr.f32.mxu0 0.0
      %747 = vmatmul.mubr.f32.gmra.mrb[0].mxu0 %v555
      %v748 = vpop.f32.mrb[0].mxu0
      %v749 = vadd.f32 %v503, %v748
      %v750 = vpop.f32.mrb[0].mxu0
      %751 = vmatprep.mubr.f32.mxu0 0.0
      %752 = vmatmul.mubr.f32.gmra.mrb[0].mxu0 %v558
      %v753 = vpop.f32.mrb[0].mxu0
      %v754 = vadd.f32 %v503, %v753
      %v755 = vpop.f32.mrb[0].mxu0
      %756 = vmatprep.mubr.f32.mxu0 0.0
      %757 = vmatmul.mubr.f32.gmra.mrb[0].mxu0 %v561
      %v758 = vpop.f32.mrb[0].mxu0
      %v759 = vadd.f32 %v503, %v758
      %v760 = vpop.f32.mrb[0].mxu0
      %761 = vmatprep.mubr.f32.mxu0 0.0
      %762 = vmatmul.mubr.f32.gmra.mrb[0].mxu0 %v564
      %v763 = vpop.f32.mrb[0].mxu0
      %v764 = vadd.f32 %v503, %v763
      %v765 = vpop.f32.mrb[0].mxu0
      %766 = vmatprep.mubr.f32.mxu0 0.0
      %767 = vmatmul.mubr.f32.gmra.mrb[0].mxu0 %v567
      %v768 = vpop.f32.mrb[0].mxu0
      %v769 = vadd.f32 %v503, %v768
      %v770 = vpop.f32.mrb[0].mxu0
      %771 = vmatprep.mubr.f32.mxu0 0.0
      %772 = vmatmul.mubr.f32.gmra.mrb[0].mxu0 %v570
      %v773 = vpop.f32.mrb[0].mxu0
      %v774 = vadd.f32 %v503, %v773
      %v775 = vpop.f32.mrb[0].mxu0
      %776 = vmatprep.mubr.f32.mxu0 0.0
      %777 = vmatmul.mubr.f32.gmra.mrb[0].mxu0 %v573
      %v778 = vpop.f32.mrb[0].mxu0
      %v779 = vadd.f32 %v503, %v778
      %v780 = vpop.f32.mrb[0].mxu0
      %781 = vmatprep.mubr.f32.mxu0 0.0
      %782 = vmatmul.mubr.f32.gmra.mrb[0].mxu0 %v576
      %v783 = vpop.f32.mrb[0].mxu0
      %v784 = vadd.f32 %v503, %v783
      %v785 = vpop.f32.mrb[0].mxu0
      %786 = vmatprep.mubr.f32.mxu0 0.0
      %787 = vmatmul.mubr.f32.gmra.mrb[0].mxu0 %v579
      %v788 = vpop.f32.mrb[0].mxu0
      %v789 = vadd.f32 %v503, %v788
      %v790 = vpop.f32.mrb[0].mxu0
      %791 = vmatprep.mubr.f32.mxu0 0.0
      %792 = vmatmul.mubr.f32.gmra.mrb[0].mxu0 %v582
      %v793 = vpop.f32.mrb[0].mxu0
      %v794 = vadd.f32 %v503, %v793
      %v795 = vpop.f32.mrb[0].mxu0
      %796 = vmatprep.mubr.f32.mxu0 0.0
      %797 = vmatmul.mubr.f32.gmra.mrb[0].mxu0 %v585
      %v798 = vpop.f32.mrb[0].mxu0
      %v799 = vadd.f32 %v503, %v798
      %v800 = vpop.f32.mrb[0].mxu0
      %801 = vmatprep.mubr.f32.mxu0 0.0
      %802 = vmatmul.mubr.f32.gmra.mrb[0].mxu0 %v588
      %v803 = vpop.f32.mrb[0].mxu0
      %v804 = vadd.f32 %v503, %v803
      %v805 = vpop.f32.mrb[0].mxu0
      %806 = vmatprep.mubr.f32.mxu0 0.0
      %807 = vmatmul.mubr.f32.gmra.mrb[0].mxu0 %v591
      %v808 = vpop.f32.mrb[0].mxu0
      %v809 = vadd.f32 %v503, %v808
      %v810 = vpop.f32.mrb[0].mxu0
      %811 = vmatprep.mubr.f32.mxu0 0.0
      %812 = vmatmul.mubr.f32.gmra.mrb[0].mxu0 %v594
      %v813 = vpop.f32.mrb[0].mxu0
      %v814 = vadd.f32 %v503, %v813
      %v815 = vpop.f32.mrb[0].mxu0
      %816 = vmatprep.mubr.f32.mxu0 0.0
      %817 = vmatmul.mubr.f32.gmra.mrb[0].mxu0 %v597
      %v818 = vpop.f32.mrb[0].mxu0
      %v819 = vadd.f32 %v503, %v818
      %v820 = vpop.f32.mrb[0].mxu0
      %821 = vmatprep.mubr.f32.mxu0 0.0
      %822 = vmatmul.mubr.f32.gmra.mrb[0].mxu0 %v600
      %v823 = vpop.f32.mrb[0].mxu0
      %v824 = vadd.f32 %v503, %v823
      %v825 = vpop.f32.mrb[0].mxu0
      %826 = vdwg.mxu0
      %v827 = vmax.f32 %v669, 0.0
      %v828 = vmax.f32 %v674, 0.0
      %v829 = vmax.f32 %v679, 0.0
      %v830 = vmax.f32 %v684, 0.0
      %v831 = vmax.f32 %v689, 0.0
      %v832 = vmax.f32 %v694, 0.0
      %v833 = vmax.f32 %v699, 0.0
      %v834 = vmax.f32 %v704, 0.0
      %v835 = vmax.f32 %v709, 0.0
      %v836 = vmax.f32 %v714, 0.0
      %v837 = vmax.f32 %v719, 0.0
      %v838 = vmax.f32 %v724, 0.0
      %v839 = vmax.f32 %v729, 0.0
      %v840 = vmax.f32 %v734, 0.0
      %v841 = vmax.f32 %v739, 0.0
      %v842 = vmax.f32 %v744, 0.0
      %v843 = vmax.f32 %v749, 0.0
      %v844 = vmax.f32 %v754, 0.0
      %v845 = vmax.f32 %v759, 0.0
      %v846 = vmax.f32 %v764, 0.0
      %v847 = vmax.f32 %v769, 0.0
      %v848 = vmax.f32 %v774, 0.0
      %v849 = vmax.f32 %v779, 0.0
      %v850 = vmax.f32 %v784, 0.0
      %v851 = vmax.f32 %v789, 0.0
      %v852 = vmax.f32 %v794, 0.0
      %v853 = vmax.f32 %v799, 0.0
      %v854 = vmax.f32 %v804, 0.0
      %v855 = vmax.f32 %v809, 0.0
      %v856 = vmax.f32 %v814, 0.0
      %v857 = vmax.f32 %v819, 0.0
      %v858 = vmax.f32 %v824, 0.0
      %v859 = vld [vmem:[%s3] sm:$0xff]
      %v860 = vld [vmem:[%s3 + $0x8] sm:$0xff]
      %v861 = vld [vmem:[%s3 + $0x10] sm:$0xff]
      %v862 = vld [vmem:[%s3 + $0x18] sm:$0xff]
      %v863 = vld [vmem:[%s4] sm:$0x1]
      %v865 = vlaneseq
      %v866 = vshrl.u32 %v865, 7
      %v867 = vsub.s32 0, %v866
      %v868 = vrot.slane %v863, %v867
      %vm870 = vcmask 261120
      %v872 = vsel %vm870, %v827, 0
      %v875 = vsel %vm870, %v828, 0
      %v878 = vsel %vm870, %v829, 0
      %v881 = vsel %vm870, %v830, 0
      %v884 = vsel %vm870, %v831, 0
      %v887 = vsel %vm870, %v832, 0
      %v890 = vsel %vm870, %v833, 0
      %v893 = vsel %vm870, %v834, 0
      %v896 = vsel %vm870, %v835, 0
      %v899 = vsel %vm870, %v836, 0
      %v902 = vsel %vm870, %v837, 0
      %v905 = vsel %vm870, %v838, 0
      %v908 = vsel %vm870, %v839, 0
      %v911 = vsel %vm870, %v840, 0
      %v914 = vsel %vm870, %v841, 0
      %v917 = vsel %vm870, %v842, 0
      %v920 = vsel %vm870, %v843, 0
      %v923 = vsel %vm870, %v844, 0
      %v926 = vsel %vm870, %v845, 0
      %v929 = vsel %vm870, %v846, 0
      %v932 = vsel %vm870, %v847, 0
      %v935 = vsel %vm870, %v848, 0
      %v938 = vsel %vm870, %v849, 0
      %v941 = vsel %vm870, %v850, 0
      %v944 = vsel %vm870, %v851, 0
      %v947 = vsel %vm870, %v852, 0
      %v950 = vsel %vm870, %v853, 0
      %v953 = vsel %vm870, %v854, 0
      %v956 = vsel %vm870, %v855, 0
      %v959 = vsel %vm870, %v856, 0
      %v962 = vsel %vm870, %v857, 0
      %v965 = vsel %vm870, %v858, 0
      %967 = vmatprep.subr.mxu0 0.0
      %968 = vmatpush1.msra.mxu0 %v859
      %969 = vmatprep.subr.mxu0 0.0
      %970 = vmatpush1.msra.mxu0 %v860
      %971 = vmatprep.subr.mxu0 0.0
      %972 = vmatpush1.msra.mxu0 %v861
      %973 = vmatprep.subr.mxu0 0.0
      %974 = vmatpush1.msra.mxu0 %v862
      %975 = vmatprep.subr.mxu0 0.0
      %976 = vmatpush1.msra.mxu0 0.0
      %977 = vmatprep.subr.mxu0 0.0
      %978 = vmatpush1.msra.mxu0 0.0
      %979 = vmatprep.subr.mxu0 0.0
      %980 = vmatpush1.msra.mxu0 0.0
      %981 = vmatprep.subr.mxu0 0.0
      %982 = vmatpush1.msra.mxu0 0.0
      %983 = vmatprep.subr.mxu0 0.0
      %984 = vmatpush1.msra.mxu0 0.0
      %985 = vmatprep.subr.mxu0 0.0
      %986 = vmatpush1.msra.mxu0 0.0
      %987 = vmatprep.subr.mxu0 0.0
      %988 = vmatpush1.msra.mxu0 0.0
      %989 = vmatprep.subr.mxu0 0.0
      %990 = vmatpush1.msra.mxu0 0.0
      %991 = vmatprep.subr.mxu0 0.0
      %992 = vmatpush1.msra.mxu0 0.0
      %993 = vmatprep.subr.mxu0 0.0
      %994 = vmatpush1.msra.mxu0 0.0
      %995 = vmatprep.subr.mxu0 0.0
      %996 = vmatpush1.msra.mxu0 0.0
      %997 = vmatprep.subr.mxu0 0.0
      %998 = vmatpush1.msra.mxu0 0.0
      %999 = vmatprep.subr.mxu0 0.0
      %1000 = vmatpush1.msra.mxu0 0.0
      %1001 = vmatprep.subr.mxu0 0.0
      %1002 = vmatpush1.msra.mxu0 0.0
      %1003 = vmatprep.subr.mxu0 0.0
      %1004 = vmatpush1.msra.mxu0 0.0
      %1005 = vmatprep.subr.mxu0 0.0
      %1006 = vmatpush1.msra.mxu0 0.0
      %1007 = vmatprep.subr.mxu0 0.0
      %1008 = vmatpush1.msra.mxu0 0.0
      %1009 = vmatprep.subr.mxu0 0.0
      %1010 = vmatpush1.msra.mxu0 0.0
      %1011 = vmatprep.subr.mxu0 0.0
      %1012 = vmatpush1.msra.mxu0 0.0
      %1013 = vmatprep.subr.mxu0 0.0
      %1014 = vmatpush1.msra.mxu0 0.0
      %1015 = vmatprep.subr.mxu0 0.0
      %1016 = vmatpush1.msra.mxu0 0.0
      %1017 = vmatprep.subr.mxu0 0.0
      %1018 = vmatpush1.msra.mxu0 0.0
      %1019 = vmatprep.subr.mxu0 0.0
      %1020 = vmatpush1.msra.mxu0 0.0
      %1021 = vmatprep.subr.mxu0 0.0
      %1022 = vmatpush1.msra.mxu0 0.0
      %1023 = vmatprep.subr.mxu0 0.0
      %1024 = vmatpush1.msra.mxu0 0.0
      %1025 = vmatprep.subr.mxu0 0.0
      %1026 = vmatpush1.msra.mxu0 0.0
      %1027 = vmatprep.subr.mxu0 0.0
      %1028 = vmatpush1.msra.mxu0 0.0
      %1029 = vmatprep.subr.mxu0 0.0
      %1030 = vmatpush1.msra.mxu0 0.0
      %1031 = vmatprep.mubr.f32.mxu0 0.0
      %1032 = vmatmul.mubr.f32.gmra.mrb[0].mxu0 %v872
      %v1033 = vpop.f32.mrb[0].mxu0
      %v1034 = vadd.f32 %v868, %v1033
      %v1035 = vpop.f32.mrb[0].mxu0
      %1036 = vmatprep.mubr.f32.mxu0 0.0
      %1037 = vmatmul.mubr.f32.gmra.mrb[0].mxu0 %v875
      %v1038 = vpop.f32.mrb[0].mxu0
      %v1039 = vadd.f32 %v868, %v1038
      %v1040 = vpop.f32.mrb[0].mxu0
      %1041 = vmatprep.mubr.f32.mxu0 0.0
      %1042 = vmatmul.mubr.f32.gmra.mrb[0].mxu0 %v878
      %v1043 = vpop.f32.mrb[0].mxu0
      %v1044 = vadd.f32 %v868, %v1043
      %v1045 = vpop.f32.mrb[0].mxu0
      %1046 = vmatprep.mubr.f32.mxu0 0.0
      %1047 = vmatmul.mubr.f32.gmra.mrb[0].mxu0 %v881
      %v1048 = vpop.f32.mrb[0].mxu0
      %v1049 = vadd.f32 %v868, %v1048
      %v1050 = vpop.f32.mrb[0].mxu0
      %1051 = vmatprep.mubr.f32.mxu0 0.0
      %1052 = vmatmul.mubr.f32.gmra.mrb[0].mxu0 %v884
      %v1053 = vpop.f32.mrb[0].mxu0
      %v1054 = vadd.f32 %v868, %v1053
      %v1055 = vpop.f32.mrb[0].mxu0
      %1056 = vmatprep.mubr.f32.mxu0 0.0
      %1057 = vmatmul.mubr.f32.gmra.mrb[0].mxu0 %v887
      %v1058 = vpop.f32.mrb[0].mxu0
      %v1059 = vadd.f32 %v868, %v1058
      %v1060 = vpop.f32.mrb[0].mxu0
      %1061 = vmatprep.mubr.f32.mxu0 0.0
      %1062 = vmatmul.mubr.f32.gmra.mrb[0].mxu0 %v890
      %v1063 = vpop.f32.mrb[0].mxu0
      %v1064 = vadd.f32 %v868, %v1063
      %v1065 = vpop.f32.mrb[0].mxu0
      %1066 = vmatprep.mubr.f32.mxu0 0.0
      %1067 = vmatmul.mubr.f32.gmra.mrb[0].mxu0 %v893
      %v1068 = vpop.f32.mrb[0].mxu0
      %v1069 = vadd.f32 %v868, %v1068
      %v1070 = vpop.f32.mrb[0].mxu0
      %1071 = vmatprep.mubr.f32.mxu0 0.0
      %1072 = vmatmul.mubr.f32.gmra.mrb[0].mxu0 %v896
      %v1073 = vpop.f32.mrb[0].mxu0
      %v1074 = vadd.f32 %v868, %v1073
      %v1075 = vpop.f32.mrb[0].mxu0
      %1076 = vmatprep.mubr.f32.mxu0 0.0
      %1077 = vmatmul.mubr.f32.gmra.mrb[0].mxu0 %v899
      %v1078 = vpop.f32.mrb[0].mxu0
      %v1079 = vadd.f32 %v868, %v1078
      %v1080 = vpop.f32.mrb[0].mxu0
      %1081 = vmatprep.mubr.f32.mxu0 0.0
      %1082 = vmatmul.mubr.f32.gmra.mrb[0].mxu0 %v902
      %v1083 = vpop.f32.mrb[0].mxu0
      %v1084 = vadd.f32 %v868, %v1083
      %v1085 = vpop.f32.mrb[0].mxu0
      %1086 = vmatprep.mubr.f32.mxu0 0.0
      %1087 = vmatmul.mubr.f32.gmra.mrb[0].mxu0 %v905
      %v1088 = vpop.f32.mrb[0].mxu0
      %v1089 = vadd.f32 %v868, %v1088
      %v1090 = vpop.f32.mrb[0].mxu0
      %1091 = vmatprep.mubr.f32.mxu0 0.0
      %1092 = vmatmul.mubr.f32.gmra.mrb[0].mxu0 %v908
      %v1093 = vpop.f32.mrb[0].mxu0
      %v1094 = vadd.f32 %v868, %v1093
      %v1095 = vpop.f32.mrb[0].mxu0
      %1096 = vmatprep.mubr.f32.mxu0 0.0
      %1097 = vmatmul.mubr.f32.gmra.mrb[0].mxu0 %v911
      %v1098 = vpop.f32.mrb[0].mxu0
      %v1099 = vadd.f32 %v868, %v1098
      %v1100 = vpop.f32.mrb[0].mxu0
      %1101 = vmatprep.mubr.f32.mxu0 0.0
      %1102 = vmatmul.mubr.f32.gmra.mrb[0].mxu0 %v914
      %v1103 = vpop.f32.mrb[0].mxu0
      %v1104 = vadd.f32 %v868, %v1103
      %v1105 = vpop.f32.mrb[0].mxu0
      %1106 = vmatprep.mubr.f32.mxu0 0.0
      %1107 = vmatmul.mubr.f32.gmra.mrb[0].mxu0 %v917
      %v1108 = vpop.f32.mrb[0].mxu0
      %v1109 = vadd.f32 %v868, %v1108
      %v1110 = vpop.f32.mrb[0].mxu0
      %1111 = vmatprep.mubr.f32.mxu0 0.0
      %1112 = vmatmul.mubr.f32.gmra.mrb[0].mxu0 %v920
      %v1113 = vpop.f32.mrb[0].mxu0
      %v1114 = vadd.f32 %v868, %v1113
      %v1115 = vpop.f32.mrb[0].mxu0
      %1116 = vmatprep.mubr.f32.mxu0 0.0
      %1117 = vmatmul.mubr.f32.gmra.mrb[0].mxu0 %v923
      %v1118 = vpop.f32.mrb[0].mxu0
      %v1119 = vadd.f32 %v868, %v1118
      %v1120 = vpop.f32.mrb[0].mxu0
      %1121 = vmatprep.mubr.f32.mxu0 0.0
      %1122 = vmatmul.mubr.f32.gmra.mrb[0].mxu0 %v926
      %v1123 = vpop.f32.mrb[0].mxu0
      %v1124 = vadd.f32 %v868, %v1123
      %v1125 = vpop.f32.mrb[0].mxu0
      %1126 = vmatprep.mubr.f32.mxu0 0.0
      %1127 = vmatmul.mubr.f32.gmra.mrb[0].mxu0 %v929
      %v1128 = vpop.f32.mrb[0].mxu0
      %v1129 = vadd.f32 %v868, %v1128
      %v1130 = vpop.f32.mrb[0].mxu0
      %1131 = vmatprep.mubr.f32.mxu0 0.0
      %1132 = vmatmul.mubr.f32.gmra.mrb[0].mxu0 %v932
      %v1133 = vpop.f32.mrb[0].mxu0
      %v1134 = vadd.f32 %v868, %v1133
      %v1135 = vpop.f32.mrb[0].mxu0
      %1136 = vmatprep.mubr.f32.mxu0 0.0
      %1137 = vmatmul.mubr.f32.gmra.mrb[0].mxu0 %v935
      %v1138 = vpop.f32.mrb[0].mxu0
      %v1139 = vadd.f32 %v868, %v1138
      %v1140 = vpop.f32.mrb[0].mxu0
      %1141 = vmatprep.mubr.f32.mxu0 0.0
      %1142 = vmatmul.mubr.f32.gmra.mrb[0].mxu0 %v938
      %v1143 = vpop.f32.mrb[0].mxu0
      %v1144 = vadd.f32 %v868, %v1143
      %v1145 = vpop.f32.mrb[0].mxu0
      %1146 = vmatprep.mubr.f32.mxu0 0.0
      %1147 = vmatmul.mubr.f32.gmra.mrb[0].mxu0 %v941
      %v1148 = vpop.f32.mrb[0].mxu0
      %v1149 = vadd.f32 %v868, %v1148
      %v1150 = vpop.f32.mrb[0].mxu0
      %1151 = vmatprep.mubr.f32.mxu0 0.0
      %1152 = vmatmul.mubr.f32.gmra.mrb[0].mxu0 %v944
      %v1153 = vpop.f32.mrb[0].mxu0
      %v1154 = vadd.f32 %v868, %v1153
      %v1155 = vpop.f32.mrb[0].mxu0
      %1156 = vmatprep.mubr.f32.mxu0 0.0
      %1157 = vmatmul.mubr.f32.gmra.mrb[0].mxu0 %v947
      %v1158 = vpop.f32.mrb[0].mxu0
      %v1159 = vadd.f32 %v868, %v1158
      %v1160 = vpop.f32.mrb[0].mxu0
      %1161 = vmatprep.mubr.f32.mxu0 0.0
      %1162 = vmatmul.mubr.f32.gmra.mrb[0].mxu0 %v950
      %v1163 = vpop.f32.mrb[0].mxu0
      %v1164 = vadd.f32 %v868, %v1163
      %v1165 = vpop.f32.mrb[0].mxu0
      %1166 = vmatprep.mubr.f32.mxu0 0.0
      %1167 = vmatmul.mubr.f32.gmra.mrb[0].mxu0 %v953
      %v1168 = vpop.f32.mrb[0].mxu0
      %v1169 = vadd.f32 %v868, %v1168
      %v1170 = vpop.f32.mrb[0].mxu0
      %1171 = vmatprep.mubr.f32.mxu0 0.0
      %1172 = vmatmul.mubr.f32.gmra.mrb[0].mxu0 %v956
      %v1173 = vpop.f32.mrb[0].mxu0
      %v1174 = vadd.f32 %v868, %v1173
      %v1175 = vpop.f32.mrb[0].mxu0
      %1176 = vmatprep.mubr.f32.mxu0 0.0
      %1177 = vmatmul.mubr.f32.gmra.mrb[0].mxu0 %v959
      %v1178 = vpop.f32.mrb[0].mxu0
      %v1179 = vadd.f32 %v868, %v1178
      %v1180 = vpop.f32.mrb[0].mxu0
      %1181 = vmatprep.mubr.f32.mxu0 0.0
      %1182 = vmatmul.mubr.f32.gmra.mrb[0].mxu0 %v962
      %v1183 = vpop.f32.mrb[0].mxu0
      %v1184 = vadd.f32 %v868, %v1183
      %v1185 = vpop.f32.mrb[0].mxu0
      %1186 = vmatprep.mubr.f32.mxu0 0.0
      %1187 = vmatmul.mubr.f32.gmra.mrb[0].mxu0 %v965
      %v1188 = vpop.f32.mrb[0].mxu0
      %v1189 = vadd.f32 %v868, %v1188
      %v1190 = vpop.f32.mrb[0].mxu0
      %1191 = vdwg.mxu0
      %v1192 = vmax.f32 %v1034, 0.0
      %v1193 = vmax.f32 %v1039, 0.0
      %v1194 = vmax.f32 %v1044, 0.0
      %v1195 = vmax.f32 %v1049, 0.0
      %v1196 = vmax.f32 %v1054, 0.0
      %v1197 = vmax.f32 %v1059, 0.0
      %v1198 = vmax.f32 %v1064, 0.0
      %v1199 = vmax.f32 %v1069, 0.0
      %v1200 = vmax.f32 %v1074, 0.0
      %v1201 = vmax.f32 %v1079, 0.0
      %v1202 = vmax.f32 %v1084, 0.0
      %v1203 = vmax.f32 %v1089, 0.0
      %v1204 = vmax.f32 %v1094, 0.0
      %v1205 = vmax.f32 %v1099, 0.0
      %v1206 = vmax.f32 %v1104, 0.0
      %v1207 = vmax.f32 %v1109, 0.0
      %v1208 = vmax.f32 %v1114, 0.0
      %v1209 = vmax.f32 %v1119, 0.0
      %v1210 = vmax.f32 %v1124, 0.0
      %v1211 = vmax.f32 %v1129, 0.0
      %v1212 = vmax.f32 %v1134, 0.0
      %v1213 = vmax.f32 %v1139, 0.0
      %v1214 = vmax.f32 %v1144, 0.0
      %v1215 = vmax.f32 %v1149, 0.0
      %v1216 = vmax.f32 %v1154, 0.0
      %v1217 = vmax.f32 %v1159, 0.0
      %v1218 = vmax.f32 %v1164, 0.0
      %v1219 = vmax.f32 %v1169, 0.0
      %v1220 = vmax.f32 %v1174, 0.0
      %v1221 = vmax.f32 %v1179, 0.0
      %v1222 = vmax.f32 %v1184, 0.0
      %v1223 = vmax.f32 %v1189, 0.0
      %v1224 = vld [vmem:[%s5] sm:$0xff]
      %v1225 = vld [vmem:[%s5 + $0x8] sm:$0xff]
      %v1226 = vld [vmem:[%s5 + $0x10] sm:$0xff]
      %v1227 = vld [vmem:[%s5 + $0x18] sm:$0xff]
      %v1228 = vld [vmem:[%s6] sm:$0x1]
      %v1230 = vlaneseq
      %v1231 = vshrl.u32 %v1230, 7
      %v1232 = vsub.s32 0, %v1231
      %v1233 = vrot.slane %v1228, %v1232
      %v1236 = vsel %vm870, %v1192, 0
      %v1239 = vsel %vm870, %v1193, 0
      %v1242 = vsel %vm870, %v1194, 0
      %v1245 = vsel %vm870, %v1195, 0
      %v1248 = vsel %vm870, %v1196, 0
      %v1251 = vsel %vm870, %v1197, 0
      %v1254 = vsel %vm870, %v1198, 0
      %v1257 = vsel %vm870, %v1199, 0
      %v1260 = vsel %vm870, %v1200, 0
      %v1263 = vsel %vm870, %v1201, 0
      %v1266 = vsel %vm870, %v1202, 0
      %v1269 = vsel %vm870, %v1203, 0
      %v1272 = vsel %vm870, %v1204, 0
      %v1275 = vsel %vm870, %v1205, 0
      %v1278 = vsel %vm870, %v1206, 0
      %v1281 = vsel %vm870, %v1207, 0
      %v1284 = vsel %vm870, %v1208, 0
      %v1287 = vsel %vm870, %v1209, 0
      %v1290 = vsel %vm870, %v1210, 0
      %v1293 = vsel %vm870, %v1211, 0
      %v1296 = vsel %vm870, %v1212, 0
      %v1299 = vsel %vm870, %v1213, 0
      %v1302 = vsel %vm870, %v1214, 0
      %v1305 = vsel %vm870, %v1215, 0
      %v1308 = vsel %vm870, %v1216, 0
      %v1311 = vsel %vm870, %v1217, 0
      %v1314 = vsel %vm870, %v1218, 0
      %v1317 = vsel %vm870, %v1219, 0
      %v1320 = vsel %vm870, %v1220, 0
      %v1323 = vsel %vm870, %v1221, 0
      %v1326 = vsel %vm870, %v1222, 0
      %v1329 = vsel %vm870, %v1223, 0
      %1331 = vmatprep.subr.mxu0 0.0
      %1332 = vmatpush1.msra.mxu0 %v1224
      %1333 = vmatprep.subr.mxu0 0.0
      %1334 = vmatpush1.msra.mxu0 %v1225
      %1335 = vmatprep.subr.mxu0 0.0
      %1336 = vmatpush1.msra.mxu0 %v1226
      %1337 = vmatprep.subr.mxu0 0.0
      %1338 = vmatpush1.msra.mxu0 %v1227
      %1339 = vmatprep.subr.mxu0 0.0
      %1340 = vmatpush1.msra.mxu0 0.0
      %1341 = vmatprep.subr.mxu0 0.0
      %1342 = vmatpush1.msra.mxu0 0.0
      %1343 = vmatprep.subr.mxu0 0.0
      %1344 = vmatpush1.msra.mxu0 0.0
      %1345 = vmatprep.subr.mxu0 0.0
      %1346 = vmatpush1.msra.mxu0 0.0
      %1347 = vmatprep.subr.mxu0 0.0
      %1348 = vmatpush1.msra.mxu0 0.0
      %1349 = vmatprep.subr.mxu0 0.0
      %1350 = vmatpush1.msra.mxu0 0.0
      %1351 = vmatprep.subr.mxu0 0.0
      %1352 = vmatpush1.msra.mxu0 0.0
      %1353 = vmatprep.subr.mxu0 0.0
      %1354 = vmatpush1.msra.mxu0 0.0
      %1355 = vmatprep.subr.mxu0 0.0
      %1356 = vmatpush1.msra.mxu0 0.0
      %1357 = vmatprep.subr.mxu0 0.0
      %1358 = vmatpush1.msra.mxu0 0.0
      %1359 = vmatprep.subr.mxu0 0.0
      %1360 = vmatpush1.msra.mxu0 0.0
      %1361 = vmatprep.subr.mxu0 0.0
      %1362 = vmatpush1.msra.mxu0 0.0
      %1363 = vmatprep.subr.mxu0 0.0
      %1364 = vmatpush1.msra.mxu0 0.0
      %1365 = vmatprep.subr.mxu0 0.0
      %1366 = vmatpush1.msra.mxu0 0.0
      %1367 = vmatprep.subr.mxu0 0.0
      %1368 = vmatpush1.msra.mxu0 0.0
      %1369 = vmatprep.subr.mxu0 0.0
      %1370 = vmatpush1.msra.mxu0 0.0
      %1371 = vmatprep.subr.mxu0 0.0
      %1372 = vmatpush1.msra.mxu0 0.0
      %1373 = vmatprep.subr.mxu0 0.0
      %1374 = vmatpush1.msra.mxu0 0.0
      %1375 = vmatprep.subr.mxu0 0.0
      %1376 = vmatpush1.msra.mxu0 0.0
      %1377 = vmatprep.subr.mxu0 0.0
      %1378 = vmatpush1.msra.mxu0 0.0
      %1379 = vmatprep.subr.mxu0 0.0
      %1380 = vmatpush1.msra.mxu0 0.0
      %1381 = vmatprep.subr.mxu0 0.0
      %1382 = vmatpush1.msra.mxu0 0.0
      %1383 = vmatprep.subr.mxu0 0.0
      %1384 = vmatpush1.msra.mxu0 0.0
      %1385 = vmatprep.subr.mxu0 0.0
      %1386 = vmatpush1.msra.mxu0 0.0
      %1387 = vmatprep.subr.mxu0 0.0
      %1388 = vmatpush1.msra.mxu0 0.0
      %1389 = vmatprep.subr.mxu0 0.0
      %1390 = vmatpush1.msra.mxu0 0.0
      %1391 = vmatprep.subr.mxu0 0.0
      %1392 = vmatpush1.msra.mxu0 0.0
      %1393 = vmatprep.subr.mxu0 0.0
      %1394 = vmatpush1.msra.mxu0 0.0
      %1395 = vmatprep.mubr.f32.mxu0 0.0
      %1396 = vmatmul.mubr.f32.gmra.mrb[0].mxu0 %v1236
      %v1397 = vpop.f32.mrb[0].mxu0
      %v1398 = vadd.f32 %v1233, %v1397
      %v1399 = vpop.f32.mrb[0].mxu0
      %1400 = vmatprep.mubr.f32.mxu0 0.0
      %1401 = vmatmul.mubr.f32.gmra.mrb[0].mxu0 %v1239
      %v1402 = vpop.f32.mrb[0].mxu0
      %v1403 = vadd.f32 %v1233, %v1402
      %v1404 = vpop.f32.mrb[0].mxu0
      %1405 = vmatprep.mubr.f32.mxu0 0.0
      %1406 = vmatmul.mubr.f32.gmra.mrb[0].mxu0 %v1242
      %v1407 = vpop.f32.mrb[0].mxu0
      %v1408 = vadd.f32 %v1233, %v1407
      %v1409 = vpop.f32.mrb[0].mxu0
      %1410 = vmatprep.mubr.f32.mxu0 0.0
      %1411 = vmatmul.mubr.f32.gmra.mrb[0].mxu0 %v1245
      %v1412 = vpop.f32.mrb[0].mxu0
      %v1413 = vadd.f32 %v1233, %v1412
      %v1414 = vpop.f32.mrb[0].mxu0
      %1415 = vmatprep.mubr.f32.mxu0 0.0
      %1416 = vmatmul.mubr.f32.gmra.mrb[0].mxu0 %v1248
      %v1417 = vpop.f32.mrb[0].mxu0
      %v1418 = vadd.f32 %v1233, %v1417
      %v1419 = vpop.f32.mrb[0].mxu0
      %1420 = vmatprep.mubr.f32.mxu0 0.0
      %1421 = vmatmul.mubr.f32.gmra.mrb[0].mxu0 %v1251
      %v1422 = vpop.f32.mrb[0].mxu0
      %v1423 = vadd.f32 %v1233, %v1422
      %v1424 = vpop.f32.mrb[0].mxu0
      %1425 = vmatprep.mubr.f32.mxu0 0.0
      %1426 = vmatmul.mubr.f32.gmra.mrb[0].mxu0 %v1254
      %v1427 = vpop.f32.mrb[0].mxu0
      %v1428 = vadd.f32 %v1233, %v1427
      %v1429 = vpop.f32.mrb[0].mxu0
      %1430 = vmatprep.mubr.f32.mxu0 0.0
      %1431 = vmatmul.mubr.f32.gmra.mrb[0].mxu0 %v1257
      %v1432 = vpop.f32.mrb[0].mxu0
      %v1433 = vadd.f32 %v1233, %v1432
      %v1434 = vpop.f32.mrb[0].mxu0
      %1435 = vmatprep.mubr.f32.mxu0 0.0
      %1436 = vmatmul.mubr.f32.gmra.mrb[0].mxu0 %v1260
      %v1437 = vpop.f32.mrb[0].mxu0
      %v1438 = vadd.f32 %v1233, %v1437
      %v1439 = vpop.f32.mrb[0].mxu0
      %1440 = vmatprep.mubr.f32.mxu0 0.0
      %1441 = vmatmul.mubr.f32.gmra.mrb[0].mxu0 %v1263
      %v1442 = vpop.f32.mrb[0].mxu0
      %v1443 = vadd.f32 %v1233, %v1442
      %v1444 = vpop.f32.mrb[0].mxu0
      %1445 = vmatprep.mubr.f32.mxu0 0.0
      %1446 = vmatmul.mubr.f32.gmra.mrb[0].mxu0 %v1266
      %v1447 = vpop.f32.mrb[0].mxu0
      %v1448 = vadd.f32 %v1233, %v1447
      %v1449 = vpop.f32.mrb[0].mxu0
      %1450 = vmatprep.mubr.f32.mxu0 0.0
      %1451 = vmatmul.mubr.f32.gmra.mrb[0].mxu0 %v1269
      %v1452 = vpop.f32.mrb[0].mxu0
      %v1453 = vadd.f32 %v1233, %v1452
      %v1454 = vpop.f32.mrb[0].mxu0
      %1455 = vmatprep.mubr.f32.mxu0 0.0
      %1456 = vmatmul.mubr.f32.gmra.mrb[0].mxu0 %v1272
      %v1457 = vpop.f32.mrb[0].mxu0
      %v1458 = vadd.f32 %v1233, %v1457
      %v1459 = vpop.f32.mrb[0].mxu0
      %1460 = vmatprep.mubr.f32.mxu0 0.0
      %1461 = vmatmul.mubr.f32.gmra.mrb[0].mxu0 %v1275
      %v1462 = vpop.f32.mrb[0].mxu0
      %v1463 = vadd.f32 %v1233, %v1462
      %v1464 = vpop.f32.mrb[0].mxu0
      %1465 = vmatprep.mubr.f32.mxu0 0.0
      %1466 = vmatmul.mubr.f32.gmra.mrb[0].mxu0 %v1278
      %v1467 = vpop.f32.mrb[0].mxu0
      %v1468 = vadd.f32 %v1233, %v1467
      %v1469 = vpop.f32.mrb[0].mxu0
      %1470 = vmatprep.mubr.f32.mxu0 0.0
      %1471 = vmatmul.mubr.f32.gmra.mrb[0].mxu0 %v1281
      %v1472 = vpop.f32.mrb[0].mxu0
      %v1473 = vadd.f32 %v1233, %v1472
      %v1474 = vpop.f32.mrb[0].mxu0
      %1475 = vmatprep.mubr.f32.mxu0 0.0
      %1476 = vmatmul.mubr.f32.gmra.mrb[0].mxu0 %v1284
      %v1477 = vpop.f32.mrb[0].mxu0
      %v1478 = vadd.f32 %v1233, %v1477
      %v1479 = vpop.f32.mrb[0].mxu0
      %1480 = vmatprep.mubr.f32.mxu0 0.0
      %1481 = vmatmul.mubr.f32.gmra.mrb[0].mxu0 %v1287
      %v1482 = vpop.f32.mrb[0].mxu0
      %v1483 = vadd.f32 %v1233, %v1482
      %v1484 = vpop.f32.mrb[0].mxu0
      %1485 = vmatprep.mubr.f32.mxu0 0.0
      %1486 = vmatmul.mubr.f32.gmra.mrb[0].mxu0 %v1290
      %v1487 = vpop.f32.mrb[0].mxu0
      %v1488 = vadd.f32 %v1233, %v1487
      %v1489 = vpop.f32.mrb[0].mxu0
      %1490 = vmatprep.mubr.f32.mxu0 0.0
      %1491 = vmatmul.mubr.f32.gmra.mrb[0].mxu0 %v1293
      %v1492 = vpop.f32.mrb[0].mxu0
      %v1493 = vadd.f32 %v1233, %v1492
      %v1494 = vpop.f32.mrb[0].mxu0
      %1495 = vmatprep.mubr.f32.mxu0 0.0
      %1496 = vmatmul.mubr.f32.gmra.mrb[0].mxu0 %v1296
      %v1497 = vpop.f32.mrb[0].mxu0
      %v1498 = vadd.f32 %v1233, %v1497
      %v1499 = vpop.f32.mrb[0].mxu0
      %1500 = vmatprep.mubr.f32.mxu0 0.0
      %1501 = vmatmul.mubr.f32.gmra.mrb[0].mxu0 %v1299
      %v1502 = vpop.f32.mrb[0].mxu0
      %v1503 = vadd.f32 %v1233, %v1502
      %v1504 = vpop.f32.mrb[0].mxu0
      %1505 = vmatprep.mubr.f32.mxu0 0.0
      %1506 = vmatmul.mubr.f32.gmra.mrb[0].mxu0 %v1302
      %v1507 = vpop.f32.mrb[0].mxu0
      %v1508 = vadd.f32 %v1233, %v1507
      %v1509 = vpop.f32.mrb[0].mxu0
      %1510 = vmatprep.mubr.f32.mxu0 0.0
      %1511 = vmatmul.mubr.f32.gmra.mrb[0].mxu0 %v1305
      %v1512 = vpop.f32.mrb[0].mxu0
      %v1513 = vadd.f32 %v1233, %v1512
      %v1514 = vpop.f32.mrb[0].mxu0
      %1515 = vmatprep.mubr.f32.mxu0 0.0
      %1516 = vmatmul.mubr.f32.gmra.mrb[0].mxu0 %v1308
      %v1517 = vpop.f32.mrb[0].mxu0
      %v1518 = vadd.f32 %v1233, %v1517
      %v1519 = vpop.f32.mrb[0].mxu0
      %1520 = vmatprep.mubr.f32.mxu0 0.0
      %1521 = vmatmul.mubr.f32.gmra.mrb[0].mxu0 %v1311
      %v1522 = vpop.f32.mrb[0].mxu0
      %v1523 = vadd.f32 %v1233, %v1522
      %v1524 = vpop.f32.mrb[0].mxu0
      %1525 = vmatprep.mubr.f32.mxu0 0.0
      %1526 = vmatmul.mubr.f32.gmra.mrb[0].mxu0 %v1314
      %v1527 = vpop.f32.mrb[0].mxu0
      %v1528 = vadd.f32 %v1233, %v1527
      %v1529 = vpop.f32.mrb[0].mxu0
      %1530 = vmatprep.mubr.f32.mxu0 0.0
      %1531 = vmatmul.mubr.f32.gmra.mrb[0].mxu0 %v1317
      %v1532 = vpop.f32.mrb[0].mxu0
      %v1533 = vadd.f32 %v1233, %v1532
      %v1534 = vpop.f32.mrb[0].mxu0
      %1535 = vmatprep.mubr.f32.mxu0 0.0
      %1536 = vmatmul.mubr.f32.gmra.mrb[0].mxu0 %v1320
      %v1537 = vpop.f32.mrb[0].mxu0
      %v1538 = vadd.f32 %v1233, %v1537
      %v1539 = vpop.f32.mrb[0].mxu0
      %1540 = vmatprep.mubr.f32.mxu0 0.0
      %1541 = vmatmul.mubr.f32.gmra.mrb[0].mxu0 %v1323
      %v1542 = vpop.f32.mrb[0].mxu0
      %v1543 = vadd.f32 %v1233, %v1542
      %v1544 = vpop.f32.mrb[0].mxu0
      %1545 = vmatprep.mubr.f32.mxu0 0.0
      %1546 = vmatmul.mubr.f32.gmra.mrb[0].mxu0 %v1326
      %v1547 = vpop.f32.mrb[0].mxu0
      %v1548 = vadd.f32 %v1233, %v1547
      %v1549 = vpop.f32.mrb[0].mxu0
      %1550 = vmatprep.mubr.f32.mxu0 0.0
      %1551 = vmatmul.mubr.f32.gmra.mrb[0].mxu0 %v1329
      %v1552 = vpop.f32.mrb[0].mxu0
      %v1553 = vadd.f32 %v1233, %v1552
      %v1554 = vpop.f32.mrb[0].mxu0
      %1555 = vdwg.mxu0
      %v1556 = vmax.f32 %v1398, 0.0
      %v1557 = vmax.f32 %v1403, 0.0
      %v1558 = vmax.f32 %v1408, 0.0
      %v1559 = vmax.f32 %v1413, 0.0
      %v1560 = vmax.f32 %v1418, 0.0
      %v1561 = vmax.f32 %v1423, 0.0
      %v1562 = vmax.f32 %v1428, 0.0
      %v1563 = vmax.f32 %v1433, 0.0
      %v1564 = vmax.f32 %v1438, 0.0
      %v1565 = vmax.f32 %v1443, 0.0
      %v1566 = vmax.f32 %v1448, 0.0
      %v1567 = vmax.f32 %v1453, 0.0
      %v1568 = vmax.f32 %v1458, 0.0
      %v1569 = vmax.f32 %v1463, 0.0
      %v1570 = vmax.f32 %v1468, 0.0
      %v1571 = vmax.f32 %v1473, 0.0
      %v1572 = vmax.f32 %v1478, 0.0
      %v1573 = vmax.f32 %v1483, 0.0
      %v1574 = vmax.f32 %v1488, 0.0
      %v1575 = vmax.f32 %v1493, 0.0
      %v1576 = vmax.f32 %v1498, 0.0
      %v1577 = vmax.f32 %v1503, 0.0
      %v1578 = vmax.f32 %v1508, 0.0
      %v1579 = vmax.f32 %v1513, 0.0
      %v1580 = vmax.f32 %v1518, 0.0
      %v1581 = vmax.f32 %v1523, 0.0
      %v1582 = vmax.f32 %v1528, 0.0
      %v1583 = vmax.f32 %v1533, 0.0
      %v1584 = vmax.f32 %v1538, 0.0
      %v1585 = vmax.f32 %v1543, 0.0
      %v1586 = vmax.f32 %v1548, 0.0
      %v1587 = vmax.f32 %v1553, 0.0
      %v1588 = vld [vmem:[%s7] sm:$0xff]
      %v1589 = vld [vmem:[%s7 + $0x8] sm:$0xff]
      %v1590 = vld [vmem:[%s7 + $0x10] sm:$0xff]
      %v1591 = vld [vmem:[%s7 + $0x18] sm:$0xff]
      %v1592 = vld [vmem:[%s8] sm:$0x1]
      %v1594 = vlaneseq
      %v1595 = vshrl.u32 %v1594, 7
      %v1596 = vsub.s32 0, %v1595
      %v1597 = vrot.slane %v1592, %v1596
      %v1600 = vsel %vm870, %v1556, 0
      %v1603 = vsel %vm870, %v1557, 0
      %v1606 = vsel %vm870, %v1558, 0
      %v1609 = vsel %vm870, %v1559, 0
      %v1612 = vsel %vm870, %v1560, 0
      %v1615 = vsel %vm870, %v1561, 0
      %v1618 = vsel %vm870, %v1562, 0
      %v1621 = vsel %vm870, %v1563, 0
      %v1624 = vsel %vm870, %v1564, 0
      %v1627 = vsel %vm870, %v1565, 0
      %v1630 = vsel %vm870, %v1566, 0
      %v1633 = vsel %vm870, %v1567, 0
      %v1636 = vsel %vm870, %v1568, 0
      %v1639 = vsel %vm870, %v1569, 0
      %v1642 = vsel %vm870, %v1570, 0
      %v1645 = vsel %vm870, %v1571, 0
      %v1648 = vsel %vm870, %v1572, 0
      %v1651 = vsel %vm870, %v1573, 0
      %v1654 = vsel %vm870, %v1574, 0
      %v1657 = vsel %vm870, %v1575, 0
      %v1660 = vsel %vm870, %v1576, 0
      %v1663 = vsel %vm870, %v1577, 0
      %v1666 = vsel %vm870, %v1578, 0
      %v1669 = vsel %vm870, %v1579, 0
      %v1672 = vsel %vm870, %v1580, 0
      %v1675 = vsel %vm870, %v1581, 0
      %v1678 = vsel %vm870, %v1582, 0
      %v1681 = vsel %vm870, %v1583, 0
      %v1684 = vsel %vm870, %v1584, 0
      %v1687 = vsel %vm870, %v1585, 0
      %v1690 = vsel %vm870, %v1586, 0
      %v1693 = vsel %vm870, %v1587, 0
      %1695 = vmatprep.subr.mxu0 0.0
      %1696 = vmatpush1.msra.mxu0 %v1588
      %1697 = vmatprep.subr.mxu0 0.0
      %1698 = vmatpush1.msra.mxu0 %v1589
      %1699 = vmatprep.subr.mxu0 0.0
      %1700 = vmatpush1.msra.mxu0 %v1590
      %1701 = vmatprep.subr.mxu0 0.0
      %1702 = vmatpush1.msra.mxu0 %v1591
      %1703 = vmatprep.subr.mxu0 0.0
      %1704 = vmatpush1.msra.mxu0 0.0
      %1705 = vmatprep.subr.mxu0 0.0
      %1706 = vmatpush1.msra.mxu0 0.0
      %1707 = vmatprep.subr.mxu0 0.0
      %1708 = vmatpush1.msra.mxu0 0.0
      %1709 = vmatprep.subr.mxu0 0.0
      %1710 = vmatpush1.msra.mxu0 0.0
      %1711 = vmatprep.subr.mxu0 0.0
      %1712 = vmatpush1.msra.mxu0 0.0
      %1713 = vmatprep.subr.mxu0 0.0
      %1714 = vmatpush1.msra.mxu0 0.0
      %1715 = vmatprep.subr.mxu0 0.0
      %1716 = vmatpush1.msra.mxu0 0.0
      %1717 = vmatprep.subr.mxu0 0.0
      %1718 = vmatpush1.msra.mxu0 0.0
      %1719 = vmatprep.subr.mxu0 0.0
      %1720 = vmatpush1.msra.mxu0 0.0
      %1721 = vmatprep.subr.mxu0 0.0
      %1722 = vmatpush1.msra.mxu0 0.0
      %1723 = vmatprep.subr.mxu0 0.0
      %1724 = vmatpush1.msra.mxu0 0.0
      %1725 = vmatprep.subr.mxu0 0.0
      %1726 = vmatpush1.msra.mxu0 0.0
      %1727 = vmatprep.subr.mxu0 0.0
      %1728 = vmatpush1.msra.mxu0 0.0
      %1729 = vmatprep.subr.mxu0 0.0
      %1730 = vmatpush1.msra.mxu0 0.0
      %1731 = vmatprep.subr.mxu0 0.0
      %1732 = vmatpush1.msra.mxu0 0.0
      %1733 = vmatprep.subr.mxu0 0.0
      %1734 = vmatpush1.msra.mxu0 0.0
      %1735 = vmatprep.subr.mxu0 0.0
      %1736 = vmatpush1.msra.mxu0 0.0
      %1737 = vmatprep.subr.mxu0 0.0
      %1738 = vmatpush1.msra.mxu0 0.0
      %1739 = vmatprep.subr.mxu0 0.0
      %1740 = vmatpush1.msra.mxu0 0.0
      %1741 = vmatprep.subr.mxu0 0.0
      %1742 = vmatpush1.msra.mxu0 0.0
      %1743 = vmatprep.subr.mxu0 0.0
      %1744 = vmatpush1.msra.mxu0 0.0
      %1745 = vmatprep.subr.mxu0 0.0
      %1746 = vmatpush1.msra.mxu0 0.0
      %1747 = vmatprep.subr.mxu0 0.0
      %1748 = vmatpush1.msra.mxu0 0.0
      %1749 = vmatprep.subr.mxu0 0.0
      %1750 = vmatpush1.msra.mxu0 0.0
      %1751 = vmatprep.subr.mxu0 0.0
      %1752 = vmatpush1.msra.mxu0 0.0
      %1753 = vmatprep.subr.mxu0 0.0
      %1754 = vmatpush1.msra.mxu0 0.0
      %1755 = vmatprep.subr.mxu0 0.0
      %1756 = vmatpush1.msra.mxu0 0.0
      %1757 = vmatprep.subr.mxu0 0.0
      %1758 = vmatpush1.msra.mxu0 0.0
      %1759 = vmatprep.mubr.f32.mxu0 0.0
      %1760 = vmatmul.mubr.f32.gmra.mrb[0].mxu0 %v1600
      %v1761 = vpop.f32.mrb[0].mxu0
      %v1762 = vadd.f32 %v1597, %v1761
      %v1763 = vpop.f32.mrb[0].mxu0
      %1764 = vmatprep.mubr.f32.mxu0 0.0
      %1765 = vmatmul.mubr.f32.gmra.mrb[0].mxu0 %v1603
      %v1766 = vpop.f32.mrb[0].mxu0
      %v1767 = vadd.f32 %v1597, %v1766
      %v1768 = vpop.f32.mrb[0].mxu0
      %1769 = vmatprep.mubr.f32.mxu0 0.0
      %1770 = vmatmul.mubr.f32.gmra.mrb[0].mxu0 %v1606
      %v1771 = vpop.f32.mrb[0].mxu0
      %v1772 = vadd.f32 %v1597, %v1771
      %v1773 = vpop.f32.mrb[0].mxu0
      %1774 = vmatprep.mubr.f32.mxu0 0.0
      %1775 = vmatmul.mubr.f32.gmra.mrb[0].mxu0 %v1609
      %v1776 = vpop.f32.mrb[0].mxu0
      %v1777 = vadd.f32 %v1597, %v1776
      %v1778 = vpop.f32.mrb[0].mxu0
      %1779 = vmatprep.mubr.f32.mxu0 0.0
      %1780 = vmatmul.mubr.f32.gmra.mrb[0].mxu0 %v1612
      %v1781 = vpop.f32.mrb[0].mxu0
      %v1782 = vadd.f32 %v1597, %v1781
      %v1783 = vpop.f32.mrb[0].mxu0
      %1784 = vmatprep.mubr.f32.mxu0 0.0
      %1785 = vmatmul.mubr.f32.gmra.mrb[0].mxu0 %v1615
      %v1786 = vpop.f32.mrb[0].mxu0
      %v1787 = vadd.f32 %v1597, %v1786
      %v1788 = vpop.f32.mrb[0].mxu0
      %1789 = vmatprep.mubr.f32.mxu0 0.0
      %1790 = vmatmul.mubr.f32.gmra.mrb[0].mxu0 %v1618
      %v1791 = vpop.f32.mrb[0].mxu0
      %v1792 = vadd.f32 %v1597, %v1791
      %v1793 = vpop.f32.mrb[0].mxu0
      %1794 = vmatprep.mubr.f32.mxu0 0.0
      %1795 = vmatmul.mubr.f32.gmra.mrb[0].mxu0 %v1621
      %v1796 = vpop.f32.mrb[0].mxu0
      %v1797 = vadd.f32 %v1597, %v1796
      %v1798 = vpop.f32.mrb[0].mxu0
      %1799 = vmatprep.mubr.f32.mxu0 0.0
      %1800 = vmatmul.mubr.f32.gmra.mrb[0].mxu0 %v1624
      %v1801 = vpop.f32.mrb[0].mxu0
      %v1802 = vadd.f32 %v1597, %v1801
      %v1803 = vpop.f32.mrb[0].mxu0
      %1804 = vmatprep.mubr.f32.mxu0 0.0
      %1805 = vmatmul.mubr.f32.gmra.mrb[0].mxu0 %v1627
      %v1806 = vpop.f32.mrb[0].mxu0
      %v1807 = vadd.f32 %v1597, %v1806
      %v1808 = vpop.f32.mrb[0].mxu0
      %1809 = vmatprep.mubr.f32.mxu0 0.0
      %1810 = vmatmul.mubr.f32.gmra.mrb[0].mxu0 %v1630
      %v1811 = vpop.f32.mrb[0].mxu0
      %v1812 = vadd.f32 %v1597, %v1811
      %v1813 = vpop.f32.mrb[0].mxu0
      %1814 = vmatprep.mubr.f32.mxu0 0.0
      %1815 = vmatmul.mubr.f32.gmra.mrb[0].mxu0 %v1633
      %v1816 = vpop.f32.mrb[0].mxu0
      %v1817 = vadd.f32 %v1597, %v1816
      %v1818 = vpop.f32.mrb[0].mxu0
      %1819 = vmatprep.mubr.f32.mxu0 0.0
      %1820 = vmatmul.mubr.f32.gmra.mrb[0].mxu0 %v1636
      %v1821 = vpop.f32.mrb[0].mxu0
      %v1822 = vadd.f32 %v1597, %v1821
      %v1823 = vpop.f32.mrb[0].mxu0
      %1824 = vmatprep.mubr.f32.mxu0 0.0
      %1825 = vmatmul.mubr.f32.gmra.mrb[0].mxu0 %v1639
      %v1826 = vpop.f32.mrb[0].mxu0
      %v1827 = vadd.f32 %v1597, %v1826
      %v1828 = vpop.f32.mrb[0].mxu0
      %1829 = vmatprep.mubr.f32.mxu0 0.0
      %1830 = vmatmul.mubr.f32.gmra.mrb[0].mxu0 %v1642
      %v1831 = vpop.f32.mrb[0].mxu0
      %v1832 = vadd.f32 %v1597, %v1831
      %v1833 = vpop.f32.mrb[0].mxu0
      %1834 = vmatprep.mubr.f32.mxu0 0.0
      %1835 = vmatmul.mubr.f32.gmra.mrb[0].mxu0 %v1645
      %v1836 = vpop.f32.mrb[0].mxu0
      %v1837 = vadd.f32 %v1597, %v1836
      %v1838 = vpop.f32.mrb[0].mxu0
      %1839 = vmatprep.mubr.f32.mxu0 0.0
      %1840 = vmatmul.mubr.f32.gmra.mrb[0].mxu0 %v1648
      %v1841 = vpop.f32.mrb[0].mxu0
      %v1842 = vadd.f32 %v1597, %v1841
      %v1843 = vpop.f32.mrb[0].mxu0
      %1844 = vmatprep.mubr.f32.mxu0 0.0
      %1845 = vmatmul.mubr.f32.gmra.mrb[0].mxu0 %v1651
      %v1846 = vpop.f32.mrb[0].mxu0
      %v1847 = vadd.f32 %v1597, %v1846
      %v1848 = vpop.f32.mrb[0].mxu0
      %1849 = vmatprep.mubr.f32.mxu0 0.0
      %1850 = vmatmul.mubr.f32.gmra.mrb[0].mxu0 %v1654
      %v1851 = vpop.f32.mrb[0].mxu0
      %v1852 = vadd.f32 %v1597, %v1851
      %v1853 = vpop.f32.mrb[0].mxu0
      %1854 = vmatprep.mubr.f32.mxu0 0.0
      %1855 = vmatmul.mubr.f32.gmra.mrb[0].mxu0 %v1657
      %v1856 = vpop.f32.mrb[0].mxu0
      %v1857 = vadd.f32 %v1597, %v1856
      %v1858 = vpop.f32.mrb[0].mxu0
      %1859 = vmatprep.mubr.f32.mxu0 0.0
      %1860 = vmatmul.mubr.f32.gmra.mrb[0].mxu0 %v1660
      %v1861 = vpop.f32.mrb[0].mxu0
      %v1862 = vadd.f32 %v1597, %v1861
      %v1863 = vpop.f32.mrb[0].mxu0
      %1864 = vmatprep.mubr.f32.mxu0 0.0
      %1865 = vmatmul.mubr.f32.gmra.mrb[0].mxu0 %v1663
      %v1866 = vpop.f32.mrb[0].mxu0
      %v1867 = vadd.f32 %v1597, %v1866
      %v1868 = vpop.f32.mrb[0].mxu0
      %1869 = vmatprep.mubr.f32.mxu0 0.0
      %1870 = vmatmul.mubr.f32.gmra.mrb[0].mxu0 %v1666
      %v1871 = vpop.f32.mrb[0].mxu0
      %v1872 = vadd.f32 %v1597, %v1871
      %v1873 = vpop.f32.mrb[0].mxu0
      %1874 = vmatprep.mubr.f32.mxu0 0.0
      %1875 = vmatmul.mubr.f32.gmra.mrb[0].mxu0 %v1669
      %v1876 = vpop.f32.mrb[0].mxu0
      %v1877 = vadd.f32 %v1597, %v1876
      %v1878 = vpop.f32.mrb[0].mxu0
      %1879 = vmatprep.mubr.f32.mxu0 0.0
      %1880 = vmatmul.mubr.f32.gmra.mrb[0].mxu0 %v1672
      %v1881 = vpop.f32.mrb[0].mxu0
      %v1882 = vadd.f32 %v1597, %v1881
      %v1883 = vpop.f32.mrb[0].mxu0
      %1884 = vmatprep.mubr.f32.mxu0 0.0
      %1885 = vmatmul.mubr.f32.gmra.mrb[0].mxu0 %v1675
      %v1886 = vpop.f32.mrb[0].mxu0
      %v1887 = vadd.f32 %v1597, %v1886
      %v1888 = vpop.f32.mrb[0].mxu0
      %1889 = vmatprep.mubr.f32.mxu0 0.0
      %1890 = vmatmul.mubr.f32.gmra.mrb[0].mxu0 %v1678
      %v1891 = vpop.f32.mrb[0].mxu0
      %v1892 = vadd.f32 %v1597, %v1891
      %v1893 = vpop.f32.mrb[0].mxu0
      %1894 = vmatprep.mubr.f32.mxu0 0.0
      %1895 = vmatmul.mubr.f32.gmra.mrb[0].mxu0 %v1681
      %v1896 = vpop.f32.mrb[0].mxu0
      %v1897 = vadd.f32 %v1597, %v1896
      %v1898 = vpop.f32.mrb[0].mxu0
      %1899 = vmatprep.mubr.f32.mxu0 0.0
      %1900 = vmatmul.mubr.f32.gmra.mrb[0].mxu0 %v1684
      %v1901 = vpop.f32.mrb[0].mxu0
      %v1902 = vadd.f32 %v1597, %v1901
      %v1903 = vpop.f32.mrb[0].mxu0
      %1904 = vmatprep.mubr.f32.mxu0 0.0
      %1905 = vmatmul.mubr.f32.gmra.mrb[0].mxu0 %v1687
      %v1906 = vpop.f32.mrb[0].mxu0
      %v1907 = vadd.f32 %v1597, %v1906
      %v1908 = vpop.f32.mrb[0].mxu0
      %1909 = vmatprep.mubr.f32.mxu0 0.0
      %1910 = vmatmul.mubr.f32.gmra.mrb[0].mxu0 %v1690
      %v1911 = vpop.f32.mrb[0].mxu0
      %v1912 = vadd.f32 %v1597, %v1911
      %v1913 = vpop.f32.mrb[0].mxu0
      %1914 = vmatprep.mubr.f32.mxu0 0.0
      %1915 = vmatmul.mubr.f32.gmra.mrb[0].mxu0 %v1693
      %v1916 = vpop.f32.mrb[0].mxu0
      %v1917 = vadd.f32 %v1597, %v1916
      %v1918 = vpop.f32.mrb[0].mxu0
      %1919 = vdwg.mxu0
      %v1920 = vmax.f32 %v1762, 0.0
      %v1921 = vmax.f32 %v1767, 0.0
      %v1922 = vmax.f32 %v1772, 0.0
      %v1923 = vmax.f32 %v1777, 0.0
      %v1924 = vmax.f32 %v1782, 0.0
      %v1925 = vmax.f32 %v1787, 0.0
      %v1926 = vmax.f32 %v1792, 0.0
      %v1927 = vmax.f32 %v1797, 0.0
      %v1928 = vmax.f32 %v1802, 0.0
      %v1929 = vmax.f32 %v1807, 0.0
      %v1930 = vmax.f32 %v1812, 0.0
      %v1931 = vmax.f32 %v1817, 0.0
      %v1932 = vmax.f32 %v1822, 0.0
      %v1933 = vmax.f32 %v1827, 0.0
      %v1934 = vmax.f32 %v1832, 0.0
      %v1935 = vmax.f32 %v1837, 0.0
      %v1936 = vmax.f32 %v1842, 0.0
      %v1937 = vmax.f32 %v1847, 0.0
      %v1938 = vmax.f32 %v1852, 0.0
      %v1939 = vmax.f32 %v1857, 0.0
      %v1940 = vmax.f32 %v1862, 0.0
      %v1941 = vmax.f32 %v1867, 0.0
      %v1942 = vmax.f32 %v1872, 0.0
      %v1943 = vmax.f32 %v1877, 0.0
      %v1944 = vmax.f32 %v1882, 0.0
      %v1945 = vmax.f32 %v1887, 0.0
      %v1946 = vmax.f32 %v1892, 0.0
      %v1947 = vmax.f32 %v1897, 0.0
      %v1948 = vmax.f32 %v1902, 0.0
      %v1949 = vmax.f32 %v1907, 0.0
      %v1950 = vmax.f32 %v1912, 0.0
      %v1951 = vmax.f32 %v1917, 0.0
      %v1952 = vld [vmem:[%s9] sm:$0xff]
      %v1953 = vld [vmem:[%s9 + $0x8] sm:$0xff]
      %v1954 = vld [vmem:[%s9 + $0x10] sm:$0xff]
      %v1955 = vld [vmem:[%s9 + $0x18] sm:$0xff]
      %v1956 = vld [vmem:[%s10] sm:$0x1]
      %v1958 = vlaneseq
      %v1959 = vshrl.u32 %v1958, 7
      %v1960 = vsub.s32 0, %v1959
      %v1961 = vrot.slane %v1956, %v1960
      %v1964 = vsel %vm870, %v1920, 0
      %v1967 = vsel %vm870, %v1921, 0
      %v1970 = vsel %vm870, %v1922, 0
      %v1973 = vsel %vm870, %v1923, 0
      %v1976 = vsel %vm870, %v1924, 0
      %v1979 = vsel %vm870, %v1925, 0
      %v1982 = vsel %vm870, %v1926, 0
      %v1985 = vsel %vm870, %v1927, 0
      %v1988 = vsel %vm870, %v1928, 0
      %v1991 = vsel %vm870, %v1929, 0
      %v1994 = vsel %vm870, %v1930, 0
      %v1997 = vsel %vm870, %v1931, 0
      %v2000 = vsel %vm870, %v1932, 0
      %v2003 = vsel %vm870, %v1933, 0
      %v2006 = vsel %vm870, %v1934, 0
      %v2009 = vsel %vm870, %v1935, 0
      %v2012 = vsel %vm870, %v1936, 0
      %v2015 = vsel %vm870, %v1937, 0
      %v2018 = vsel %vm870, %v1938, 0
      %v2021 = vsel %vm870, %v1939, 0
      %v2024 = vsel %vm870, %v1940, 0
      %v2027 = vsel %vm870, %v1941, 0
      %v2030 = vsel %vm870, %v1942, 0
      %v2033 = vsel %vm870, %v1943, 0
      %v2036 = vsel %vm870, %v1944, 0
      %v2039 = vsel %vm870, %v1945, 0
      %v2042 = vsel %vm870, %v1946, 0
      %v2045 = vsel %vm870, %v1947, 0
      %v2048 = vsel %vm870, %v1948, 0
      %v2051 = vsel %vm870, %v1949, 0
      %v2054 = vsel %vm870, %v1950, 0
      %v2057 = vsel %vm870, %v1951, 0
      %2059 = vmatprep.subr.mxu0 0.0
      %2060 = vmatpush1.msra.mxu0 %v1952
      %2061 = vmatprep.subr.mxu0 0.0
      %2062 = vmatpush1.msra.mxu0 %v1953
      %2063 = vmatprep.subr.mxu0 0.0
      %2064 = vmatpush1.msra.mxu0 %v1954
      %2065 = vmatprep.subr.mxu0 0.0
      %2066 = vmatpush1.msra.mxu0 %v1955
      %2067 = vmatprep.subr.mxu0 0.0
      %2068 = vmatpush1.msra.mxu0 0.0
      %2069 = vmatprep.subr.mxu0 0.0
      %2070 = vmatpush1.msra.mxu0 0.0
      %2071 = vmatprep.subr.mxu0 0.0
      %2072 = vmatpush1.msra.mxu0 0.0
      %2073 = vmatprep.subr.mxu0 0.0
      %2074 = vmatpush1.msra.mxu0 0.0
      %2075 = vmatprep.subr.mxu0 0.0
      %2076 = vmatpush1.msra.mxu0 0.0
      %2077 = vmatprep.subr.mxu0 0.0
      %2078 = vmatpush1.msra.mxu0 0.0
      %2079 = vmatprep.subr.mxu0 0.0
      %2080 = vmatpush1.msra.mxu0 0.0
      %2081 = vmatprep.subr.mxu0 0.0
      %2082 = vmatpush1.msra.mxu0 0.0
      %2083 = vmatprep.subr.mxu0 0.0
      %2084 = vmatpush1.msra.mxu0 0.0
      %2085 = vmatprep.subr.mxu0 0.0
      %2086 = vmatpush1.msra.mxu0 0.0
      %2087 = vmatprep.subr.mxu0 0.0
      %2088 = vmatpush1.msra.mxu0 0.0
      %2089 = vmatprep.subr.mxu0 0.0
      %2090 = vmatpush1.msra.mxu0 0.0
      %2091 = vmatprep.subr.mxu0 0.0
      %2092 = vmatpush1.msra.mxu0 0.0
      %2093 = vmatprep.subr.mxu0 0.0
      %2094 = vmatpush1.msra.mxu0 0.0
      %2095 = vmatprep.subr.mxu0 0.0
      %2096 = vmatpush1.msra.mxu0 0.0
      %2097 = vmatprep.subr.mxu0 0.0
      %2098 = vmatpush1.msra.mxu0 0.0
      %2099 = vmatprep.subr.mxu0 0.0
      %2100 = vmatpush1.msra.mxu0 0.0
      %2101 = vmatprep.subr.mxu0 0.0
      %2102 = vmatpush1.msra.mxu0 0.0
      %2103 = vmatprep.subr.mxu0 0.0
      %2104 = vmatpush1.msra.mxu0 0.0
      %2105 = vmatprep.subr.mxu0 0.0
      %2106 = vmatpush1.msra.mxu0 0.0
      %2107 = vmatprep.subr.mxu0 0.0
      %2108 = vmatpush1.msra.mxu0 0.0
      %2109 = vmatprep.subr.mxu0 0.0
      %2110 = vmatpush1.msra.mxu0 0.0
      %2111 = vmatprep.subr.mxu0 0.0
      %2112 = vmatpush1.msra.mxu0 0.0
      %2113 = vmatprep.subr.mxu0 0.0
      %2114 = vmatpush1.msra.mxu0 0.0
      %2115 = vmatprep.subr.mxu0 0.0
      %2116 = vmatpush1.msra.mxu0 0.0
      %2117 = vmatprep.subr.mxu0 0.0
      %2118 = vmatpush1.msra.mxu0 0.0
      %2119 = vmatprep.subr.mxu0 0.0
      %2120 = vmatpush1.msra.mxu0 0.0
      %2121 = vmatprep.subr.mxu0 0.0
      %2122 = vmatpush1.msra.mxu0 0.0
      %2123 = vmatprep.mubr.f32.mxu0 0.0
      %2124 = vmatmul.mubr.f32.gmra.mrb[0].mxu0 %v1964
      %v2125 = vpop.f32.mrb[0].mxu0
      %v2126 = vadd.f32 %v1961, %v2125
      %v2127 = vpop.f32.mrb[0].mxu0
      %2128 = vmatprep.mubr.f32.mxu0 0.0
      %2129 = vmatmul.mubr.f32.gmra.mrb[0].mxu0 %v1967
      %v2130 = vpop.f32.mrb[0].mxu0
      %v2131 = vadd.f32 %v1961, %v2130
      %v2132 = vpop.f32.mrb[0].mxu0
      %2133 = vmatprep.mubr.f32.mxu0 0.0
      %2134 = vmatmul.mubr.f32.gmra.mrb[0].mxu0 %v1970
      %v2135 = vpop.f32.mrb[0].mxu0
      %v2136 = vadd.f32 %v1961, %v2135
      %v2137 = vpop.f32.mrb[0].mxu0
      %2138 = vmatprep.mubr.f32.mxu0 0.0
      %2139 = vmatmul.mubr.f32.gmra.mrb[0].mxu0 %v1973
      %v2140 = vpop.f32.mrb[0].mxu0
      %v2141 = vadd.f32 %v1961, %v2140
      %v2142 = vpop.f32.mrb[0].mxu0
      %2143 = vmatprep.mubr.f32.mxu0 0.0
      %2144 = vmatmul.mubr.f32.gmra.mrb[0].mxu0 %v1976
      %v2145 = vpop.f32.mrb[0].mxu0
      %v2146 = vadd.f32 %v1961, %v2145
      %v2147 = vpop.f32.mrb[0].mxu0
      %2148 = vmatprep.mubr.f32.mxu0 0.0
      %2149 = vmatmul.mubr.f32.gmra.mrb[0].mxu0 %v1979
      %v2150 = vpop.f32.mrb[0].mxu0
      %v2151 = vadd.f32 %v1961, %v2150
      %v2152 = vpop.f32.mrb[0].mxu0
      %2153 = vmatprep.mubr.f32.mxu0 0.0
      %2154 = vmatmul.mubr.f32.gmra.mrb[0].mxu0 %v1982
      %v2155 = vpop.f32.mrb[0].mxu0
      %v2156 = vadd.f32 %v1961, %v2155
      %v2157 = vpop.f32.mrb[0].mxu0
      %2158 = vmatprep.mubr.f32.mxu0 0.0
      %2159 = vmatmul.mubr.f32.gmra.mrb[0].mxu0 %v1985
      %v2160 = vpop.f32.mrb[0].mxu0
      %v2161 = vadd.f32 %v1961, %v2160
      %v2162 = vpop.f32.mrb[0].mxu0
      %2163 = vmatprep.mubr.f32.mxu0 0.0
      %2164 = vmatmul.mubr.f32.gmra.mrb[0].mxu0 %v1988
      %v2165 = vpop.f32.mrb[0].mxu0
      %v2166 = vadd.f32 %v1961, %v2165
      %v2167 = vpop.f32.mrb[0].mxu0
      %2168 = vmatprep.mubr.f32.mxu0 0.0
      %2169 = vmatmul.mubr.f32.gmra.mrb[0].mxu0 %v1991
      %v2170 = vpop.f32.mrb[0].mxu0
      %v2171 = vadd.f32 %v1961, %v2170
      %v2172 = vpop.f32.mrb[0].mxu0
      %2173 = vmatprep.mubr.f32.mxu0 0.0
      %2174 = vmatmul.mubr.f32.gmra.mrb[0].mxu0 %v1994
      %v2175 = vpop.f32.mrb[0].mxu0
      %v2176 = vadd.f32 %v1961, %v2175
      %v2177 = vpop.f32.mrb[0].mxu0
      %2178 = vmatprep.mubr.f32.mxu0 0.0
      %2179 = vmatmul.mubr.f32.gmra.mrb[0].mxu0 %v1997
      %v2180 = vpop.f32.mrb[0].mxu0
      %v2181 = vadd.f32 %v1961, %v2180
      %v2182 = vpop.f32.mrb[0].mxu0
      %2183 = vmatprep.mubr.f32.mxu0 0.0
      %2184 = vmatmul.mubr.f32.gmra.mrb[0].mxu0 %v2000
      %v2185 = vpop.f32.mrb[0].mxu0
      %v2186 = vadd.f32 %v1961, %v2185
      %v2187 = vpop.f32.mrb[0].mxu0
      %2188 = vmatprep.mubr.f32.mxu0 0.0
      %2189 = vmatmul.mubr.f32.gmra.mrb[0].mxu0 %v2003
      %v2190 = vpop.f32.mrb[0].mxu0
      %v2191 = vadd.f32 %v1961, %v2190
      %v2192 = vpop.f32.mrb[0].mxu0
      %2193 = vmatprep.mubr.f32.mxu0 0.0
      %2194 = vmatmul.mubr.f32.gmra.mrb[0].mxu0 %v2006
      %v2195 = vpop.f32.mrb[0].mxu0
      %v2196 = vadd.f32 %v1961, %v2195
      %v2197 = vpop.f32.mrb[0].mxu0
      %2198 = vmatprep.mubr.f32.mxu0 0.0
      %2199 = vmatmul.mubr.f32.gmra.mrb[0].mxu0 %v2009
      %v2200 = vpop.f32.mrb[0].mxu0
      %v2201 = vadd.f32 %v1961, %v2200
      %v2202 = vpop.f32.mrb[0].mxu0
      %2203 = vmatprep.mubr.f32.mxu0 0.0
      %2204 = vmatmul.mubr.f32.gmra.mrb[0].mxu0 %v2012
      %v2205 = vpop.f32.mrb[0].mxu0
      %v2206 = vadd.f32 %v1961, %v2205
      %v2207 = vpop.f32.mrb[0].mxu0
      %2208 = vmatprep.mubr.f32.mxu0 0.0
      %2209 = vmatmul.mubr.f32.gmra.mrb[0].mxu0 %v2015
      %v2210 = vpop.f32.mrb[0].mxu0
      %v2211 = vadd.f32 %v1961, %v2210
      %v2212 = vpop.f32.mrb[0].mxu0
      %2213 = vmatprep.mubr.f32.mxu0 0.0
      %2214 = vmatmul.mubr.f32.gmra.mrb[0].mxu0 %v2018
      %v2215 = vpop.f32.mrb[0].mxu0
      %v2216 = vadd.f32 %v1961, %v2215
      %v2217 = vpop.f32.mrb[0].mxu0
      %2218 = vmatprep.mubr.f32.mxu0 0.0
      %2219 = vmatmul.mubr.f32.gmra.mrb[0].mxu0 %v2021
      %v2220 = vpop.f32.mrb[0].mxu0
      %v2221 = vadd.f32 %v1961, %v2220
      %v2222 = vpop.f32.mrb[0].mxu0
      %2223 = vmatprep.mubr.f32.mxu0 0.0
      %2224 = vmatmul.mubr.f32.gmra.mrb[0].mxu0 %v2024
      %v2225 = vpop.f32.mrb[0].mxu0
      %v2226 = vadd.f32 %v1961, %v2225
      %v2227 = vpop.f32.mrb[0].mxu0
      %2228 = vmatprep.mubr.f32.mxu0 0.0
      %2229 = vmatmul.mubr.f32.gmra.mrb[0].mxu0 %v2027
      %v2230 = vpop.f32.mrb[0].mxu0
      %v2231 = vadd.f32 %v1961, %v2230
      %v2232 = vpop.f32.mrb[0].mxu0
      %2233 = vmatprep.mubr.f32.mxu0 0.0
      %2234 = vmatmul.mubr.f32.gmra.mrb[0].mxu0 %v2030
      %v2235 = vpop.f32.mrb[0].mxu0
      %v2236 = vadd.f32 %v1961, %v2235
      %v2237 = vpop.f32.mrb[0].mxu0
      %2238 = vmatprep.mubr.f32.mxu0 0.0
      %2239 = vmatmul.mubr.f32.gmra.mrb[0].mxu0 %v2033
      %v2240 = vpop.f32.mrb[0].mxu0
      %v2241 = vadd.f32 %v1961, %v2240
      %v2242 = vpop.f32.mrb[0].mxu0
      %2243 = vmatprep.mubr.f32.mxu0 0.0
      %2244 = vmatmul.mubr.f32.gmra.mrb[0].mxu0 %v2036
      %v2245 = vpop.f32.mrb[0].mxu0
      %v2246 = vadd.f32 %v1961, %v2245
      %v2247 = vpop.f32.mrb[0].mxu0
      %2248 = vmatprep.mubr.f32.mxu0 0.0
      %2249 = vmatmul.mubr.f32.gmra.mrb[0].mxu0 %v2039
      %v2250 = vpop.f32.mrb[0].mxu0
      %v2251 = vadd.f32 %v1961, %v2250
      %v2252 = vpop.f32.mrb[0].mxu0
      %2253 = vmatprep.mubr.f32.mxu0 0.0
      %2254 = vmatmul.mubr.f32.gmra.mrb[0].mxu0 %v2042
      %v2255 = vpop.f32.mrb[0].mxu0
      %v2256 = vadd.f32 %v1961, %v2255
      %v2257 = vpop.f32.mrb[0].mxu0
      %2258 = vmatprep.mubr.f32.mxu0 0.0
      %2259 = vmatmul.mubr.f32.gmra.mrb[0].mxu0 %v2045
      %v2260 = vpop.f32.mrb[0].mxu0
      %v2261 = vadd.f32 %v1961, %v2260
      %v2262 = vpop.f32.mrb[0].mxu0
      %2263 = vmatprep.mubr.f32.mxu0 0.0
      %2264 = vmatmul.mubr.f32.gmra.mrb[0].mxu0 %v2048
      %v2265 = vpop.f32.mrb[0].mxu0
      %v2266 = vadd.f32 %v1961, %v2265
      %v2267 = vpop.f32.mrb[0].mxu0
      %2268 = vmatprep.mubr.f32.mxu0 0.0
      %2269 = vmatmul.mubr.f32.gmra.mrb[0].mxu0 %v2051
      %v2270 = vpop.f32.mrb[0].mxu0
      %v2271 = vadd.f32 %v1961, %v2270
      %v2272 = vpop.f32.mrb[0].mxu0
      %2273 = vmatprep.mubr.f32.mxu0 0.0
      %2274 = vmatmul.mubr.f32.gmra.mrb[0].mxu0 %v2054
      %v2275 = vpop.f32.mrb[0].mxu0
      %v2276 = vadd.f32 %v1961, %v2275
      %v2277 = vpop.f32.mrb[0].mxu0
      %2278 = vmatprep.mubr.f32.mxu0 0.0
      %2279 = vmatmul.mubr.f32.gmra.mrb[0].mxu0 %v2057
      %v2280 = vpop.f32.mrb[0].mxu0
      %v2281 = vadd.f32 %v1961, %v2280
      %v2282 = vpop.f32.mrb[0].mxu0
      %2283 = vdwg.mxu0
      %v2284 = vmax.f32 %v2126, 0.0
      %v2285 = vmax.f32 %v2131, 0.0
      %v2286 = vmax.f32 %v2136, 0.0
      %v2287 = vmax.f32 %v2141, 0.0
      %v2288 = vmax.f32 %v2146, 0.0
      %v2289 = vmax.f32 %v2151, 0.0
      %v2290 = vmax.f32 %v2156, 0.0
      %v2291 = vmax.f32 %v2161, 0.0
      %v2292 = vmax.f32 %v2166, 0.0
      %v2293 = vmax.f32 %v2171, 0.0
      %v2294 = vmax.f32 %v2176, 0.0
      %v2295 = vmax.f32 %v2181, 0.0
      %v2296 = vmax.f32 %v2186, 0.0
      %v2297 = vmax.f32 %v2191, 0.0
      %v2298 = vmax.f32 %v2196, 0.0
      %v2299 = vmax.f32 %v2201, 0.0
      %v2300 = vmax.f32 %v2206, 0.0
      %v2301 = vmax.f32 %v2211, 0.0
      %v2302 = vmax.f32 %v2216, 0.0
      %v2303 = vmax.f32 %v2221, 0.0
      %v2304 = vmax.f32 %v2226, 0.0
      %v2305 = vmax.f32 %v2231, 0.0
      %v2306 = vmax.f32 %v2236, 0.0
      %v2307 = vmax.f32 %v2241, 0.0
      %v2308 = vmax.f32 %v2246, 0.0
      %v2309 = vmax.f32 %v2251, 0.0
      %v2310 = vmax.f32 %v2256, 0.0
      %v2311 = vmax.f32 %v2261, 0.0
      %v2312 = vmax.f32 %v2266, 0.0
      %v2313 = vmax.f32 %v2271, 0.0
      %v2314 = vmax.f32 %v2276, 0.0
      %v2315 = vmax.f32 %v2281, 0.0
      %v2316 = vld [vmem:[%s11] sm:$0xff]
      %v2317 = vld [vmem:[%s12] sm:$0xff]
      %2319 = vset.pattern.permute.xlu0 0
      %2320 = vperm.xlu0 %2319, %v2317
      %v2321 = vpop.permute.xlu0 %2320
      %v2324 = vsel %vm870, %v2316, 0
      %v2327 = vsel %vm870, %v2284, 0
      %v2330 = vsel %vm870, %v2285, 0
      %v2333 = vsel %vm870, %v2286, 0
      %v2336 = vsel %vm870, %v2287, 0
      %v2339 = vsel %vm870, %v2288, 0
      %v2342 = vsel %vm870, %v2289, 0
      %v2345 = vsel %vm870, %v2290, 0
      %v2348 = vsel %vm870, %v2291, 0
      %v2351 = vsel %vm870, %v2292, 0
      %v2354 = vsel %vm870, %v2293, 0
      %v2357 = vsel %vm870, %v2294, 0
      %v2360 = vsel %vm870, %v2295, 0
      %v2363 = vsel %vm870, %v2296, 0
      %v2366 = vsel %vm870, %v2297, 0
      %v2369 = vsel %vm870, %v2298, 0
      %v2372 = vsel %vm870, %v2299, 0
      %v2375 = vsel %vm870, %v2300, 0
      %v2378 = vsel %vm870, %v2301, 0
      %v2381 = vsel %vm870, %v2302, 0
      %v2384 = vsel %vm870, %v2303, 0
      %v2387 = vsel %vm870, %v2304, 0
      %v2390 = vsel %vm870, %v2305, 0
      %v2393 = vsel %vm870, %v2306, 0
      %v2396 = vsel %vm870, %v2307, 0
      %v2399 = vsel %vm870, %v2308, 0
      %v2402 = vsel %vm870, %v2309, 0
      %v2405 = vsel %vm870, %v2310, 0
      %v2408 = vsel %vm870, %v2311, 0
      %v2411 = vsel %vm870, %v2312, 0
      %v2414 = vsel %vm870, %v2313, 0
      %v2417 = vsel %vm870, %v2314, 0
      %v2420 = vsel %vm870, %v2315, 0
      %2422 = vmatprep.subr.mxu0 0.0
      %2423 = vmatpush1.xpose.msra.mxu0 %v2327
      %2424 = vmatprep.subr.mxu0 0.0
      %2425 = vmatpush1.xpose.msra.mxu0 %v2330
      %2426 = vmatprep.subr.mxu0 0.0
      %2427 = vmatpush1.xpose.msra.mxu0 %v2333
      %2428 = vmatprep.subr.mxu0 0.0
      %2429 = vmatpush1.xpose.msra.mxu0 %v2336
      %2430 = vmatprep.subr.mxu0 0.0
      %2431 = vmatpush1.xpose.msra.mxu0 %v2339
      %2432 = vmatprep.subr.mxu0 0.0
      %2433 = vmatpush1.xpose.msra.mxu0 %v2342
      %2434 = vmatprep.subr.mxu0 0.0
      %2435 = vmatpush1.xpose.msra.mxu0 %v2345
      %2436 = vmatprep.subr.mxu0 0.0
      %2437 = vmatpush1.xpose.msra.mxu0 %v2348
      %2438 = vmatprep.subr.mxu0 0.0
      %2439 = vmatpush1.xpose.msra.mxu0 %v2351
      %2440 = vmatprep.subr.mxu0 0.0
      %2441 = vmatpush1.xpose.msra.mxu0 %v2354
      %2442 = vmatprep.subr.mxu0 0.0
      %2443 = vmatpush1.xpose.msra.mxu0 %v2357
      %2444 = vmatprep.subr.mxu0 0.0
      %2445 = vmatpush1.xpose.msra.mxu0 %v2360
      %2446 = vmatprep.subr.mxu0 0.0
      %2447 = vmatpush1.xpose.msra.mxu0 %v2363
      %2448 = vmatprep.subr.mxu0 0.0
      %2449 = vmatpush1.xpose.msra.mxu0 %v2366
      %2450 = vmatprep.subr.mxu0 0.0
      %2451 = vmatpush1.xpose.msra.mxu0 %v2369
      %2452 = vmatprep.subr.mxu0 0.0
      %2453 = vmatpush1.xpose.msra.mxu0 %v2372
      %2454 = vmatprep.subr.mxu0 0.0
      %2455 = vmatpush1.xpose.msra.mxu0 %v2375
      %2456 = vmatprep.subr.mxu0 0.0
      %2457 = vmatpush1.xpose.msra.mxu0 %v2378
      %2458 = vmatprep.subr.mxu0 0.0
      %2459 = vmatpush1.xpose.msra.mxu0 %v2381
      %2460 = vmatprep.subr.mxu0 0.0
      %2461 = vmatpush1.xpose.msra.mxu0 %v2384
      %2462 = vmatprep.subr.mxu0 0.0
      %2463 = vmatpush1.xpose.msra.mxu0 %v2387
      %2464 = vmatprep.subr.mxu0 0.0
      %2465 = vmatpush1.xpose.msra.mxu0 %v2390
      %2466 = vmatprep.subr.mxu0 0.0
      %2467 = vmatpush1.xpose.msra.mxu0 %v2393
      %2468 = vmatprep.subr.mxu0 0.0
      %2469 = vmatpush1.xpose.msra.mxu0 %v2396
      %2470 = vmatprep.subr.mxu0 0.0
      %2471 = vmatpush1.xpose.msra.mxu0 %v2399
      %2472 = vmatprep.subr.mxu0 0.0
      %2473 = vmatpush1.xpose.msra.mxu0 %v2402
      %2474 = vmatprep.subr.mxu0 0.0
      %2475 = vmatpush1.xpose.msra.mxu0 %v2405
      %2476 = vmatprep.subr.mxu0 0.0
      %2477 = vmatpush1.xpose.msra.mxu0 %v2408
      %2478 = vmatprep.subr.mxu0 0.0
      %2479 = vmatpush1.xpose.msra.mxu0 %v2411
      %2480 = vmatprep.subr.mxu0 0.0
      %2481 = vmatpush1.xpose.msra.mxu0 %v2414
      %2482 = vmatprep.subr.mxu0 0.0
      %2483 = vmatpush1.xpose.msra.mxu0 %v2417
      %2484 = vmatprep.subr.mxu0 0.0
      %2485 = vmatpush1.xpose.msra.mxu0 %v2420
      %2486 = vmatprep.mubr.f32.mxu0 0.0
      %2487 = vmatmul.mubr.f32.gmra.mrb[0].mxu0 %v2324
      %v2488 = vpop.f32.mrb[0].mxu0
      %v2489 = vadd.f32 %v2321, %v2488
      %v2490 = vpop.f32.mrb[0].mxu0
      %v2491 = vadd.f32 %v2321, %v2490
      %2492 = vdwg.mxu0
      %2493 = vst [vmem:[%s462] sm:$0xff] %v2489
      %2494 = vst [vmem:[%s462 + $0x8] sm:$0xff] %v2491
      %v2495 = vld [vmem:[%s452 + $0x100] sm:$0xff]
      %v2496 = vld [vmem:[%s452 + $0x108] sm:$0xff]
      %v2497 = vld [vmem:[%s452 + $0x110] sm:$0xff]
      %v2498 = vld [vmem:[%s452 + $0x118] sm:$0xff]
      %v2499 = vld [vmem:[%s452 + $0x120] sm:$0xff]
      %v2500 = vld [vmem:[%s452 + $0x128] sm:$0xff]
      %v2501 = vld [vmem:[%s452 + $0x130] sm:$0xff]
      %v2502 = vld [vmem:[%s452 + $0x138] sm:$0xff]
      %v2503 = vld [vmem:[%s452 + $0x140] sm:$0xff]
      %v2504 = vld [vmem:[%s452 + $0x148] sm:$0xff]
      %v2505 = vld [vmem:[%s452 + $0x150] sm:$0xff]
      %v2506 = vld [vmem:[%s452 + $0x158] sm:$0xff]
      %v2507 = vld [vmem:[%s452 + $0x160] sm:$0xff]
      %v2508 = vld [vmem:[%s452 + $0x168] sm:$0xff]
      %v2509 = vld [vmem:[%s452 + $0x170] sm:$0xff]
      %v2510 = vld [vmem:[%s452 + $0x178] sm:$0xff]
      %v2511 = vld [vmem:[%s452 + $0x180] sm:$0xff]
      %v2512 = vld [vmem:[%s452 + $0x188] sm:$0xff]
      %v2513 = vld [vmem:[%s452 + $0x190] sm:$0xff]
      %v2514 = vld [vmem:[%s452 + $0x198] sm:$0xff]
      %v2515 = vld [vmem:[%s452 + $0x1a0] sm:$0xff]
      %v2516 = vld [vmem:[%s452 + $0x1a8] sm:$0xff]
      %v2517 = vld [vmem:[%s452 + $0x1b0] sm:$0xff]
      %v2518 = vld [vmem:[%s452 + $0x1b8] sm:$0xff]
      %v2519 = vld [vmem:[%s452 + $0x1c0] sm:$0xff]
      %v2520 = vld [vmem:[%s452 + $0x1c8] sm:$0xff]
      %v2521 = vld [vmem:[%s452 + $0x1d0] sm:$0xff]
      %v2522 = vld [vmem:[%s452 + $0x1d8] sm:$0xff]
      %v2523 = vld [vmem:[%s452 + $0x1e0] sm:$0xff]
      %v2524 = vld [vmem:[%s452 + $0x1e8] sm:$0xff]
      %v2525 = vld [vmem:[%s452 + $0x1f0] sm:$0xff]
      %v2526 = vld [vmem:[%s452 + $0x1f8] sm:$0xff]
      %v2527 = vld [vmem:[%s1] sm:$0xff]
      %v2528 = vld [vmem:[%s1 + $0x8] sm:$0xff]
      %v2529 = vld [vmem:[%s2] sm:$0x1]
      %v2531 = vlaneseq
      %v2532 = vshrl.u32 %v2531, 7
      %v2533 = vsub.s32 0, %v2532
      %v2534 = vrot.slane %v2529, %v2533
      %v2537 = vsel %vm505, %v2495, 0
      %v2540 = vsel %vm505, %v2496, 0
      %v2543 = vsel %vm505, %v2497, 0
      %v2546 = vsel %vm505, %v2498, 0
      %v2549 = vsel %vm505, %v2499, 0
      %v2552 = vsel %vm505, %v2500, 0
      %v2555 = vsel %vm505, %v2501, 0
      %v2558 = vsel %vm505, %v2502, 0
      %v2561 = vsel %vm505, %v2503, 0
      %v2564 = vsel %vm505, %v2504, 0
      %v2567 = vsel %vm505, %v2505, 0
      %v2570 = vsel %vm505, %v2506, 0
      %v2573 = vsel %vm505, %v2507, 0
      %v2576 = vsel %vm505, %v2508, 0
      %v2579 = vsel %vm505, %v2509, 0
      %v2582 = vsel %vm505, %v2510, 0
      %v2585 = vsel %vm505, %v2511, 0
      %v2588 = vsel %vm505, %v2512, 0
      %v2591 = vsel %vm505, %v2513, 0
      %v2594 = vsel %vm505, %v2514, 0
      %v2597 = vsel %vm505, %v2515, 0
      %v2600 = vsel %vm505, %v2516, 0
      %v2603 = vsel %vm505, %v2517, 0
      %v2606 = vsel %vm505, %v2518, 0
      %v2609 = vsel %vm505, %v2519, 0
      %v2612 = vsel %vm505, %v2520, 0
      %v2615 = vsel %vm505, %v2521, 0
      %v2618 = vsel %vm505, %v2522, 0
      %v2621 = vsel %vm505, %v2523, 0
      %v2624 = vsel %vm505, %v2524, 0
      %v2627 = vsel %vm505, %v2525, 0
      %v2630 = vsel %vm505, %v2526, 0
      %2632 = vmatprep.subr.mxu0 0.0
      %2633 = vmatpush1.msra.mxu0 %v2527
      %2634 = vmatprep.subr.mxu0 0.0
      %2635 = vmatpush1.msra.mxu0 %v2528
      %2636 = vmatprep.subr.mxu0 0.0
      %2637 = vmatpush1.msra.mxu0 0.0
      %2638 = vmatprep.subr.mxu0 0.0
      %2639 = vmatpush1.msra.mxu0 0.0
      %2640 = vmatprep.subr.mxu0 0.0
      %2641 = vmatpush1.msra.mxu0 0.0
      %2642 = vmatprep.subr.mxu0 0.0
      %2643 = vmatpush1.msra.mxu0 0.0
      %2644 = vmatprep.subr.mxu0 0.0
      %2645 = vmatpush1.msra.mxu0 0.0
      %2646 = vmatprep.subr.mxu0 0.0
      %2647 = vmatpush1.msra.mxu0 0.0
      %2648 = vmatprep.subr.mxu0 0.0
      %2649 = vmatpush1.msra.mxu0 0.0
      %2650 = vmatprep.subr.mxu0 0.0
      %2651 = vmatpush1.msra.mxu0 0.0
      %2652 = vmatprep.subr.mxu0 0.0
      %2653 = vmatpush1.msra.mxu0 0.0
      %2654 = vmatprep.subr.mxu0 0.0
      %2655 = vmatpush1.msra.mxu0 0.0
      %2656 = vmatprep.subr.mxu0 0.0
      %2657 = vmatpush1.msra.mxu0 0.0
      %2658 = vmatprep.subr.mxu0 0.0
      %2659 = vmatpush1.msra.mxu0 0.0
      %2660 = vmatprep.subr.mxu0 0.0
      %2661 = vmatpush1.msra.mxu0 0.0
      %2662 = vmatprep.subr.mxu0 0.0
      %2663 = vmatpush1.msra.mxu0 0.0
      %2664 = vmatprep.subr.mxu0 0.0
      %2665 = vmatpush1.msra.mxu0 0.0
      %2666 = vmatprep.subr.mxu0 0.0
      %2667 = vmatpush1.msra.mxu0 0.0
      %2668 = vmatprep.subr.mxu0 0.0
      %2669 = vmatpush1.msra.mxu0 0.0
      %2670 = vmatprep.subr.mxu0 0.0
      %2671 = vmatpush1.msra.mxu0 0.0
      %2672 = vmatprep.subr.mxu0 0.0
      %2673 = vmatpush1.msra.mxu0 0.0
      %2674 = vmatprep.subr.mxu0 0.0
      %2675 = vmatpush1.msra.mxu0 0.0
      %2676 = vmatprep.subr.mxu0 0.0
      %2677 = vmatpush1.msra.mxu0 0.0
      %2678 = vmatprep.subr.mxu0 0.0
      %2679 = vmatpush1.msra.mxu0 0.0
      %2680 = vmatprep.subr.mxu0 0.0
      %2681 = vmatpush1.msra.mxu0 0.0
      %2682 = vmatprep.subr.mxu0 0.0
      %2683 = vmatpush1.msra.mxu0 0.0
      %2684 = vmatprep.subr.mxu0 0.0
      %2685 = vmatpush1.msra.mxu0 0.0
      %2686 = vmatprep.subr.mxu0 0.0
      %2687 = vmatpush1.msra.mxu0 0.0
      %2688 = vmatprep.subr.mxu0 0.0
      %2689 = vmatpush1.msra.mxu0 0.0
      %2690 = vmatprep.subr.mxu0 0.0
      %2691 = vmatpush1.msra.mxu0 0.0
      %2692 = vmatprep.subr.mxu0 0.0
      %2693 = vmatpush1.msra.mxu0 0.0
      %2694 = vmatprep.subr.mxu0 0.0
      %2695 = vmatpush1.msra.mxu0 0.0
      %2696 = vmatprep.mubr.f32.mxu0 0.0
      %2697 = vmatmul.mubr.f32.gmra.mrb[0].mxu0 %v2537
      %v2698 = vpop.f32.mrb[0].mxu0
      %v2699 = vadd.f32 %v2534, %v2698
      %v2700 = vpop.f32.mrb[0].mxu0
      %2701 = vmatprep.mubr.f32.mxu0 0.0
      %2702 = vmatmul.mubr.f32.gmra.mrb[0].mxu0 %v2540
      %v2703 = vpop.f32.mrb[0].mxu0
      %v2704 = vadd.f32 %v2534, %v2703
      %v2705 = vpop.f32.mrb[0].mxu0
      %2706 = vmatprep.mubr.f32.mxu0 0.0
      %2707 = vmatmul.mubr.f32.gmra.mrb[0].mxu0 %v2543
      %v2708 = vpop.f32.mrb[0].mxu0
      %v2709 = vadd.f32 %v2534, %v2708
      %v2710 = vpop.f32.mrb[0].mxu0
      %2711 = vmatprep.mubr.f32.mxu0 0.0
      %2712 = vmatmul.mubr.f32.gmra.mrb[0].mxu0 %v2546
      %v2713 = vpop.f32.mrb[0].mxu0
      %v2714 = vadd.f32 %v2534, %v2713
      %v2715 = vpop.f32.mrb[0].mxu0
      %2716 = vmatprep.mubr.f32.mxu0 0.0
      %2717 = vmatmul.mubr.f32.gmra.mrb[0].mxu0 %v2549
      %v2718 = vpop.f32.mrb[0].mxu0
      %v2719 = vadd.f32 %v2534, %v2718
      %v2720 = vpop.f32.mrb[0].mxu0
      %2721 = vmatprep.mubr.f32.mxu0 0.0
      %2722 = vmatmul.mubr.f32.gmra.mrb[0].mxu0 %v2552
      %v2723 = vpop.f32.mrb[0].mxu0
      %v2724 = vadd.f32 %v2534, %v2723
      %v2725 = vpop.f32.mrb[0].mxu0
      %2726 = vmatprep.mubr.f32.mxu0 0.0
      %2727 = vmatmul.mubr.f32.gmra.mrb[0].mxu0 %v2555
      %v2728 = vpop.f32.mrb[0].mxu0
      %v2729 = vadd.f32 %v2534, %v2728
      %v2730 = vpop.f32.mrb[0].mxu0
      %2731 = vmatprep.mubr.f32.mxu0 0.0
      %2732 = vmatmul.mubr.f32.gmra.mrb[0].mxu0 %v2558
      %v2733 = vpop.f32.mrb[0].mxu0
      %v2734 = vadd.f32 %v2534, %v2733
      %v2735 = vpop.f32.mrb[0].mxu0
      %2736 = vmatprep.mubr.f32.mxu0 0.0
      %2737 = vmatmul.mubr.f32.gmra.mrb[0].mxu0 %v2561
      %v2738 = vpop.f32.mrb[0].mxu0
      %v2739 = vadd.f32 %v2534, %v2738
      %v2740 = vpop.f32.mrb[0].mxu0
      %2741 = vmatprep.mubr.f32.mxu0 0.0
      %2742 = vmatmul.mubr.f32.gmra.mrb[0].mxu0 %v2564
      %v2743 = vpop.f32.mrb[0].mxu0
      %v2744 = vadd.f32 %v2534, %v2743
      %v2745 = vpop.f32.mrb[0].mxu0
      %2746 = vmatprep.mubr.f32.mxu0 0.0
      %2747 = vmatmul.mubr.f32.gmra.mrb[0].mxu0 %v2567
      %v2748 = vpop.f32.mrb[0].mxu0
      %v2749 = vadd.f32 %v2534, %v2748
      %v2750 = vpop.f32.mrb[0].mxu0
      %2751 = vmatprep.mubr.f32.mxu0 0.0
      %2752 = vmatmul.mubr.f32.gmra.mrb[0].mxu0 %v2570
      %v2753 = vpop.f32.mrb[0].mxu0
      %v2754 = vadd.f32 %v2534, %v2753
      %v2755 = vpop.f32.mrb[0].mxu0
      %2756 = vmatprep.mubr.f32.mxu0 0.0
      %2757 = vmatmul.mubr.f32.gmra.mrb[0].mxu0 %v2573
      %v2758 = vpop.f32.mrb[0].mxu0
      %v2759 = vadd.f32 %v2534, %v2758
      %v2760 = vpop.f32.mrb[0].mxu0
      %2761 = vmatprep.mubr.f32.mxu0 0.0
      %2762 = vmatmul.mubr.f32.gmra.mrb[0].mxu0 %v2576
      %v2763 = vpop.f32.mrb[0].mxu0
      %v2764 = vadd.f32 %v2534, %v2763
      %v2765 = vpop.f32.mrb[0].mxu0
      %2766 = vmatprep.mubr.f32.mxu0 0.0
      %2767 = vmatmul.mubr.f32.gmra.mrb[0].mxu0 %v2579
      %v2768 = vpop.f32.mrb[0].mxu0
      %v2769 = vadd.f32 %v2534, %v2768
      %v2770 = vpop.f32.mrb[0].mxu0
      %2771 = vmatprep.mubr.f32.mxu0 0.0
      %2772 = vmatmul.mubr.f32.gmra.mrb[0].mxu0 %v2582
      %v2773 = vpop.f32.mrb[0].mxu0
      %v2774 = vadd.f32 %v2534, %v2773
      %v2775 = vpop.f32.mrb[0].mxu0
      %2776 = vmatprep.mubr.f32.mxu0 0.0
      %2777 = vmatmul.mubr.f32.gmra.mrb[0].mxu0 %v2585
      %v2778 = vpop.f32.mrb[0].mxu0
      %v2779 = vadd.f32 %v2534, %v2778
      %v2780 = vpop.f32.mrb[0].mxu0
      %2781 = vmatprep.mubr.f32.mxu0 0.0
      %2782 = vmatmul.mubr.f32.gmra.mrb[0].mxu0 %v2588
      %v2783 = vpop.f32.mrb[0].mxu0
      %v2784 = vadd.f32 %v2534, %v2783
      %v2785 = vpop.f32.mrb[0].mxu0
      %2786 = vmatprep.mubr.f32.mxu0 0.0
      %2787 = vmatmul.mubr.f32.gmra.mrb[0].mxu0 %v2591
      %v2788 = vpop.f32.mrb[0].mxu0
      %v2789 = vadd.f32 %v2534, %v2788
      %v2790 = vpop.f32.mrb[0].mxu0
      %2791 = vmatprep.mubr.f32.mxu0 0.0
      %2792 = vmatmul.mubr.f32.gmra.mrb[0].mxu0 %v2594
      %v2793 = vpop.f32.mrb[0].mxu0
      %v2794 = vadd.f32 %v2534, %v2793
      %v2795 = vpop.f32.mrb[0].mxu0
      %2796 = vmatprep.mubr.f32.mxu0 0.0
      %2797 = vmatmul.mubr.f32.gmra.mrb[0].mxu0 %v2597
      %v2798 = vpop.f32.mrb[0].mxu0
      %v2799 = vadd.f32 %v2534, %v2798
      %v2800 = vpop.f32.mrb[0].mxu0
      %2801 = vmatprep.mubr.f32.mxu0 0.0
      %2802 = vmatmul.mubr.f32.gmra.mrb[0].mxu0 %v2600
      %v2803 = vpop.f32.mrb[0].mxu0
      %v2804 = vadd.f32 %v2534, %v2803
      %v2805 = vpop.f32.mrb[0].mxu0
      %2806 = vmatprep.mubr.f32.mxu0 0.0
      %2807 = vmatmul.mubr.f32.gmra.mrb[0].mxu0 %v2603
      %v2808 = vpop.f32.mrb[0].mxu0
      %v2809 = vadd.f32 %v2534, %v2808
      %v2810 = vpop.f32.mrb[0].mxu0
      %2811 = vmatprep.mubr.f32.mxu0 0.0
      %2812 = vmatmul.mubr.f32.gmra.mrb[0].mxu0 %v2606
      %v2813 = vpop.f32.mrb[0].mxu0
      %v2814 = vadd.f32 %v2534, %v2813
      %v2815 = vpop.f32.mrb[0].mxu0
      %2816 = vmatprep.mubr.f32.mxu0 0.0
      %2817 = vmatmul.mubr.f32.gmra.mrb[0].mxu0 %v2609
      %v2818 = vpop.f32.mrb[0].mxu0
      %v2819 = vadd.f32 %v2534, %v2818
      %v2820 = vpop.f32.mrb[0].mxu0
      %2821 = vmatprep.mubr.f32.mxu0 0.0
      %2822 = vmatmul.mubr.f32.gmra.mrb[0].mxu0 %v2612
      %v2823 = vpop.f32.mrb[0].mxu0
      %v2824 = vadd.f32 %v2534, %v2823
      %v2825 = vpop.f32.mrb[0].mxu0
      %2826 = vmatprep.mubr.f32.mxu0 0.0
      %2827 = vmatmul.mubr.f32.gmra.mrb[0].mxu0 %v2615
      %v2828 = vpop.f32.mrb[0].mxu0
      %v2829 = vadd.f32 %v2534, %v2828
      %v2830 = vpop.f32.mrb[0].mxu0
      %2831 = vmatprep.mubr.f32.mxu0 0.0
      %2832 = vmatmul.mubr.f32.gmra.mrb[0].mxu0 %v2618
      %v2833 = vpop.f32.mrb[0].mxu0
      %v2834 = vadd.f32 %v2534, %v2833
      %v2835 = vpop.f32.mrb[0].mxu0
      %2836 = vmatprep.mubr.f32.mxu0 0.0
      %2837 = vmatmul.mubr.f32.gmra.mrb[0].mxu0 %v2621
      %v2838 = vpop.f32.mrb[0].mxu0
      %v2839 = vadd.f32 %v2534, %v2838
      %v2840 = vpop.f32.mrb[0].mxu0
      %2841 = vmatprep.mubr.f32.mxu0 0.0
      %2842 = vmatmul.mubr.f32.gmra.mrb[0].mxu0 %v2624
      %v2843 = vpop.f32.mrb[0].mxu0
      %v2844 = vadd.f32 %v2534, %v2843
      %v2845 = vpop.f32.mrb[0].mxu0
      %2846 = vmatprep.mubr.f32.mxu0 0.0
      %2847 = vmatmul.mubr.f32.gmra.mrb[0].mxu0 %v2627
      %v2848 = vpop.f32.mrb[0].mxu0
      %v2849 = vadd.f32 %v2534, %v2848
      %v2850 = vpop.f32.mrb[0].mxu0
      %2851 = vmatprep.mubr.f32.mxu0 0.0
      %2852 = vmatmul.mubr.f32.gmra.mrb[0].mxu0 %v2630
      %v2853 = vpop.f32.mrb[0].mxu0
      %v2854 = vadd.f32 %v2534, %v2853
      %v2855 = vpop.f32.mrb[0].mxu0
      %2856 = vdwg.mxu0
      %v2857 = vmax.f32 %v2699, 0.0
      %v2858 = vmax.f32 %v2704, 0.0
      %v2859 = vmax.f32 %v2709, 0.0
      %v2860 = vmax.f32 %v2714, 0.0
      %v2861 = vmax.f32 %v2719, 0.0
      %v2862 = vmax.f32 %v2724, 0.0
      %v2863 = vmax.f32 %v2729, 0.0
      %v2864 = vmax.f32 %v2734, 0.0
      %v2865 = vmax.f32 %v2739, 0.0
      %v2866 = vmax.f32 %v2744, 0.0
      %v2867 = vmax.f32 %v2749, 0.0
      %v2868 = vmax.f32 %v2754, 0.0
      %v2869 = vmax.f32 %v2759, 0.0
      %v2870 = vmax.f32 %v2764, 0.0
      %v2871 = vmax.f32 %v2769, 0.0
      %v2872 = vmax.f32 %v2774, 0.0
      %v2873 = vmax.f32 %v2779, 0.0
      %v2874 = vmax.f32 %v2784, 0.0
      %v2875 = vmax.f32 %v2789, 0.0
      %v2876 = vmax.f32 %v2794, 0.0
      %v2877 = vmax.f32 %v2799, 0.0
      %v2878 = vmax.f32 %v2804, 0.0
      %v2879 = vmax.f32 %v2809, 0.0
      %v2880 = vmax.f32 %v2814, 0.0
      %v2881 = vmax.f32 %v2819, 0.0
      %v2882 = vmax.f32 %v2824, 0.0
      %v2883 = vmax.f32 %v2829, 0.0
      %v2884 = vmax.f32 %v2834, 0.0
      %v2885 = vmax.f32 %v2839, 0.0
      %v2886 = vmax.f32 %v2844, 0.0
      %v2887 = vmax.f32 %v2849, 0.0
      %v2888 = vmax.f32 %v2854, 0.0
      %v2889 = vld [vmem:[%s3] sm:$0xff]
      %v2890 = vld [vmem:[%s3 + $0x8] sm:$0xff]
      %v2891 = vld [vmem:[%s3 + $0x10] sm:$0xff]
      %v2892 = vld [vmem:[%s3 + $0x18] sm:$0xff]
      %v2893 = vld [vmem:[%s4] sm:$0x1]
      %v2895 = vlaneseq
      %v2896 = vshrl.u32 %v2895, 7
      %v2897 = vsub.s32 0, %v2896
      %v2898 = vrot.slane %v2893, %v2897
      %v2901 = vsel %vm870, %v2857, 0
      %v2904 = vsel %vm870, %v2858, 0
      %v2907 = vsel %vm870, %v2859, 0
      %v2910 = vsel %vm870, %v2860, 0
      %v2913 = vsel %vm870, %v2861, 0
      %v2916 = vsel %vm870, %v2862, 0
      %v2919 = vsel %vm870, %v2863, 0
      %v2922 = vsel %vm870, %v2864, 0
      %v2925 = vsel %vm870, %v2865, 0
      %v2928 = vsel %vm870, %v2866, 0
      %v2931 = vsel %vm870, %v2867, 0
      %v2934 = vsel %vm870, %v2868, 0
      %v2937 = vsel %vm870, %v2869, 0
      %v2940 = vsel %vm870, %v2870, 0
      %v2943 = vsel %vm870, %v2871, 0
      %v2946 = vsel %vm870, %v2872, 0
      %v2949 = vsel %vm870, %v2873, 0
      %v2952 = vsel %vm870, %v2874, 0
      %v2955 = vsel %vm870, %v2875, 0
      %v2958 = vsel %vm870, %v2876, 0
      %v2961 = vsel %vm870, %v2877, 0
      %v2964 = vsel %vm870, %v2878, 0
      %v2967 = vsel %vm870, %v2879, 0
      %v2970 = vsel %vm870, %v2880, 0
      %v2973 = vsel %vm870, %v2881, 0
      %v2976 = vsel %vm870, %v2882, 0
      %v2979 = vsel %vm870, %v2883, 0
      %v2982 = vsel %vm870, %v2884, 0
      %v2985 = vsel %vm870, %v2885, 0
      %v2988 = vsel %vm870, %v2886, 0
      %v2991 = vsel %vm870, %v2887, 0
      %v2994 = vsel %vm870, %v2888, 0
      %2996 = vmatprep.subr.mxu0 0.0
      %2997 = vmatpush1.msra.mxu0 %v2889
      %2998 = vmatprep.subr.mxu0 0.0
      %2999 = vmatpush1.msra.mxu0 %v2890
      %3000 = vmatprep.subr.mxu0 0.0
      %3001 = vmatpush1.msra.mxu0 %v2891
      %3002 = vmatprep.subr.mxu0 0.0
      %3003 = vmatpush1.msra.mxu0 %v2892
      %3004 = vmatprep.subr.mxu0 0.0
      %3005 = vmatpush1.msra.mxu0 0.0
      %3006 = vmatprep.subr.mxu0 0.0
      %3007 = vmatpush1.msra.mxu0 0.0
      %3008 = vmatprep.subr.mxu0 0.0
      %3009 = vmatpush1.msra.mxu0 0.0
      %3010 = vmatprep.subr.mxu0 0.0
      %3011 = vmatpush1.msra.mxu0 0.0
      %3012 = vmatprep.subr.mxu0 0.0
      %3013 = vmatpush1.msra.mxu0 0.0
      %3014 = vmatprep.subr.mxu0 0.0
      %3015 = vmatpush1.msra.mxu0 0.0
      %3016 = vmatprep.subr.mxu0 0.0
      %3017 = vmatpush1.msra.mxu0 0.0
      %3018 = vmatprep.subr.mxu0 0.0
      %3019 = vmatpush1.msra.mxu0 0.0
      %3020 = vmatprep.subr.mxu0 0.0
      %3021 = vmatpush1.msra.mxu0 0.0
      %3022 = vmatprep.subr.mxu0 0.0
      %3023 = vmatpush1.msra.mxu0 0.0
      %3024 = vmatprep.subr.mxu0 0.0
      %3025 = vmatpush1.msra.mxu0 0.0
      %3026 = vmatprep.subr.mxu0 0.0
      %3027 = vmatpush1.msra.mxu0 0.0
      %3028 = vmatprep.subr.mxu0 0.0
      %3029 = vmatpush1.msra.mxu0 0.0
      %3030 = vmatprep.subr.mxu0 0.0
      %3031 = vmatpush1.msra.mxu0 0.0
      %3032 = vmatprep.subr.mxu0 0.0
      %3033 = vmatpush1.msra.mxu0 0.0
      %3034 = vmatprep.subr.mxu0 0.0
      %3035 = vmatpush1.msra.mxu0 0.0
      %3036 = vmatprep.subr.mxu0 0.0
      %3037 = vmatpush1.msra.mxu0 0.0
      %3038 = vmatprep.subr.mxu0 0.0
      %3039 = vmatpush1.msra.mxu0 0.0
      %3040 = vmatprep.subr.mxu0 0.0
      %3041 = vmatpush1.msra.mxu0 0.0
      %3042 = vmatprep.subr.mxu0 0.0
      %3043 = vmatpush1.msra.mxu0 0.0
      %3044 = vmatprep.subr.mxu0 0.0
      %3045 = vmatpush1.msra.mxu0 0.0
      %3046 = vmatprep.subr.mxu0 0.0
      %3047 = vmatpush1.msra.mxu0 0.0
      %3048 = vmatprep.subr.mxu0 0.0
      %3049 = vmatpush1.msra.mxu0 0.0
      %3050 = vmatprep.subr.mxu0 0.0
      %3051 = vmatpush1.msra.mxu0 0.0
      %3052 = vmatprep.subr.mxu0 0.0
      %3053 = vmatpush1.msra.mxu0 0.0
      %3054 = vmatprep.subr.mxu0 0.0
      %3055 = vmatpush1.msra.mxu0 0.0
      %3056 = vmatprep.subr.mxu0 0.0
      %3057 = vmatpush1.msra.mxu0 0.0
      %3058 = vmatprep.subr.mxu0 0.0
      %3059 = vmatpush1.msra.mxu0 0.0
      %3060 = vmatprep.mubr.f32.mxu0 0.0
      %3061 = vmatmul.mubr.f32.gmra.mrb[0].mxu0 %v2901
      %v3062 = vpop.f32.mrb[0].mxu0
      %v3063 = vadd.f32 %v2898, %v3062
      %v3064 = vpop.f32.mrb[0].mxu0
      %3065 = vmatprep.mubr.f32.mxu0 0.0
      %3066 = vmatmul.mubr.f32.gmra.mrb[0].mxu0 %v2904
      %v3067 = vpop.f32.mrb[0].mxu0
      %v3068 = vadd.f32 %v2898, %v3067
      %v3069 = vpop.f32.mrb[0].mxu0
      %3070 = vmatprep.mubr.f32.mxu0 0.0
      %3071 = vmatmul.mubr.f32.gmra.mrb[0].mxu0 %v2907
      %v3072 = vpop.f32.mrb[0].mxu0
      %v3073 = vadd.f32 %v2898, %v3072
      %v3074 = vpop.f32.mrb[0].mxu0
      %3075 = vmatprep.mubr.f32.mxu0 0.0
      %3076 = vmatmul.mubr.f32.gmra.mrb[0].mxu0 %v2910
      %v3077 = vpop.f32.mrb[0].mxu0
      %v3078 = vadd.f32 %v2898, %v3077
      %v3079 = vpop.f32.mrb[0].mxu0
      %3080 = vmatprep.mubr.f32.mxu0 0.0
      %3081 = vmatmul.mubr.f32.gmra.mrb[0].mxu0 %v2913
      %v3082 = vpop.f32.mrb[0].mxu0
      %v3083 = vadd.f32 %v2898, %v3082
      %v3084 = vpop.f32.mrb[0].mxu0
      %3085 = vmatprep.mubr.f32.mxu0 0.0
      %3086 = vmatmul.mubr.f32.gmra.mrb[0].mxu0 %v2916
      %v3087 = vpop.f32.mrb[0].mxu0
      %v3088 = vadd.f32 %v2898, %v3087
      %v3089 = vpop.f32.mrb[0].mxu0
      %3090 = vmatprep.mubr.f32.mxu0 0.0
      %3091 = vmatmul.mubr.f32.gmra.mrb[0].mxu0 %v2919
      %v3092 = vpop.f32.mrb[0].mxu0
      %v3093 = vadd.f32 %v2898, %v3092
      %v3094 = vpop.f32.mrb[0].mxu0
      %3095 = vmatprep.mubr.f32.mxu0 0.0
      %3096 = vmatmul.mubr.f32.gmra.mrb[0].mxu0 %v2922
      %v3097 = vpop.f32.mrb[0].mxu0
      %v3098 = vadd.f32 %v2898, %v3097
      %v3099 = vpop.f32.mrb[0].mxu0
      %3100 = vmatprep.mubr.f32.mxu0 0.0
      %3101 = vmatmul.mubr.f32.gmra.mrb[0].mxu0 %v2925
      %v3102 = vpop.f32.mrb[0].mxu0
      %v3103 = vadd.f32 %v2898, %v3102
      %v3104 = vpop.f32.mrb[0].mxu0
      %3105 = vmatprep.mubr.f32.mxu0 0.0
      %3106 = vmatmul.mubr.f32.gmra.mrb[0].mxu0 %v2928
      %v3107 = vpop.f32.mrb[0].mxu0
      %v3108 = vadd.f32 %v2898, %v3107
      %v3109 = vpop.f32.mrb[0].mxu0
      %3110 = vmatprep.mubr.f32.mxu0 0.0
      %3111 = vmatmul.mubr.f32.gmra.mrb[0].mxu0 %v2931
      %v3112 = vpop.f32.mrb[0].mxu0
      %v3113 = vadd.f32 %v2898, %v3112
      %v3114 = vpop.f32.mrb[0].mxu0
      %3115 = vmatprep.mubr.f32.mxu0 0.0
      %3116 = vmatmul.mubr.f32.gmra.mrb[0].mxu0 %v2934
      %v3117 = vpop.f32.mrb[0].mxu0
      %v3118 = vadd.f32 %v2898, %v3117
      %v3119 = vpop.f32.mrb[0].mxu0
      %3120 = vmatprep.mubr.f32.mxu0 0.0
      %3121 = vmatmul.mubr.f32.gmra.mrb[0].mxu0 %v2937
      %v3122 = vpop.f32.mrb[0].mxu0
      %v3123 = vadd.f32 %v2898, %v3122
      %v3124 = vpop.f32.mrb[0].mxu0
      %3125 = vmatprep.mubr.f32.mxu0 0.0
      %3126 = vmatmul.mubr.f32.gmra.mrb[0].mxu0 %v2940
      %v3127 = vpop.f32.mrb[0].mxu0
      %v3128 = vadd.f32 %v2898, %v3127
      %v3129 = vpop.f32.mrb[0].mxu0
      %3130 = vmatprep.mubr.f32.mxu0 0.0
      %3131 = vmatmul.mubr.f32.gmra.mrb[0].mxu0 %v2943
      %v3132 = vpop.f32.mrb[0].mxu0
      %v3133 = vadd.f32 %v2898, %v3132
      %v3134 = vpop.f32.mrb[0].mxu0
      %3135 = vmatprep.mubr.f32.mxu0 0.0
      %3136 = vmatmul.mubr.f32.gmra.mrb[0].mxu0 %v2946
      %v3137 = vpop.f32.mrb[0].mxu0
      %v3138 = vadd.f32 %v2898, %v3137
      %v3139 = vpop.f32.mrb[0].mxu0
      %3140 = vmatprep.mubr.f32.mxu0 0.0
      %3141 = vmatmul.mubr.f32.gmra.mrb[0].mxu0 %v2949
      %v3142 = vpop.f32.mrb[0].mxu0
      %v3143 = vadd.f32 %v2898, %v3142
      %v3144 = vpop.f32.mrb[0].mxu0
      %3145 = vmatprep.mubr.f32.mxu0 0.0
      %3146 = vmatmul.mubr.f32.gmra.mrb[0].mxu0 %v2952
      %v3147 = vpop.f32.mrb[0].mxu0
      %v3148 = vadd.f32 %v2898, %v3147
      %v3149 = vpop.f32.mrb[0].mxu0
      %3150 = vmatprep.mubr.f32.mxu0 0.0
      %3151 = vmatmul.mubr.f32.gmra.mrb[0].mxu0 %v2955
      %v3152 = vpop.f32.mrb[0].mxu0
      %v3153 = vadd.f32 %v2898, %v3152
      %v3154 = vpop.f32.mrb[0].mxu0
      %3155 = vmatprep.mubr.f32.mxu0 0.0
      %3156 = vmatmul.mubr.f32.gmra.mrb[0].mxu0 %v2958
      %v3157 = vpop.f32.mrb[0].mxu0
      %v3158 = vadd.f32 %v2898, %v3157
      %v3159 = vpop.f32.mrb[0].mxu0
      %3160 = vmatprep.mubr.f32.mxu0 0.0
      %3161 = vmatmul.mubr.f32.gmra.mrb[0].mxu0 %v2961
      %v3162 = vpop.f32.mrb[0].mxu0
      %v3163 = vadd.f32 %v2898, %v3162
      %v3164 = vpop.f32.mrb[0].mxu0
      %3165 = vmatprep.mubr.f32.mxu0 0.0
      %3166 = vmatmul.mubr.f32.gmra.mrb[0].mxu0 %v2964
      %v3167 = vpop.f32.mrb[0].mxu0
      %v3168 = vadd.f32 %v2898, %v3167
      %v3169 = vpop.f32.mrb[0].mxu0
      %3170 = vmatprep.mubr.f32.mxu0 0.0
      %3171 = vmatmul.mubr.f32.gmra.mrb[0].mxu0 %v2967
      %v3172 = vpop.f32.mrb[0].mxu0
      %v3173 = vadd.f32 %v2898, %v3172
      %v3174 = vpop.f32.mrb[0].mxu0
      %3175 = vmatprep.mubr.f32.mxu0 0.0
      %3176 = vmatmul.mubr.f32.gmra.mrb[0].mxu0 %v2970
      %v3177 = vpop.f32.mrb[0].mxu0
      %v3178 = vadd.f32 %v2898, %v3177
      %v3179 = vpop.f32.mrb[0].mxu0
      %3180 = vmatprep.mubr.f32.mxu0 0.0
      %3181 = vmatmul.mubr.f32.gmra.mrb[0].mxu0 %v2973
      %v3182 = vpop.f32.mrb[0].mxu0
      %v3183 = vadd.f32 %v2898, %v3182
      %v3184 = vpop.f32.mrb[0].mxu0
      %3185 = vmatprep.mubr.f32.mxu0 0.0
      %3186 = vmatmul.mubr.f32.gmra.mrb[0].mxu0 %v2976
      %v3187 = vpop.f32.mrb[0].mxu0
      %v3188 = vadd.f32 %v2898, %v3187
      %v3189 = vpop.f32.mrb[0].mxu0
      %3190 = vmatprep.mubr.f32.mxu0 0.0
      %3191 = vmatmul.mubr.f32.gmra.mrb[0].mxu0 %v2979
      %v3192 = vpop.f32.mrb[0].mxu0
      %v3193 = vadd.f32 %v2898, %v3192
      %v3194 = vpop.f32.mrb[0].mxu0
      %3195 = vmatprep.mubr.f32.mxu0 0.0
      %3196 = vmatmul.mubr.f32.gmra.mrb[0].mxu0 %v2982
      %v3197 = vpop.f32.mrb[0].mxu0
      %v3198 = vadd.f32 %v2898, %v3197
      %v3199 = vpop.f32.mrb[0].mxu0
      %3200 = vmatprep.mubr.f32.mxu0 0.0
      %3201 = vmatmul.mubr.f32.gmra.mrb[0].mxu0 %v2985
      %v3202 = vpop.f32.mrb[0].mxu0
      %v3203 = vadd.f32 %v2898, %v3202
      %v3204 = vpop.f32.mrb[0].mxu0
      %3205 = vmatprep.mubr.f32.mxu0 0.0
      %3206 = vmatmul.mubr.f32.gmra.mrb[0].mxu0 %v2988
      %v3207 = vpop.f32.mrb[0].mxu0
      %v3208 = vadd.f32 %v2898, %v3207
      %v3209 = vpop.f32.mrb[0].mxu0
      %3210 = vmatprep.mubr.f32.mxu0 0.0
      %3211 = vmatmul.mubr.f32.gmra.mrb[0].mxu0 %v2991
      %v3212 = vpop.f32.mrb[0].mxu0
      %v3213 = vadd.f32 %v2898, %v3212
      %v3214 = vpop.f32.mrb[0].mxu0
      %3215 = vmatprep.mubr.f32.mxu0 0.0
      %3216 = vmatmul.mubr.f32.gmra.mrb[0].mxu0 %v2994
      %v3217 = vpop.f32.mrb[0].mxu0
      %v3218 = vadd.f32 %v2898, %v3217
      %v3219 = vpop.f32.mrb[0].mxu0
      %3220 = vdwg.mxu0
      %v3221 = vmax.f32 %v3063, 0.0
      %v3222 = vmax.f32 %v3068, 0.0
      %v3223 = vmax.f32 %v3073, 0.0
      %v3224 = vmax.f32 %v3078, 0.0
      %v3225 = vmax.f32 %v3083, 0.0
      %v3226 = vmax.f32 %v3088, 0.0
      %v3227 = vmax.f32 %v3093, 0.0
      %v3228 = vmax.f32 %v3098, 0.0
      %v3229 = vmax.f32 %v3103, 0.0
      %v3230 = vmax.f32 %v3108, 0.0
      %v3231 = vmax.f32 %v3113, 0.0
      %v3232 = vmax.f32 %v3118, 0.0
      %v3233 = vmax.f32 %v3123, 0.0
      %v3234 = vmax.f32 %v3128, 0.0
      %v3235 = vmax.f32 %v3133, 0.0
      %v3236 = vmax.f32 %v3138, 0.0
      %v3237 = vmax.f32 %v3143, 0.0
      %v3238 = vmax.f32 %v3148, 0.0
      %v3239 = vmax.f32 %v3153, 0.0
      %v3240 = vmax.f32 %v3158, 0.0
      %v3241 = vmax.f32 %v3163, 0.0
      %v3242 = vmax.f32 %v3168, 0.0
      %v3243 = vmax.f32 %v3173, 0.0
      %v3244 = vmax.f32 %v3178, 0.0
      %v3245 = vmax.f32 %v3183, 0.0
      %v3246 = vmax.f32 %v3188, 0.0
      %v3247 = vmax.f32 %v3193, 0.0
      %v3248 = vmax.f32 %v3198, 0.0
      %v3249 = vmax.f32 %v3203, 0.0
      %v3250 = vmax.f32 %v3208, 0.0
      %v3251 = vmax.f32 %v3213, 0.0
      %v3252 = vmax.f32 %v3218, 0.0
      %v3253 = vld [vmem:[%s5] sm:$0xff]
      %v3254 = vld [vmem:[%s5 + $0x8] sm:$0xff]
      %v3255 = vld [vmem:[%s5 + $0x10] sm:$0xff]
      %v3256 = vld [vmem:[%s5 + $0x18] sm:$0xff]
      %v3257 = vld [vmem:[%s6] sm:$0x1]
      %v3259 = vlaneseq
      %v3260 = vshrl.u32 %v3259, 7
      %v3261 = vsub.s32 0, %v3260
      %v3262 = vrot.slane %v3257, %v3261
      %v3265 = vsel %vm870, %v3221, 0
      %v3268 = vsel %vm870, %v3222, 0
      %v3271 = vsel %vm870, %v3223, 0
      %v3274 = vsel %vm870, %v3224, 0
      %v3277 = vsel %vm870, %v3225, 0
      %v3280 = vsel %vm870, %v3226, 0
      %v3283 = vsel %vm870, %v3227, 0
      %v3286 = vsel %vm870, %v3228, 0
      %v3289 = vsel %vm870, %v3229, 0
      %v3292 = vsel %vm870, %v3230, 0
      %v3295 = vsel %vm870, %v3231, 0
      %v3298 = vsel %vm870, %v3232, 0
      %v3301 = vsel %vm870, %v3233, 0
      %v3304 = vsel %vm870, %v3234, 0
      %v3307 = vsel %vm870, %v3235, 0
      %v3310 = vsel %vm870, %v3236, 0
      %v3313 = vsel %vm870, %v3237, 0
      %v3316 = vsel %vm870, %v3238, 0
      %v3319 = vsel %vm870, %v3239, 0
      %v3322 = vsel %vm870, %v3240, 0
      %v3325 = vsel %vm870, %v3241, 0
      %v3328 = vsel %vm870, %v3242, 0
      %v3331 = vsel %vm870, %v3243, 0
      %v3334 = vsel %vm870, %v3244, 0
      %v3337 = vsel %vm870, %v3245, 0
      %v3340 = vsel %vm870, %v3246, 0
      %v3343 = vsel %vm870, %v3247, 0
      %v3346 = vsel %vm870, %v3248, 0
      %v3349 = vsel %vm870, %v3249, 0
      %v3352 = vsel %vm870, %v3250, 0
      %v3355 = vsel %vm870, %v3251, 0
      %v3358 = vsel %vm870, %v3252, 0
      %3360 = vmatprep.subr.mxu0 0.0
      %3361 = vmatpush1.msra.mxu0 %v3253
      %3362 = vmatprep.subr.mxu0 0.0
      %3363 = vmatpush1.msra.mxu0 %v3254
      %3364 = vmatprep.subr.mxu0 0.0
      %3365 = vmatpush1.msra.mxu0 %v3255
      %3366 = vmatprep.subr.mxu0 0.0
      %3367 = vmatpush1.msra.mxu0 %v3256
      %3368 = vmatprep.subr.mxu0 0.0
      %3369 = vmatpush1.msra.mxu0 0.0
      %3370 = vmatprep.subr.mxu0 0.0
      %3371 = vmatpush1.msra.mxu0 0.0
      %3372 = vmatprep.subr.mxu0 0.0
      %3373 = vmatpush1.msra.mxu0 0.0
      %3374 = vmatprep.subr.mxu0 0.0
      %3375 = vmatpush1.msra.mxu0 0.0
      %3376 = vmatprep.subr.mxu0 0.0
      %3377 = vmatpush1.msra.mxu0 0.0
      %3378 = vmatprep.subr.mxu0 0.0
      %3379 = vmatpush1.msra.mxu0 0.0
      %3380 = vmatprep.subr.mxu0 0.0
      %3381 = vmatpush1.msra.mxu0 0.0
      %3382 = vmatprep.subr.mxu0 0.0
      %3383 = vmatpush1.msra.mxu0 0.0
      %3384 = vmatprep.subr.mxu0 0.0
      %3385 = vmatpush1.msra.mxu0 0.0
      %3386 = vmatprep.subr.mxu0 0.0
      %3387 = vmatpush1.msra.mxu0 0.0
      %3388 = vmatprep.subr.mxu0 0.0
      %3389 = vmatpush1.msra.mxu0 0.0
      %3390 = vmatprep.subr.mxu0 0.0
      %3391 = vmatpush1.msra.mxu0 0.0
      %3392 = vmatprep.subr.mxu0 0.0
      %3393 = vmatpush1.msra.mxu0 0.0
      %3394 = vmatprep.subr.mxu0 0.0
      %3395 = vmatpush1.msra.mxu0 0.0
      %3396 = vmatprep.subr.mxu0 0.0
      %3397 = vmatpush1.msra.mxu0 0.0
      %3398 = vmatprep.subr.mxu0 0.0
      %3399 = vmatpush1.msra.mxu0 0.0
      %3400 = vmatprep.subr.mxu0 0.0
      %3401 = vmatpush1.msra.mxu0 0.0
      %3402 = vmatprep.subr.mxu0 0.0
      %3403 = vmatpush1.msra.mxu0 0.0
      %3404 = vmatprep.subr.mxu0 0.0
      %3405 = vmatpush1.msra.mxu0 0.0
      %3406 = vmatprep.subr.mxu0 0.0
      %3407 = vmatpush1.msra.mxu0 0.0
      %3408 = vmatprep.subr.mxu0 0.0
      %3409 = vmatpush1.msra.mxu0 0.0
      %3410 = vmatprep.subr.mxu0 0.0
      %3411 = vmatpush1.msra.mxu0 0.0
      %3412 = vmatprep.subr.mxu0 0.0
      %3413 = vmatpush1.msra.mxu0 0.0
      %3414 = vmatprep.subr.mxu0 0.0
      %3415 = vmatpush1.msra.mxu0 0.0
      %3416 = vmatprep.subr.mxu0 0.0
      %3417 = vmatpush1.msra.mxu0 0.0
      %3418 = vmatprep.subr.mxu0 0.0
      %3419 = vmatpush1.msra.mxu0 0.0
      %3420 = vmatprep.subr.mxu0 0.0
      %3421 = vmatpush1.msra.mxu0 0.0
      %3422 = vmatprep.subr.mxu0 0.0
      %3423 = vmatpush1.msra.mxu0 0.0
      %3424 = vmatprep.mubr.f32.mxu0 0.0
      %3425 = vmatmul.mubr.f32.gmra.mrb[0].mxu0 %v3265
      %v3426 = vpop.f32.mrb[0].mxu0
      %v3427 = vadd.f32 %v3262, %v3426
      %v3428 = vpop.f32.mrb[0].mxu0
      %3429 = vmatprep.mubr.f32.mxu0 0.0
      %3430 = vmatmul.mubr.f32.gmra.mrb[0].mxu0 %v3268
      %v3431 = vpop.f32.mrb[0].mxu0
      %v3432 = vadd.f32 %v3262, %v3431
      %v3433 = vpop.f32.mrb[0].mxu0
      %3434 = vmatprep.mubr.f32.mxu0 0.0
      %3435 = vmatmul.mubr.f32.gmra.mrb[0].mxu0 %v3271
      %v3436 = vpop.f32.mrb[0].mxu0
      %v3437 = vadd.f32 %v3262, %v3436
      %v3438 = vpop.f32.mrb[0].mxu0
      %3439 = vmatprep.mubr.f32.mxu0 0.0
      %3440 = vmatmul.mubr.f32.gmra.mrb[0].mxu0 %v3274
      %v3441 = vpop.f32.mrb[0].mxu0
      %v3442 = vadd.f32 %v3262, %v3441
      %v3443 = vpop.f32.mrb[0].mxu0
      %3444 = vmatprep.mubr.f32.mxu0 0.0
      %3445 = vmatmul.mubr.f32.gmra.mrb[0].mxu0 %v3277
      %v3446 = vpop.f32.mrb[0].mxu0
      %v3447 = vadd.f32 %v3262, %v3446
      %v3448 = vpop.f32.mrb[0].mxu0
      %3449 = vmatprep.mubr.f32.mxu0 0.0
      %3450 = vmatmul.mubr.f32.gmra.mrb[0].mxu0 %v3280
      %v3451 = vpop.f32.mrb[0].mxu0
      %v3452 = vadd.f32 %v3262, %v3451
      %v3453 = vpop.f32.mrb[0].mxu0
      %3454 = vmatprep.mubr.f32.mxu0 0.0
      %3455 = vmatmul.mubr.f32.gmra.mrb[0].mxu0 %v3283
      %v3456 = vpop.f32.mrb[0].mxu0
      %v3457 = vadd.f32 %v3262, %v3456
      %v3458 = vpop.f32.mrb[0].mxu0
      %3459 = vmatprep.mubr.f32.mxu0 0.0
      %3460 = vmatmul.mubr.f32.gmra.mrb[0].mxu0 %v3286
      %v3461 = vpop.f32.mrb[0].mxu0
      %v3462 = vadd.f32 %v3262, %v3461
      %v3463 = vpop.f32.mrb[0].mxu0
      %3464 = vmatprep.mubr.f32.mxu0 0.0
      %3465 = vmatmul.mubr.f32.gmra.mrb[0].mxu0 %v3289
      %v3466 = vpop.f32.mrb[0].mxu0
      %v3467 = vadd.f32 %v3262, %v3466
      %v3468 = vpop.f32.mrb[0].mxu0
      %3469 = vmatprep.mubr.f32.mxu0 0.0
      %3470 = vmatmul.mubr.f32.gmra.mrb[0].mxu0 %v3292
      %v3471 = vpop.f32.mrb[0].mxu0
      %v3472 = vadd.f32 %v3262, %v3471
      %v3473 = vpop.f32.mrb[0].mxu0
      %3474 = vmatprep.mubr.f32.mxu0 0.0
      %3475 = vmatmul.mubr.f32.gmra.mrb[0].mxu0 %v3295
      %v3476 = vpop.f32.mrb[0].mxu0
      %v3477 = vadd.f32 %v3262, %v3476
      %v3478 = vpop.f32.mrb[0].mxu0
      %3479 = vmatprep.mubr.f32.mxu0 0.0
      %3480 = vmatmul.mubr.f32.gmra.mrb[0].mxu0 %v3298
      %v3481 = vpop.f32.mrb[0].mxu0
      %v3482 = vadd.f32 %v3262, %v3481
      %v3483 = vpop.f32.mrb[0].mxu0
      %3484 = vmatprep.mubr.f32.mxu0 0.0
      %3485 = vmatmul.mubr.f32.gmra.mrb[0].mxu0 %v3301
      %v3486 = vpop.f32.mrb[0].mxu0
      %v3487 = vadd.f32 %v3262, %v3486
      %v3488 = vpop.f32.mrb[0].mxu0
      %3489 = vmatprep.mubr.f32.mxu0 0.0
      %3490 = vmatmul.mubr.f32.gmra.mrb[0].mxu0 %v3304
      %v3491 = vpop.f32.mrb[0].mxu0
      %v3492 = vadd.f32 %v3262, %v3491
      %v3493 = vpop.f32.mrb[0].mxu0
      %3494 = vmatprep.mubr.f32.mxu0 0.0
      %3495 = vmatmul.mubr.f32.gmra.mrb[0].mxu0 %v3307
      %v3496 = vpop.f32.mrb[0].mxu0
      %v3497 = vadd.f32 %v3262, %v3496
      %v3498 = vpop.f32.mrb[0].mxu0
      %3499 = vmatprep.mubr.f32.mxu0 0.0
      %3500 = vmatmul.mubr.f32.gmra.mrb[0].mxu0 %v3310
      %v3501 = vpop.f32.mrb[0].mxu0
      %v3502 = vadd.f32 %v3262, %v3501
      %v3503 = vpop.f32.mrb[0].mxu0
      %3504 = vmatprep.mubr.f32.mxu0 0.0
      %3505 = vmatmul.mubr.f32.gmra.mrb[0].mxu0 %v3313
      %v3506 = vpop.f32.mrb[0].mxu0
      %v3507 = vadd.f32 %v3262, %v3506
      %v3508 = vpop.f32.mrb[0].mxu0
      %3509 = vmatprep.mubr.f32.mxu0 0.0
      %3510 = vmatmul.mubr.f32.gmra.mrb[0].mxu0 %v3316
      %v3511 = vpop.f32.mrb[0].mxu0
      %v3512 = vadd.f32 %v3262, %v3511
      %v3513 = vpop.f32.mrb[0].mxu0
      %3514 = vmatprep.mubr.f32.mxu0 0.0
      %3515 = vmatmul.mubr.f32.gmra.mrb[0].mxu0 %v3319
      %v3516 = vpop.f32.mrb[0].mxu0
      %v3517 = vadd.f32 %v3262, %v3516
      %v3518 = vpop.f32.mrb[0].mxu0
      %3519 = vmatprep.mubr.f32.mxu0 0.0
      %3520 = vmatmul.mubr.f32.gmra.mrb[0].mxu0 %v3322
      %v3521 = vpop.f32.mrb[0].mxu0
      %v3522 = vadd.f32 %v3262, %v3521
      %v3523 = vpop.f32.mrb[0].mxu0
      %3524 = vmatprep.mubr.f32.mxu0 0.0
      %3525 = vmatmul.mubr.f32.gmra.mrb[0].mxu0 %v3325
      %v3526 = vpop.f32.mrb[0].mxu0
      %v3527 = vadd.f32 %v3262, %v3526
      %v3528 = vpop.f32.mrb[0].mxu0
      %3529 = vmatprep.mubr.f32.mxu0 0.0
      %3530 = vmatmul.mubr.f32.gmra.mrb[0].mxu0 %v3328
      %v3531 = vpop.f32.mrb[0].mxu0
      %v3532 = vadd.f32 %v3262, %v3531
      %v3533 = vpop.f32.mrb[0].mxu0
      %3534 = vmatprep.mubr.f32.mxu0 0.0
      %3535 = vmatmul.mubr.f32.gmra.mrb[0].mxu0 %v3331
      %v3536 = vpop.f32.mrb[0].mxu0
      %v3537 = vadd.f32 %v3262, %v3536
      %v3538 = vpop.f32.mrb[0].mxu0
      %3539 = vmatprep.mubr.f32.mxu0 0.0
      %3540 = vmatmul.mubr.f32.gmra.mrb[0].mxu0 %v3334
      %v3541 = vpop.f32.mrb[0].mxu0
      %v3542 = vadd.f32 %v3262, %v3541
      %v3543 = vpop.f32.mrb[0].mxu0
      %3544 = vmatprep.mubr.f32.mxu0 0.0
      %3545 = vmatmul.mubr.f32.gmra.mrb[0].mxu0 %v3337
      %v3546 = vpop.f32.mrb[0].mxu0
      %v3547 = vadd.f32 %v3262, %v3546
      %v3548 = vpop.f32.mrb[0].mxu0
      %3549 = vmatprep.mubr.f32.mxu0 0.0
      %3550 = vmatmul.mubr.f32.gmra.mrb[0].mxu0 %v3340
      %v3551 = vpop.f32.mrb[0].mxu0
      %v3552 = vadd.f32 %v3262, %v3551
      %v3553 = vpop.f32.mrb[0].mxu0
      %3554 = vmatprep.mubr.f32.mxu0 0.0
      %3555 = vmatmul.mubr.f32.gmra.mrb[0].mxu0 %v3343
      %v3556 = vpop.f32.mrb[0].mxu0
      %v3557 = vadd.f32 %v3262, %v3556
      %v3558 = vpop.f32.mrb[0].mxu0
      %3559 = vmatprep.mubr.f32.mxu0 0.0
      %3560 = vmatmul.mubr.f32.gmra.mrb[0].mxu0 %v3346
      %v3561 = vpop.f32.mrb[0].mxu0
      %v3562 = vadd.f32 %v3262, %v3561
      %v3563 = vpop.f32.mrb[0].mxu0
      %3564 = vmatprep.mubr.f32.mxu0 0.0
      %3565 = vmatmul.mubr.f32.gmra.mrb[0].mxu0 %v3349
      %v3566 = vpop.f32.mrb[0].mxu0
      %v3567 = vadd.f32 %v3262, %v3566
      %v3568 = vpop.f32.mrb[0].mxu0
      %3569 = vmatprep.mubr.f32.mxu0 0.0
      %3570 = vmatmul.mubr.f32.gmra.mrb[0].mxu0 %v3352
      %v3571 = vpop.f32.mrb[0].mxu0
      %v3572 = vadd.f32 %v3262, %v3571
      %v3573 = vpop.f32.mrb[0].mxu0
      %3574 = vmatprep.mubr.f32.mxu0 0.0
      %3575 = vmatmul.mubr.f32.gmra.mrb[0].mxu0 %v3355
      %v3576 = vpop.f32.mrb[0].mxu0
      %v3577 = vadd.f32 %v3262, %v3576
      %v3578 = vpop.f32.mrb[0].mxu0
      %3579 = vmatprep.mubr.f32.mxu0 0.0
      %3580 = vmatmul.mubr.f32.gmra.mrb[0].mxu0 %v3358
      %v3581 = vpop.f32.mrb[0].mxu0
      %v3582 = vadd.f32 %v3262, %v3581
      %v3583 = vpop.f32.mrb[0].mxu0
      %3584 = vdwg.mxu0
      %v3585 = vmax.f32 %v3427, 0.0
      %v3586 = vmax.f32 %v3432, 0.0
      %v3587 = vmax.f32 %v3437, 0.0
      %v3588 = vmax.f32 %v3442, 0.0
      %v3589 = vmax.f32 %v3447, 0.0
      %v3590 = vmax.f32 %v3452, 0.0
      %v3591 = vmax.f32 %v3457, 0.0
      %v3592 = vmax.f32 %v3462, 0.0
      %v3593 = vmax.f32 %v3467, 0.0
      %v3594 = vmax.f32 %v3472, 0.0
      %v3595 = vmax.f32 %v3477, 0.0
      %v3596 = vmax.f32 %v3482, 0.0
      %v3597 = vmax.f32 %v3487, 0.0
      %v3598 = vmax.f32 %v3492, 0.0
      %v3599 = vmax.f32 %v3497, 0.0
      %v3600 = vmax.f32 %v3502, 0.0
      %v3601 = vmax.f32 %v3507, 0.0
      %v3602 = vmax.f32 %v3512, 0.0
      %v3603 = vmax.f32 %v3517, 0.0
      %v3604 = vmax.f32 %v3522, 0.0
      %v3605 = vmax.f32 %v3527, 0.0
      %v3606 = vmax.f32 %v3532, 0.0
      %v3607 = vmax.f32 %v3537, 0.0
      %v3608 = vmax.f32 %v3542, 0.0
      %v3609 = vmax.f32 %v3547, 0.0
      %v3610 = vmax.f32 %v3552, 0.0
      %v3611 = vmax.f32 %v3557, 0.0
      %v3612 = vmax.f32 %v3562, 0.0
      %v3613 = vmax.f32 %v3567, 0.0
      %v3614 = vmax.f32 %v3572, 0.0
      %v3615 = vmax.f32 %v3577, 0.0
      %v3616 = vmax.f32 %v3582, 0.0
      %v3617 = vld [vmem:[%s7] sm:$0xff]
      %v3618 = vld [vmem:[%s7 + $0x8] sm:$0xff]
      %v3619 = vld [vmem:[%s7 + $0x10] sm:$0xff]
      %v3620 = vld [vmem:[%s7 + $0x18] sm:$0xff]
      %v3621 = vld [vmem:[%s8] sm:$0x1]
      %v3623 = vlaneseq
      %v3624 = vshrl.u32 %v3623, 7
      %v3625 = vsub.s32 0, %v3624
      %v3626 = vrot.slane %v3621, %v3625
      %v3629 = vsel %vm870, %v3585, 0
      %v3632 = vsel %vm870, %v3586, 0
      %v3635 = vsel %vm870, %v3587, 0
      %v3638 = vsel %vm870, %v3588, 0
      %v3641 = vsel %vm870, %v3589, 0
      %v3644 = vsel %vm870, %v3590, 0
      %v3647 = vsel %vm870, %v3591, 0
      %v3650 = vsel %vm870, %v3592, 0
      %v3653 = vsel %vm870, %v3593, 0
      %v3656 = vsel %vm870, %v3594, 0
      %v3659 = vsel %vm870, %v3595, 0
      %v3662 = vsel %vm870, %v3596, 0
      %v3665 = vsel %vm870, %v3597, 0
      %v3668 = vsel %vm870, %v3598, 0
      %v3671 = vsel %vm870, %v3599, 0
      %v3674 = vsel %vm870, %v3600, 0
      %v3677 = vsel %vm870, %v3601, 0
      %v3680 = vsel %vm870, %v3602, 0
      %v3683 = vsel %vm870, %v3603, 0
      %v3686 = vsel %vm870, %v3604, 0
      %v3689 = vsel %vm870, %v3605, 0
      %v3692 = vsel %vm870, %v3606, 0
      %v3695 = vsel %vm870, %v3607, 0
      %v3698 = vsel %vm870, %v3608, 0
      %v3701 = vsel %vm870, %v3609, 0
      %v3704 = vsel %vm870, %v3610, 0
      %v3707 = vsel %vm870, %v3611, 0
      %v3710 = vsel %vm870, %v3612, 0
      %v3713 = vsel %vm870, %v3613, 0
      %v3716 = vsel %vm870, %v3614, 0
      %v3719 = vsel %vm870, %v3615, 0
      %v3722 = vsel %vm870, %v3616, 0
      %3724 = vmatprep.subr.mxu0 0.0
      %3725 = vmatpush1.msra.mxu0 %v3617
      %3726 = vmatprep.subr.mxu0 0.0
      %3727 = vmatpush1.msra.mxu0 %v3618
      %3728 = vmatprep.subr.mxu0 0.0
      %3729 = vmatpush1.msra.mxu0 %v3619
      %3730 = vmatprep.subr.mxu0 0.0
      %3731 = vmatpush1.msra.mxu0 %v3620
      %3732 = vmatprep.subr.mxu0 0.0
      %3733 = vmatpush1.msra.mxu0 0.0
      %3734 = vmatprep.subr.mxu0 0.0
      %3735 = vmatpush1.msra.mxu0 0.0
      %3736 = vmatprep.subr.mxu0 0.0
      %3737 = vmatpush1.msra.mxu0 0.0
      %3738 = vmatprep.subr.mxu0 0.0
      %3739 = vmatpush1.msra.mxu0 0.0
      %3740 = vmatprep.subr.mxu0 0.0
      %3741 = vmatpush1.msra.mxu0 0.0
      %3742 = vmatprep.subr.mxu0 0.0
      %3743 = vmatpush1.msra.mxu0 0.0
      %3744 = vmatprep.subr.mxu0 0.0
      %3745 = vmatpush1.msra.mxu0 0.0
      %3746 = vmatprep.subr.mxu0 0.0
      %3747 = vmatpush1.msra.mxu0 0.0
      %3748 = vmatprep.subr.mxu0 0.0
      %3749 = vmatpush1.msra.mxu0 0.0
      %3750 = vmatprep.subr.mxu0 0.0
      %3751 = vmatpush1.msra.mxu0 0.0
      %3752 = vmatprep.subr.mxu0 0.0
      %3753 = vmatpush1.msra.mxu0 0.0
      %3754 = vmatprep.subr.mxu0 0.0
      %3755 = vmatpush1.msra.mxu0 0.0
      %3756 = vmatprep.subr.mxu0 0.0
      %3757 = vmatpush1.msra.mxu0 0.0
      %3758 = vmatprep.subr.mxu0 0.0
      %3759 = vmatpush1.msra.mxu0 0.0
      %3760 = vmatprep.subr.mxu0 0.0
      %3761 = vmatpush1.msra.mxu0 0.0
      %3762 = vmatprep.subr.mxu0 0.0
      %3763 = vmatpush1.msra.mxu0 0.0
      %3764 = vmatprep.subr.mxu0 0.0
      %3765 = vmatpush1.msra.mxu0 0.0
      %3766 = vmatprep.subr.mxu0 0.0
      %3767 = vmatpush1.msra.mxu0 0.0
      %3768 = vmatprep.subr.mxu0 0.0
      %3769 = vmatpush1.msra.mxu0 0.0
      %3770 = vmatprep.subr.mxu0 0.0
      %3771 = vmatpush1.msra.mxu0 0.0
      %3772 = vmatprep.subr.mxu0 0.0
      %3773 = vmatpush1.msra.mxu0 0.0
      %3774 = vmatprep.subr.mxu0 0.0
      %3775 = vmatpush1.msra.mxu0 0.0
      %3776 = vmatprep.subr.mxu0 0.0
      %3777 = vmatpush1.msra.mxu0 0.0
      %3778 = vmatprep.subr.mxu0 0.0
      %3779 = vmatpush1.msra.mxu0 0.0
      %3780 = vmatprep.subr.mxu0 0.0
      %3781 = vmatpush1.msra.mxu0 0.0
      %3782 = vmatprep.subr.mxu0 0.0
      %3783 = vmatpush1.msra.mxu0 0.0
      %3784 = vmatprep.subr.mxu0 0.0
      %3785 = vmatpush1.msra.mxu0 0.0
      %3786 = vmatprep.subr.mxu0 0.0
      %3787 = vmatpush1.msra.mxu0 0.0
      %3788 = vmatprep.mubr.f32.mxu0 0.0
      %3789 = vmatmul.mubr.f32.gmra.mrb[0].mxu0 %v3629
      %v3790 = vpop.f32.mrb[0].mxu0
      %v3791 = vadd.f32 %v3626, %v3790
      %v3792 = vpop.f32.mrb[0].mxu0
      %3793 = vmatprep.mubr.f32.mxu0 0.0
      %3794 = vmatmul.mubr.f32.gmra.mrb[0].mxu0 %v3632
      %v3795 = vpop.f32.mrb[0].mxu0
      %v3796 = vadd.f32 %v3626, %v3795
      %v3797 = vpop.f32.mrb[0].mxu0
      %3798 = vmatprep.mubr.f32.mxu0 0.0
      %3799 = vmatmul.mubr.f32.gmra.mrb[0].mxu0 %v3635
      %v3800 = vpop.f32.mrb[0].mxu0
      %v3801 = vadd.f32 %v3626, %v3800
      %v3802 = vpop.f32.mrb[0].mxu0
      %3803 = vmatprep.mubr.f32.mxu0 0.0
      %3804 = vmatmul.mubr.f32.gmra.mrb[0].mxu0 %v3638
      %v3805 = vpop.f32.mrb[0].mxu0
      %v3806 = vadd.f32 %v3626, %v3805
      %v3807 = vpop.f32.mrb[0].mxu0
      %3808 = vmatprep.mubr.f32.mxu0 0.0
      %3809 = vmatmul.mubr.f32.gmra.mrb[0].mxu0 %v3641
      %v3810 = vpop.f32.mrb[0].mxu0
      %v3811 = vadd.f32 %v3626, %v3810
      %v3812 = vpop.f32.mrb[0].mxu0
      %3813 = vmatprep.mubr.f32.mxu0 0.0
      %3814 = vmatmul.mubr.f32.gmra.mrb[0].mxu0 %v3644
      %v3815 = vpop.f32.mrb[0].mxu0
      %v3816 = vadd.f32 %v3626, %v3815
      %v3817 = vpop.f32.mrb[0].mxu0
      %3818 = vmatprep.mubr.f32.mxu0 0.0
      %3819 = vmatmul.mubr.f32.gmra.mrb[0].mxu0 %v3647
      %v3820 = vpop.f32.mrb[0].mxu0
      %v3821 = vadd.f32 %v3626, %v3820
      %v3822 = vpop.f32.mrb[0].mxu0
      %3823 = vmatprep.mubr.f32.mxu0 0.0
      %3824 = vmatmul.mubr.f32.gmra.mrb[0].mxu0 %v3650
      %v3825 = vpop.f32.mrb[0].mxu0
      %v3826 = vadd.f32 %v3626, %v3825
      %v3827 = vpop.f32.mrb[0].mxu0
      %3828 = vmatprep.mubr.f32.mxu0 0.0
      %3829 = vmatmul.mubr.f32.gmra.mrb[0].mxu0 %v3653
      %v3830 = vpop.f32.mrb[0].mxu0
      %v3831 = vadd.f32 %v3626, %v3830
      %v3832 = vpop.f32.mrb[0].mxu0
      %3833 = vmatprep.mubr.f32.mxu0 0.0
      %3834 = vmatmul.mubr.f32.gmra.mrb[0].mxu0 %v3656
      %v3835 = vpop.f32.mrb[0].mxu0
      %v3836 = vadd.f32 %v3626, %v3835
      %v3837 = vpop.f32.mrb[0].mxu0
      %3838 = vmatprep.mubr.f32.mxu0 0.0
      %3839 = vmatmul.mubr.f32.gmra.mrb[0].mxu0 %v3659
      %v3840 = vpop.f32.mrb[0].mxu0
      %v3841 = vadd.f32 %v3626, %v3840
      %v3842 = vpop.f32.mrb[0].mxu0
      %3843 = vmatprep.mubr.f32.mxu0 0.0
      %3844 = vmatmul.mubr.f32.gmra.mrb[0].mxu0 %v3662
      %v3845 = vpop.f32.mrb[0].mxu0
      %v3846 = vadd.f32 %v3626, %v3845
      %v3847 = vpop.f32.mrb[0].mxu0
      %3848 = vmatprep.mubr.f32.mxu0 0.0
      %3849 = vmatmul.mubr.f32.gmra.mrb[0].mxu0 %v3665
      %v3850 = vpop.f32.mrb[0].mxu0
      %v3851 = vadd.f32 %v3626, %v3850
      %v3852 = vpop.f32.mrb[0].mxu0
      %3853 = vmatprep.mubr.f32.mxu0 0.0
      %3854 = vmatmul.mubr.f32.gmra.mrb[0].mxu0 %v3668
      %v3855 = vpop.f32.mrb[0].mxu0
      %v3856 = vadd.f32 %v3626, %v3855
      %v3857 = vpop.f32.mrb[0].mxu0
      %3858 = vmatprep.mubr.f32.mxu0 0.0
      %3859 = vmatmul.mubr.f32.gmra.mrb[0].mxu0 %v3671
      %v3860 = vpop.f32.mrb[0].mxu0
      %v3861 = vadd.f32 %v3626, %v3860
      %v3862 = vpop.f32.mrb[0].mxu0
      %3863 = vmatprep.mubr.f32.mxu0 0.0
      %3864 = vmatmul.mubr.f32.gmra.mrb[0].mxu0 %v3674
      %v3865 = vpop.f32.mrb[0].mxu0
      %v3866 = vadd.f32 %v3626, %v3865
      %v3867 = vpop.f32.mrb[0].mxu0
      %3868 = vmatprep.mubr.f32.mxu0 0.0
      %3869 = vmatmul.mubr.f32.gmra.mrb[0].mxu0 %v3677
      %v3870 = vpop.f32.mrb[0].mxu0
      %v3871 = vadd.f32 %v3626, %v3870
      %v3872 = vpop.f32.mrb[0].mxu0
      %3873 = vmatprep.mubr.f32.mxu0 0.0
      %3874 = vmatmul.mubr.f32.gmra.mrb[0].mxu0 %v3680
      %v3875 = vpop.f32.mrb[0].mxu0
      %v3876 = vadd.f32 %v3626, %v3875
      %v3877 = vpop.f32.mrb[0].mxu0
      %3878 = vmatprep.mubr.f32.mxu0 0.0
      %3879 = vmatmul.mubr.f32.gmra.mrb[0].mxu0 %v3683
      %v3880 = vpop.f32.mrb[0].mxu0
      %v3881 = vadd.f32 %v3626, %v3880
      %v3882 = vpop.f32.mrb[0].mxu0
      %3883 = vmatprep.mubr.f32.mxu0 0.0
      %3884 = vmatmul.mubr.f32.gmra.mrb[0].mxu0 %v3686
      %v3885 = vpop.f32.mrb[0].mxu0
      %v3886 = vadd.f32 %v3626, %v3885
      %v3887 = vpop.f32.mrb[0].mxu0
      %3888 = vmatprep.mubr.f32.mxu0 0.0
      %3889 = vmatmul.mubr.f32.gmra.mrb[0].mxu0 %v3689
      %v3890 = vpop.f32.mrb[0].mxu0
      %v3891 = vadd.f32 %v3626, %v3890
      %v3892 = vpop.f32.mrb[0].mxu0
      %3893 = vmatprep.mubr.f32.mxu0 0.0
      %3894 = vmatmul.mubr.f32.gmra.mrb[0].mxu0 %v3692
      %v3895 = vpop.f32.mrb[0].mxu0
      %v3896 = vadd.f32 %v3626, %v3895
      %v3897 = vpop.f32.mrb[0].mxu0
      %3898 = vmatprep.mubr.f32.mxu0 0.0
      %3899 = vmatmul.mubr.f32.gmra.mrb[0].mxu0 %v3695
      %v3900 = vpop.f32.mrb[0].mxu0
      %v3901 = vadd.f32 %v3626, %v3900
      %v3902 = vpop.f32.mrb[0].mxu0
      %3903 = vmatprep.mubr.f32.mxu0 0.0
      %3904 = vmatmul.mubr.f32.gmra.mrb[0].mxu0 %v3698
      %v3905 = vpop.f32.mrb[0].mxu0
      %v3906 = vadd.f32 %v3626, %v3905
      %v3907 = vpop.f32.mrb[0].mxu0
      %3908 = vmatprep.mubr.f32.mxu0 0.0
      %3909 = vmatmul.mubr.f32.gmra.mrb[0].mxu0 %v3701
      %v3910 = vpop.f32.mrb[0].mxu0
      %v3911 = vadd.f32 %v3626, %v3910
      %v3912 = vpop.f32.mrb[0].mxu0
      %3913 = vmatprep.mubr.f32.mxu0 0.0
      %3914 = vmatmul.mubr.f32.gmra.mrb[0].mxu0 %v3704
      %v3915 = vpop.f32.mrb[0].mxu0
      %v3916 = vadd.f32 %v3626, %v3915
      %v3917 = vpop.f32.mrb[0].mxu0
      %3918 = vmatprep.mubr.f32.mxu0 0.0
      %3919 = vmatmul.mubr.f32.gmra.mrb[0].mxu0 %v3707
      %v3920 = vpop.f32.mrb[0].mxu0
      %v3921 = vadd.f32 %v3626, %v3920
      %v3922 = vpop.f32.mrb[0].mxu0
      %3923 = vmatprep.mubr.f32.mxu0 0.0
      %3924 = vmatmul.mubr.f32.gmra.mrb[0].mxu0 %v3710
      %v3925 = vpop.f32.mrb[0].mxu0
      %v3926 = vadd.f32 %v3626, %v3925
      %v3927 = vpop.f32.mrb[0].mxu0
      %3928 = vmatprep.mubr.f32.mxu0 0.0
      %3929 = vmatmul.mubr.f32.gmra.mrb[0].mxu0 %v3713
      %v3930 = vpop.f32.mrb[0].mxu0
      %v3931 = vadd.f32 %v3626, %v3930
      %v3932 = vpop.f32.mrb[0].mxu0
      %3933 = vmatprep.mubr.f32.mxu0 0.0
      %3934 = vmatmul.mubr.f32.gmra.mrb[0].mxu0 %v3716
      %v3935 = vpop.f32.mrb[0].mxu0
      %v3936 = vadd.f32 %v3626, %v3935
      %v3937 = vpop.f32.mrb[0].mxu0
      %3938 = vmatprep.mubr.f32.mxu0 0.0
      %3939 = vmatmul.mubr.f32.gmra.mrb[0].mxu0 %v3719
      %v3940 = vpop.f32.mrb[0].mxu0
      %v3941 = vadd.f32 %v3626, %v3940
      %v3942 = vpop.f32.mrb[0].mxu0
      %3943 = vmatprep.mubr.f32.mxu0 0.0
      %3944 = vmatmul.mubr.f32.gmra.mrb[0].mxu0 %v3722
      %v3945 = vpop.f32.mrb[0].mxu0
      %v3946 = vadd.f32 %v3626, %v3945
      %v3947 = vpop.f32.mrb[0].mxu0
      %3948 = vdwg.mxu0
      %v3949 = vmax.f32 %v3791, 0.0
      %v3950 = vmax.f32 %v3796, 0.0
      %v3951 = vmax.f32 %v3801, 0.0
      %v3952 = vmax.f32 %v3806, 0.0
      %v3953 = vmax.f32 %v3811, 0.0
      %v3954 = vmax.f32 %v3816, 0.0
      %v3955 = vmax.f32 %v3821, 0.0
      %v3956 = vmax.f32 %v3826, 0.0
      %v3957 = vmax.f32 %v3831, 0.0
      %v3958 = vmax.f32 %v3836, 0.0
      %v3959 = vmax.f32 %v3841, 0.0
      %v3960 = vmax.f32 %v3846, 0.0
      %v3961 = vmax.f32 %v3851, 0.0
      %v3962 = vmax.f32 %v3856, 0.0
      %v3963 = vmax.f32 %v3861, 0.0
      %v3964 = vmax.f32 %v3866, 0.0
      %v3965 = vmax.f32 %v3871, 0.0
      %v3966 = vmax.f32 %v3876, 0.0
      %v3967 = vmax.f32 %v3881, 0.0
      %v3968 = vmax.f32 %v3886, 0.0
      %v3969 = vmax.f32 %v3891, 0.0
      %v3970 = vmax.f32 %v3896, 0.0
      %v3971 = vmax.f32 %v3901, 0.0
      %v3972 = vmax.f32 %v3906, 0.0
      %v3973 = vmax.f32 %v3911, 0.0
      %v3974 = vmax.f32 %v3916, 0.0
      %v3975 = vmax.f32 %v3921, 0.0
      %v3976 = vmax.f32 %v3926, 0.0
      %v3977 = vmax.f32 %v3931, 0.0
      %v3978 = vmax.f32 %v3936, 0.0
      %v3979 = vmax.f32 %v3941, 0.0
      %v3980 = vmax.f32 %v3946, 0.0
      %v3981 = vld [vmem:[%s9] sm:$0xff]
      %v3982 = vld [vmem:[%s9 + $0x8] sm:$0xff]
      %v3983 = vld [vmem:[%s9 + $0x10] sm:$0xff]
      %v3984 = vld [vmem:[%s9 + $0x18] sm:$0xff]
      %v3985 = vld [vmem:[%s10] sm:$0x1]
      %v3987 = vlaneseq
      %v3988 = vshrl.u32 %v3987, 7
      %v3989 = vsub.s32 0, %v3988
      %v3990 = vrot.slane %v3985, %v3989
      %v3993 = vsel %vm870, %v3949, 0
      %v3996 = vsel %vm870, %v3950, 0
      %v3999 = vsel %vm870, %v3951, 0
      %v4002 = vsel %vm870, %v3952, 0
      %v4005 = vsel %vm870, %v3953, 0
      %v4008 = vsel %vm870, %v3954, 0
      %v4011 = vsel %vm870, %v3955, 0
      %v4014 = vsel %vm870, %v3956, 0
      %v4017 = vsel %vm870, %v3957, 0
      %v4020 = vsel %vm870, %v3958, 0
      %v4023 = vsel %vm870, %v3959, 0
      %v4026 = vsel %vm870, %v3960, 0
      %v4029 = vsel %vm870, %v3961, 0
      %v4032 = vsel %vm870, %v3962, 0
      %v4035 = vsel %vm870, %v3963, 0
      %v4038 = vsel %vm870, %v3964, 0
      %v4041 = vsel %vm870, %v3965, 0
      %v4044 = vsel %vm870, %v3966, 0
      %v4047 = vsel %vm870, %v3967, 0
      %v4050 = vsel %vm870, %v3968, 0
      %v4053 = vsel %vm870, %v3969, 0
      %v4056 = vsel %vm870, %v3970, 0
      %v4059 = vsel %vm870, %v3971, 0
      %v4062 = vsel %vm870, %v3972, 0
      %v4065 = vsel %vm870, %v3973, 0
      %v4068 = vsel %vm870, %v3974, 0
      %v4071 = vsel %vm870, %v3975, 0
      %v4074 = vsel %vm870, %v3976, 0
      %v4077 = vsel %vm870, %v3977, 0
      %v4080 = vsel %vm870, %v3978, 0
      %v4083 = vsel %vm870, %v3979, 0
      %v4086 = vsel %vm870, %v3980, 0
      %4088 = vmatprep.subr.mxu0 0.0
      %4089 = vmatpush1.msra.mxu0 %v3981
      %4090 = vmatprep.subr.mxu0 0.0
      %4091 = vmatpush1.msra.mxu0 %v3982
      %4092 = vmatprep.subr.mxu0 0.0
      %4093 = vmatpush1.msra.mxu0 %v3983
      %4094 = vmatprep.subr.mxu0 0.0
      %4095 = vmatpush1.msra.mxu0 %v3984
      %4096 = vmatprep.subr.mxu0 0.0
      %4097 = vmatpush1.msra.mxu0 0.0
      %4098 = vmatprep.subr.mxu0 0.0
      %4099 = vmatpush1.msra.mxu0 0.0
      %4100 = vmatprep.subr.mxu0 0.0
      %4101 = vmatpush1.msra.mxu0 0.0
      %4102 = vmatprep.subr.mxu0 0.0
      %4103 = vmatpush1.msra.mxu0 0.0
      %4104 = vmatprep.subr.mxu0 0.0
      %4105 = vmatpush1.msra.mxu0 0.0
      %4106 = vmatprep.subr.mxu0 0.0
      %4107 = vmatpush1.msra.mxu0 0.0
      %4108 = vmatprep.subr.mxu0 0.0
      %4109 = vmatpush1.msra.mxu0 0.0
      %4110 = vmatprep.subr.mxu0 0.0
      %4111 = vmatpush1.msra.mxu0 0.0
      %4112 = vmatprep.subr.mxu0 0.0
      %4113 = vmatpush1.msra.mxu0 0.0
      %4114 = vmatprep.subr.mxu0 0.0
      %4115 = vmatpush1.msra.mxu0 0.0
      %4116 = vmatprep.subr.mxu0 0.0
      %4117 = vmatpush1.msra.mxu0 0.0
      %4118 = vmatprep.subr.mxu0 0.0
      %4119 = vmatpush1.msra.mxu0 0.0
      %4120 = vmatprep.subr.mxu0 0.0
      %4121 = vmatpush1.msra.mxu0 0.0
      %4122 = vmatprep.subr.mxu0 0.0
      %4123 = vmatpush1.msra.mxu0 0.0
      %4124 = vmatprep.subr.mxu0 0.0
      %4125 = vmatpush1.msra.mxu0 0.0
      %4126 = vmatprep.subr.mxu0 0.0
      %4127 = vmatpush1.msra.mxu0 0.0
      %4128 = vmatprep.subr.mxu0 0.0
      %4129 = vmatpush1.msra.mxu0 0.0
      %4130 = vmatprep.subr.mxu0 0.0
      %4131 = vmatpush1.msra.mxu0 0.0
      %4132 = vmatprep.subr.mxu0 0.0
      %4133 = vmatpush1.msra.mxu0 0.0
      %4134 = vmatprep.subr.mxu0 0.0
      %4135 = vmatpush1.msra.mxu0 0.0
      %4136 = vmatprep.subr.mxu0 0.0
      %4137 = vmatpush1.msra.mxu0 0.0
      %4138 = vmatprep.subr.mxu0 0.0
      %4139 = vmatpush1.msra.mxu0 0.0
      %4140 = vmatprep.subr.mxu0 0.0
      %4141 = vmatpush1.msra.mxu0 0.0
      %4142 = vmatprep.subr.mxu0 0.0
      %4143 = vmatpush1.msra.mxu0 0.0
      %4144 = vmatprep.subr.mxu0 0.0
      %4145 = vmatpush1.msra.mxu0 0.0
      %4146 = vmatprep.subr.mxu0 0.0
      %4147 = vmatpush1.msra.mxu0 0.0
      %4148 = vmatprep.subr.mxu0 0.0
      %4149 = vmatpush1.msra.mxu0 0.0
      %4150 = vmatprep.subr.mxu0 0.0
      %4151 = vmatpush1.msra.mxu0 0.0
      %4152 = vmatprep.mubr.f32.mxu0 0.0
      %4153 = vmatmul.mubr.f32.gmra.mrb[0].mxu0 %v3993
      %v4154 = vpop.f32.mrb[0].mxu0
      %v4155 = vadd.f32 %v3990, %v4154
      %v4156 = vpop.f32.mrb[0].mxu0
      %4157 = vmatprep.mubr.f32.mxu0 0.0
      %4158 = vmatmul.mubr.f32.gmra.mrb[0].mxu0 %v3996
      %v4159 = vpop.f32.mrb[0].mxu0
      %v4160 = vadd.f32 %v3990, %v4159
      %v4161 = vpop.f32.mrb[0].mxu0
      %4162 = vmatprep.mubr.f32.mxu0 0.0
      %4163 = vmatmul.mubr.f32.gmra.mrb[0].mxu0 %v3999
      %v4164 = vpop.f32.mrb[0].mxu0
      %v4165 = vadd.f32 %v3990, %v4164
      %v4166 = vpop.f32.mrb[0].mxu0
      %4167 = vmatprep.mubr.f32.mxu0 0.0
      %4168 = vmatmul.mubr.f32.gmra.mrb[0].mxu0 %v4002
      %v4169 = vpop.f32.mrb[0].mxu0
      %v4170 = vadd.f32 %v3990, %v4169
      %v4171 = vpop.f32.mrb[0].mxu0
      %4172 = vmatprep.mubr.f32.mxu0 0.0
      %4173 = vmatmul.mubr.f32.gmra.mrb[0].mxu0 %v4005
      %v4174 = vpop.f32.mrb[0].mxu0
      %v4175 = vadd.f32 %v3990, %v4174
      %v4176 = vpop.f32.mrb[0].mxu0
      %4177 = vmatprep.mubr.f32.mxu0 0.0
      %4178 = vmatmul.mubr.f32.gmra.mrb[0].mxu0 %v4008
      %v4179 = vpop.f32.mrb[0].mxu0
      %v4180 = vadd.f32 %v3990, %v4179
      %v4181 = vpop.f32.mrb[0].mxu0
      %4182 = vmatprep.mubr.f32.mxu0 0.0
      %4183 = vmatmul.mubr.f32.gmra.mrb[0].mxu0 %v4011
      %v4184 = vpop.f32.mrb[0].mxu0
      %v4185 = vadd.f32 %v3990, %v4184
      %v4186 = vpop.f32.mrb[0].mxu0
      %4187 = vmatprep.mubr.f32.mxu0 0.0
      %4188 = vmatmul.mubr.f32.gmra.mrb[0].mxu0 %v4014
      %v4189 = vpop.f32.mrb[0].mxu0
      %v4190 = vadd.f32 %v3990, %v4189
      %v4191 = vpop.f32.mrb[0].mxu0
      %4192 = vmatprep.mubr.f32.mxu0 0.0
      %4193 = vmatmul.mubr.f32.gmra.mrb[0].mxu0 %v4017
      %v4194 = vpop.f32.mrb[0].mxu0
      %v4195 = vadd.f32 %v3990, %v4194
      %v4196 = vpop.f32.mrb[0].mxu0
      %4197 = vmatprep.mubr.f32.mxu0 0.0
      %4198 = vmatmul.mubr.f32.gmra.mrb[0].mxu0 %v4020
      %v4199 = vpop.f32.mrb[0].mxu0
      %v4200 = vadd.f32 %v3990, %v4199
      %v4201 = vpop.f32.mrb[0].mxu0
      %4202 = vmatprep.mubr.f32.mxu0 0.0
      %4203 = vmatmul.mubr.f32.gmra.mrb[0].mxu0 %v4023
      %v4204 = vpop.f32.mrb[0].mxu0
      %v4205 = vadd.f32 %v3990, %v4204
      %v4206 = vpop.f32.mrb[0].mxu0
      %4207 = vmatprep.mubr.f32.mxu0 0.0
      %4208 = vmatmul.mubr.f32.gmra.mrb[0].mxu0 %v4026
      %v4209 = vpop.f32.mrb[0].mxu0
      %v4210 = vadd.f32 %v3990, %v4209
      %v4211 = vpop.f32.mrb[0].mxu0
      %4212 = vmatprep.mubr.f32.mxu0 0.0
      %4213 = vmatmul.mubr.f32.gmra.mrb[0].mxu0 %v4029
      %v4214 = vpop.f32.mrb[0].mxu0
      %v4215 = vadd.f32 %v3990, %v4214
      %v4216 = vpop.f32.mrb[0].mxu0
      %4217 = vmatprep.mubr.f32.mxu0 0.0
      %4218 = vmatmul.mubr.f32.gmra.mrb[0].mxu0 %v4032
      %v4219 = vpop.f32.mrb[0].mxu0
      %v4220 = vadd.f32 %v3990, %v4219
      %v4221 = vpop.f32.mrb[0].mxu0
      %4222 = vmatprep.mubr.f32.mxu0 0.0
      %4223 = vmatmul.mubr.f32.gmra.mrb[0].mxu0 %v4035
      %v4224 = vpop.f32.mrb[0].mxu0
      %v4225 = vadd.f32 %v3990, %v4224
      %v4226 = vpop.f32.mrb[0].mxu0
      %4227 = vmatprep.mubr.f32.mxu0 0.0
      %4228 = vmatmul.mubr.f32.gmra.mrb[0].mxu0 %v4038
      %v4229 = vpop.f32.mrb[0].mxu0
      %v4230 = vadd.f32 %v3990, %v4229
      %v4231 = vpop.f32.mrb[0].mxu0
      %4232 = vmatprep.mubr.f32.mxu0 0.0
      %4233 = vmatmul.mubr.f32.gmra.mrb[0].mxu0 %v4041
      %v4234 = vpop.f32.mrb[0].mxu0
      %v4235 = vadd.f32 %v3990, %v4234
      %v4236 = vpop.f32.mrb[0].mxu0
      %4237 = vmatprep.mubr.f32.mxu0 0.0
      %4238 = vmatmul.mubr.f32.gmra.mrb[0].mxu0 %v4044
      %v4239 = vpop.f32.mrb[0].mxu0
      %v4240 = vadd.f32 %v3990, %v4239
      %v4241 = vpop.f32.mrb[0].mxu0
      %4242 = vmatprep.mubr.f32.mxu0 0.0
      %4243 = vmatmul.mubr.f32.gmra.mrb[0].mxu0 %v4047
      %v4244 = vpop.f32.mrb[0].mxu0
      %v4245 = vadd.f32 %v3990, %v4244
      %v4246 = vpop.f32.mrb[0].mxu0
      %4247 = vmatprep.mubr.f32.mxu0 0.0
      %4248 = vmatmul.mubr.f32.gmra.mrb[0].mxu0 %v4050
      %v4249 = vpop.f32.mrb[0].mxu0
      %v4250 = vadd.f32 %v3990, %v4249
      %v4251 = vpop.f32.mrb[0].mxu0
      %4252 = vmatprep.mubr.f32.mxu0 0.0
      %4253 = vmatmul.mubr.f32.gmra.mrb[0].mxu0 %v4053
      %v4254 = vpop.f32.mrb[0].mxu0
      %v4255 = vadd.f32 %v3990, %v4254
      %v4256 = vpop.f32.mrb[0].mxu0
      %4257 = vmatprep.mubr.f32.mxu0 0.0
      %4258 = vmatmul.mubr.f32.gmra.mrb[0].mxu0 %v4056
      %v4259 = vpop.f32.mrb[0].mxu0
      %v4260 = vadd.f32 %v3990, %v4259
      %v4261 = vpop.f32.mrb[0].mxu0
      %4262 = vmatprep.mubr.f32.mxu0 0.0
      %4263 = vmatmul.mubr.f32.gmra.mrb[0].mxu0 %v4059
      %v4264 = vpop.f32.mrb[0].mxu0
      %v4265 = vadd.f32 %v3990, %v4264
      %v4266 = vpop.f32.mrb[0].mxu0
      %4267 = vmatprep.mubr.f32.mxu0 0.0
      %4268 = vmatmul.mubr.f32.gmra.mrb[0].mxu0 %v4062
      %v4269 = vpop.f32.mrb[0].mxu0
      %v4270 = vadd.f32 %v3990, %v4269
      %v4271 = vpop.f32.mrb[0].mxu0
      %4272 = vmatprep.mubr.f32.mxu0 0.0
      %4273 = vmatmul.mubr.f32.gmra.mrb[0].mxu0 %v4065
      %v4274 = vpop.f32.mrb[0].mxu0
      %v4275 = vadd.f32 %v3990, %v4274
      %v4276 = vpop.f32.mrb[0].mxu0
      %4277 = vmatprep.mubr.f32.mxu0 0.0
      %4278 = vmatmul.mubr.f32.gmra.mrb[0].mxu0 %v4068
      %v4279 = vpop.f32.mrb[0].mxu0
      %v4280 = vadd.f32 %v3990, %v4279
      %v4281 = vpop.f32.mrb[0].mxu0
      %4282 = vmatprep.mubr.f32.mxu0 0.0
      %4283 = vmatmul.mubr.f32.gmra.mrb[0].mxu0 %v4071
      %v4284 = vpop.f32.mrb[0].mxu0
      %v4285 = vadd.f32 %v3990, %v4284
      %v4286 = vpop.f32.mrb[0].mxu0
      %4287 = vmatprep.mubr.f32.mxu0 0.0
      %4288 = vmatmul.mubr.f32.gmra.mrb[0].mxu0 %v4074
      %v4289 = vpop.f32.mrb[0].mxu0
      %v4290 = vadd.f32 %v3990, %v4289
      %v4291 = vpop.f32.mrb[0].mxu0
      %4292 = vmatprep.mubr.f32.mxu0 0.0
      %4293 = vmatmul.mubr.f32.gmra.mrb[0].mxu0 %v4077
      %v4294 = vpop.f32.mrb[0].mxu0
      %v4295 = vadd.f32 %v3990, %v4294
      %v4296 = vpop.f32.mrb[0].mxu0
      %4297 = vmatprep.mubr.f32.mxu0 0.0
      %4298 = vmatmul.mubr.f32.gmra.mrb[0].mxu0 %v4080
      %v4299 = vpop.f32.mrb[0].mxu0
      %v4300 = vadd.f32 %v3990, %v4299
      %v4301 = vpop.f32.mrb[0].mxu0
      %4302 = vmatprep.mubr.f32.mxu0 0.0
      %4303 = vmatmul.mubr.f32.gmra.mrb[0].mxu0 %v4083
      %v4304 = vpop.f32.mrb[0].mxu0
      %v4305 = vadd.f32 %v3990, %v4304
      %v4306 = vpop.f32.mrb[0].mxu0
      %4307 = vmatprep.mubr.f32.mxu0 0.0
      %4308 = vmatmul.mubr.f32.gmra.mrb[0].mxu0 %v4086
      %v4309 = vpop.f32.mrb[0].mxu0
      %v4310 = vadd.f32 %v3990, %v4309
      %v4311 = vpop.f32.mrb[0].mxu0
      %4312 = vdwg.mxu0
      %v4313 = vmax.f32 %v4155, 0.0
      %v4314 = vmax.f32 %v4160, 0.0
      %v4315 = vmax.f32 %v4165, 0.0
      %v4316 = vmax.f32 %v4170, 0.0
      %v4317 = vmax.f32 %v4175, 0.0
      %v4318 = vmax.f32 %v4180, 0.0
      %v4319 = vmax.f32 %v4185, 0.0
      %v4320 = vmax.f32 %v4190, 0.0
      %v4321 = vmax.f32 %v4195, 0.0
      %v4322 = vmax.f32 %v4200, 0.0
      %v4323 = vmax.f32 %v4205, 0.0
      %v4324 = vmax.f32 %v4210, 0.0
      %v4325 = vmax.f32 %v4215, 0.0
      %v4326 = vmax.f32 %v4220, 0.0
      %v4327 = vmax.f32 %v4225, 0.0
      %v4328 = vmax.f32 %v4230, 0.0
      %v4329 = vmax.f32 %v4235, 0.0
      %v4330 = vmax.f32 %v4240, 0.0
      %v4331 = vmax.f32 %v4245, 0.0
      %v4332 = vmax.f32 %v4250, 0.0
      %v4333 = vmax.f32 %v4255, 0.0
      %v4334 = vmax.f32 %v4260, 0.0
      %v4335 = vmax.f32 %v4265, 0.0
      %v4336 = vmax.f32 %v4270, 0.0
      %v4337 = vmax.f32 %v4275, 0.0
      %v4338 = vmax.f32 %v4280, 0.0
      %v4339 = vmax.f32 %v4285, 0.0
      %v4340 = vmax.f32 %v4290, 0.0
      %v4341 = vmax.f32 %v4295, 0.0
      %v4342 = vmax.f32 %v4300, 0.0
      %v4343 = vmax.f32 %v4305, 0.0
      %v4344 = vmax.f32 %v4310, 0.0
      %v4345 = vld [vmem:[%s11] sm:$0xff]
      %v4346 = vld [vmem:[%s12] sm:$0xff]
      %4348 = vset.pattern.permute.xlu0 0
      %4349 = vperm.xlu0 %4348, %v4346
      %v4350 = vpop.permute.xlu0 %4349
      %v4353 = vsel %vm870, %v4345, 0
      %v4356 = vsel %vm870, %v4313, 0
      %v4359 = vsel %vm870, %v4314, 0
      %v4362 = vsel %vm870, %v4315, 0
      %v4365 = vsel %vm870, %v4316, 0
      %v4368 = vsel %vm870, %v4317, 0
      %v4371 = vsel %vm870, %v4318, 0
      %v4374 = vsel %vm870, %v4319, 0
      %v4377 = vsel %vm870, %v4320, 0
      %v4380 = vsel %vm870, %v4321, 0
      %v4383 = vsel %vm870, %v4322, 0
      %v4386 = vsel %vm870, %v4323, 0
      %v4389 = vsel %vm870, %v4324, 0
      %v4392 = vsel %vm870, %v4325, 0
      %v4395 = vsel %vm870, %v4326, 0
      %v4398 = vsel %vm870, %v4327, 0
      %v4401 = vsel %vm870, %v4328, 0
      %v4404 = vsel %vm870, %v4329, 0
      %v4407 = vsel %vm870, %v4330, 0
      %v4410 = vsel %vm870, %v4331, 0
      %v4413 = vsel %vm870, %v4332, 0
      %v4416 = vsel %vm870, %v4333, 0
      %v4419 = vsel %vm870, %v4334, 0
      %v4422 = vsel %vm870, %v4335, 0
      %v4425 = vsel %vm870, %v4336, 0
      %v4428 = vsel %vm870, %v4337, 0
      %v4431 = vsel %vm870, %v4338, 0
      %v4434 = vsel %vm870, %v4339, 0
      %v4437 = vsel %vm870, %v4340, 0
      %v4440 = vsel %vm870, %v4341, 0
      %v4443 = vsel %vm870, %v4342, 0
      %v4446 = vsel %vm870, %v4343, 0
      %v4449 = vsel %vm870, %v4344, 0
      %4451 = vmatprep.subr.mxu0 0.0
      %4452 = vmatpush1.xpose.msra.mxu0 %v4356
      %4453 = vmatprep.subr.mxu0 0.0
      %4454 = vmatpush1.xpose.msra.mxu0 %v4359
      %4455 = vmatprep.subr.mxu0 0.0
      %4456 = vmatpush1.xpose.msra.mxu0 %v4362
      %4457 = vmatprep.subr.mxu0 0.0
      %4458 = vmatpush1.xpose.msra.mxu0 %v4365
      %4459 = vmatprep.subr.mxu0 0.0
      %4460 = vmatpush1.xpose.msra.mxu0 %v4368
      %4461 = vmatprep.subr.mxu0 0.0
      %4462 = vmatpush1.xpose.msra.mxu0 %v4371
      %4463 = vmatprep.subr.mxu0 0.0
      %4464 = vmatpush1.xpose.msra.mxu0 %v4374
      %4465 = vmatprep.subr.mxu0 0.0
      %4466 = vmatpush1.xpose.msra.mxu0 %v4377
      %4467 = vmatprep.subr.mxu0 0.0
      %4468 = vmatpush1.xpose.msra.mxu0 %v4380
      %4469 = vmatprep.subr.mxu0 0.0
      %4470 = vmatpush1.xpose.msra.mxu0 %v4383
      %4471 = vmatprep.subr.mxu0 0.0
      %4472 = vmatpush1.xpose.msra.mxu0 %v4386
      %4473 = vmatprep.subr.mxu0 0.0
      %4474 = vmatpush1.xpose.msra.mxu0 %v4389
      %4475 = vmatprep.subr.mxu0 0.0
      %4476 = vmatpush1.xpose.msra.mxu0 %v4392
      %4477 = vmatprep.subr.mxu0 0.0
      %4478 = vmatpush1.xpose.msra.mxu0 %v4395
      %4479 = vmatprep.subr.mxu0 0.0
      %4480 = vmatpush1.xpose.msra.mxu0 %v4398
      %4481 = vmatprep.subr.mxu0 0.0
      %4482 = vmatpush1.xpose.msra.mxu0 %v4401
      %4483 = vmatprep.subr.mxu0 0.0
      %4484 = vmatpush1.xpose.msra.mxu0 %v4404
      %4485 = vmatprep.subr.mxu0 0.0
      %4486 = vmatpush1.xpose.msra.mxu0 %v4407
      %4487 = vmatprep.subr.mxu0 0.0
      %4488 = vmatpush1.xpose.msra.mxu0 %v4410
      %4489 = vmatprep.subr.mxu0 0.0
      %4490 = vmatpush1.xpose.msra.mxu0 %v4413
      %4491 = vmatprep.subr.mxu0 0.0
      %4492 = vmatpush1.xpose.msra.mxu0 %v4416
      %4493 = vmatprep.subr.mxu0 0.0
      %4494 = vmatpush1.xpose.msra.mxu0 %v4419
      %4495 = vmatprep.subr.mxu0 0.0
      %4496 = vmatpush1.xpose.msra.mxu0 %v4422
      %4497 = vmatprep.subr.mxu0 0.0
      %4498 = vmatpush1.xpose.msra.mxu0 %v4425
      %4499 = vmatprep.subr.mxu0 0.0
      %4500 = vmatpush1.xpose.msra.mxu0 %v4428
      %4501 = vmatprep.subr.mxu0 0.0
      %4502 = vmatpush1.xpose.msra.mxu0 %v4431
      %4503 = vmatprep.subr.mxu0 0.0
      %4504 = vmatpush1.xpose.msra.mxu0 %v4434
      %4505 = vmatprep.subr.mxu0 0.0
      %4506 = vmatpush1.xpose.msra.mxu0 %v4437
      %4507 = vmatprep.subr.mxu0 0.0
      %4508 = vmatpush1.xpose.msra.mxu0 %v4440
      %4509 = vmatprep.subr.mxu0 0.0
      %4510 = vmatpush1.xpose.msra.mxu0 %v4443
      %4511 = vmatprep.subr.mxu0 0.0
      %4512 = vmatpush1.xpose.msra.mxu0 %v4446
      %4513 = vmatprep.subr.mxu0 0.0
      %4514 = vmatpush1.xpose.msra.mxu0 %v4449
      %4515 = vmatprep.mubr.f32.mxu0 0.0
      %4516 = vmatmul.mubr.f32.gmra.mrb[0].mxu0 %v4353
      %v4517 = vpop.f32.mrb[0].mxu0
      %v4518 = vadd.f32 %v4350, %v4517
      %v4519 = vpop.f32.mrb[0].mxu0
      %v4520 = vadd.f32 %v4350, %v4519
      %4521 = vdwg.mxu0
      %4522 = vst [vmem:[%s462 + $0x10] sm:$0xff] %v4518
      %4523 = vst [vmem:[%s462 + $0x18] sm:$0xff] %v4520
      %s4524 = smul.u32 4, %s24
      %p4525 = scmp.lt.s32.totalorder %s4524, 7
      %s4526 = scalar_select %p4525, %s4524, 7
      %s4527 = smul.addr %s4526, 8
      %s4528 = scalar_lea.vmem %s13, %s4527
      // Predicated region
      $region73: #{_dnet3_forward_impl.1} parent=71 // pred_check
        %p4529 = pneg %p320
      $region74: #{_dnet3_forward_impl.1} parent=71 // pred_check_branch
        %4531 = sbr.rel (%p4529) target = $region76
      $region75: #{_dnet3_forward_impl.1} parent=71 // pred_region
        %s4532 = smul.u32 4, %s24
      $region76: #{_dnet3_forward_impl.1} parent=71 // pred_fallthru
        _
    $region72: #{_dnet3_forward_impl.1} parent=5 // pred_fallthru
      _
    %p4533 = scmp.le.s32.totalorder 2, %s19
    // Predicated region
    $region77: #{_dnet3_forward_impl.1} parent=5 // pred_check
      %p4534 = pneg %p4533
    $region78: #{_dnet3_forward_impl.1} parent=5 // pred_check_branch
      %4536 = sbr.rel (%p4534) target = $region80
    $region79: #{_dnet3_forward_impl.1} parent=5 // pred_region
      %s4537 = ssub.s32 %s19, 2
      // Predicated region
      $region81: #{_dnet3_forward_impl.1} parent=79 // pred_check
        %p4538 = pneg %p326
      $region82: #{_dnet3_forward_impl.1} parent=79 // pred_check_branch
        %4540 = sbr.rel (%p4538) target = $region84
      $region83: #{_dnet3_forward_impl.1} parent=79 // pred_region
        %s4541 = smul.u32 4, %s25
        %p4542 = scmp.lt.s32.totalorder %s4541, 7
        %s4543 = scalar_select %p4542, %s4541, 7
        %s4544 = smul.addr %s4543, 8
        %s4545 = scalar_lea.vmem %s13, %s4544
      $region84: #{_dnet3_forward_impl.1} parent=79 // pred_fallthru
        _
    $region80: #{_dnet3_forward_impl.1} parent=5 // pred_fallthru
      _
  $region6: #{_dnet3_forward_impl.1} parent=0 // loop_footer
    %s23 = sadd.s32 1, %s19
  $region7: #{_dnet3_forward_impl.1} parent=0 // loop_footer_branch
    %18 = sbr.rel target = $region3
  $region8: #{_dnet3_forward_impl.1} parent=0 // loop_exit
    _

</llo_original>
